<compile_context>
chip_gen: v5e
topology: v5e:2x2
jax: 0.10.0
libtpu: 0.0.40
codegen_flags: <defaults>
</compile_context>

<pallas_src>
import jax
import jax.numpy as jnp
from jax import lax
from jax.experimental import pallas as pl
from jax.experimental.pallas import tpu as pltpu


def _round_up(a, m):
    return (a + m - 1) // m * m


# ----------------------------- fused Pallas kernel ---------------------------

def down_fused_kernel(xw_ref, w1_ref, s1_ref, b1_ref, w2_ref, s2_ref, b2_ref,
                      o_ref, pad1_ref, pad2_ref):
    # xw_ref  : (1, Ho, 2, W, Cin) f32   H split into (Ho, 2) row pairs (free reshape)
    # w1_ref  : (9, Cin, Cmid)     bf16  tap k = 3*dy+dx along the leading axis
    # w2_ref  : (9, Cmid, Cout)    bf16
    # s*/b*   : (1, C)             f32   folded BatchNorm scale / shift
    # o_ref   : (1, Ho, Wo, Cout)  f32
    # pad*_ref: (Ho+2, Wp, C)      bf16  zero-border padded activations (Wp >= Wo+2)
    _, Ho, _, W, Cin = xw_ref.shape
    Wo = W // 2
    Cmid = w1_ref.shape[2]
    Cout = w2_ref.shape[2]
    HW = Ho * Wo

    # ---------------- MaxPool2d(2) --------------------------------------------
    # Row-pair max: selects whole (W, Cin) planes (major-dim index, cheap).
    rmax = jnp.maximum(xw_ref[0, :, 0, :, :], xw_ref[0, :, 1, :, :])   # (Ho, W, Cin) f32
    # Column-pair max: single sublane-level reorg on the already-halved tensor.
    rmax = rmax.reshape(Ho, Wo, 2, Cin)
    pooled = jnp.maximum(rmax[:, :, 0, :], rmax[:, :, 1, :])           # (Ho, Wo, Cin) f32

    # ---------------- conv1 (3x3, pad=1) + folded BN + ReLU --------------------
    pdt1 = pad1_ref.dtype
    # Zero only the halo border (interior is overwritten right after).
    pad1_ref[0] = jnp.zeros((pad1_ref.shape[1], Cin), pdt1)
    pad1_ref[Ho + 1] = jnp.zeros((pad1_ref.shape[1], Cin), pdt1)
    pad1_ref[:, 0:1, :] = jnp.zeros((Ho + 2, 1, Cin), pdt1)
    pad1_ref[:, Wo + 1:Wo + 2, :] = jnp.zeros((Ho + 2, 1, Cin), pdt1)
    pad1_ref[1:Ho + 1, 1:Wo + 1, :] = pooled.astype(pdt1)

    acc1 = jnp.zeros((HW, Cmid), jnp.float32)
    for k in range(9):                       # 9 accumulating MXU dots, no im2col scratch
        dy, dx = k // 3, k % 3
        patch = pad1_ref[dy:dy + Ho, dx:dx + Wo, :].reshape(HW, Cin)   # bf16
        acc1 = acc1 + jnp.dot(patch, w1_ref[k], preferred_element_type=jnp.float32)
    y1 = jnp.maximum(acc1 * s1_ref[0] + b1_ref[0], 0.0)               # (HW, Cmid) f32

    # ---------------- conv2 (3x3, pad=1) + folded BN + ReLU --------------------
    pdt2 = pad2_ref.dtype
    pad2_ref[0] = jnp.zeros((pad2_ref.shape[1], Cmid), pdt2)
    pad2_ref[Ho + 1] = jnp.zeros((pad2_ref.shape[1], Cmid), pdt2)
    pad2_ref[:, 0:1, :] = jnp.zeros((Ho + 2, 1, Cmid), pdt2)
    pad2_ref[:, Wo + 1:Wo + 2, :] = jnp.zeros((Ho + 2, 1, Cmid), pdt2)
    pad2_ref[1:Ho + 1, 1:Wo + 1, :] = y1.reshape(Ho, Wo, Cmid).astype(pdt2)

    acc2 = jnp.zeros((HW, Cout), jnp.float32)
    for k in range(9):
        dy, dx = k // 3, k % 3
        patch = pad2_ref[dy:dy + Ho, dx:dx + Wo, :].reshape(HW, Cmid)  # bf16
        acc2 = acc2 + jnp.dot(patch, w2_ref[k], preferred_element_type=jnp.float32)
    y2 = jnp.maximum(acc2 * s2_ref[0] + b2_ref[0], 0.0)               # (HW, Cout) f32

    o_ref[0] = y2.reshape(Ho, Wo, Cout).astype(o_ref.dtype)


# ----------------------------- wrapper ---------------------------------------

def down_fused(x_nhwc, w1_hwio, scale1, shift1, w2_hwio, scale2, shift2):
    N, H, W, Cin = x_nhwc.shape
    assert H % 2 == 0 and W % 2 == 0, "MaxPool2d(2) requires even spatial dims"
    Ho, Wo = H // 2, W // 2
    Cmid = w1_hwio.shape[-1]
    Cout = w2_hwio.shape[-1]
    HW = Ho * Wo
    Wp = _round_up(Wo + 2, 8)                 # sublane-aligned padded width

    # Free (row-major) reshape exposing the 2x2 pooling row pairs; no transpose/pad pass.
    xw = x_nhwc.reshape(N, Ho, 2, W, Cin).astype(jnp.float32)

    # HWIO -> (9, Cin, Cout), tap k = 3*dy + dx on the leading axis; bf16 MXU operands.
    w1 = w1_hwio.reshape(9, Cin, Cmid).astype(jnp.bfloat16)
    w2 = w2_hwio.reshape(9, Cmid, Cout).astype(jnp.bfloat16)
    s1 = scale1.reshape(1, Cmid).astype(jnp.float32)
    b1 = shift1.reshape(1, Cmid).astype(jnp.float32)
    s2 = scale2.reshape(1, Cout).astype(jnp.float32)
    b2 = shift2.reshape(1, Cout).astype(jnp.float32)

    flops = 2 * N * HW * 9 * (Cin * Cmid + Cmid * Cout)
    bytes_accessed = (4 * xw.size + 2 * (w1.size + w2.size)
                      + 4 * (s1.size + b1.size + s2.size + b2.size)
                      + 4 * N * HW * Cout)

    # Per-step VMEM footprint (double-buffered in/out blocks + weights + scratch +
    # live f32 accumulators) -> scoped vmem limit derived from it, not hard-coded.
    bytes_in_blk = 4 * Ho * 2 * W * Cin
    bytes_out_blk = 4 * HW * Cout
    bytes_weights = 2 * 9 * (Cin * Cmid + Cmid * Cout) + 4 * 2 * (Cmid + Cout)
    bytes_pads = 2 * (Ho + 2) * Wp * (Cin + Cmid)
    bytes_live = 2 * 4 * HW * (Cmid + Cout)
    vmem_needed = (2 * bytes_in_blk + 2 * bytes_out_blk + bytes_weights
                   + bytes_pads + bytes_live)
    vmem_limit = int(min(100 * (1 << 20), max(16 * (1 << 20), 3 * vmem_needed // 2)))

    return pl.pallas_call(
        down_fused_kernel,
        out_shape=jax.ShapeDtypeStruct((N, Ho, Wo, Cout), jnp.float32),
        grid=(N,),
        in_specs=[
            pl.BlockSpec((1, Ho, 2, W, Cin), lambda n: (n, 0, 0, 0, 0)),
            pl.BlockSpec((9, Cin, Cmid), lambda n: (0, 0, 0)),
            pl.BlockSpec((1, Cmid), lambda n: (0, 0)),
            pl.BlockSpec((1, Cmid), lambda n: (0, 0)),
            pl.BlockSpec((9, Cmid, Cout), lambda n: (0, 0, 0)),
            pl.BlockSpec((1, Cout), lambda n: (0, 0)),
            pl.BlockSpec((1, Cout), lambda n: (0, 0)),
        ],
        out_specs=pl.BlockSpec((1, Ho, Wo, Cout), lambda n: (n, 0, 0, 0)),
        scratch_shapes=[
            pltpu.VMEM((Ho + 2, Wp, Cin), jnp.bfloat16),    # padded pooled input
            pltpu.VMEM((Ho + 2, Wp, Cmid), jnp.bfloat16),   # padded conv1 output
        ],
        compiler_params=pltpu.CompilerParams(
            dimension_semantics=("parallel",),
            vmem_limit_bytes=vmem_limit,
        ),
        cost_estimate=pl.CostEstimate(flops=int(flops), transcendentals=0,
                                      bytes_accessed=int(bytes_accessed)),
    )(xw, w1, s1, b1, w2, s2, b2)


@jax.jit
def down_forward(x_nchw, params):
    # NCHW -> NHWC (single layout pass; the row-pair split in down_fused is free)
    x = jnp.transpose(x_nchw, (0, 2, 3, 1)).astype(jnp.float32)
    y = down_fused(x,
                   params["w1"], params["scale1"], params["shift1"],
                   params["w2"], params["scale2"], params["shift2"])
    return jnp.transpose(y, (0, 3, 1, 2))  # NHWC -> NCHW


# ----------------------------- params & reference ----------------------------

def fold_bn(conv_bias, gamma, beta, running_mean, running_var, eps=1e-5):
    scale = gamma / jnp.sqrt(running_var + eps)
    shift = beta + scale * (conv_bias - running_mean)
    return scale.astype(jnp.float32), shift.astype(jnp.float32)


def init_down_params(key, in_ch, out_ch):
    k = jax.random.split(key, 8)
    params = {}
    # conv1: in_ch -> out_ch, conv2: out_ch -> out_ch, both 3x3; weights in HWIO
    params["w1"] = 0.1 * jax.random.normal(k[0], (3, 3, in_ch, out_ch), jnp.float32)
    b1 = 0.05 * jax.random.normal(k[1], (out_ch,), jnp.float32)
    g1 = 1.0 + 0.1 * jax.random.normal(k[2], (out_ch,), jnp.float32)
    be1 = 0.1 * jax.random.normal(k[3], (out_ch,), jnp.float32)
    params["scale1"], params["shift1"] = fold_bn(
        b1, g1, be1, jnp.zeros((out_ch,)), jnp.ones((out_ch,)))

    params["w2"] = 0.1 * jax.random.normal(k[4], (3, 3, out_ch, out_ch), jnp.float32)
    b2 = 0.05 * jax.random.normal(k[5], (out_ch,), jnp.float32)
    g2 = 1.0 + 0.1 * jax.random.normal(k[6], (out_ch,), jnp.float32)
    be2 = 0.1 * jax.random.normal(k[7], (out_ch,), jnp.float32)
    params["scale2"], params["shift2"] = fold_bn(
        b2, g2, be2, jnp.zeros((out_ch,)), jnp.ones((out_ch,)))
    return params


def down_reference(x_nchw, params):
    """Pure-XLA f32 reference: MaxPool2d(2) -> (conv3x3 + folded BN + ReLU) x2."""
    x = jnp.transpose(x_nchw, (0, 2, 3, 1)).astype(jnp.float32)
    x = lax.reduce_window(x, -jnp.inf, lax.max, (1, 2, 2, 1), (1, 2, 2, 1), 'VALID')
    y = lax.conv_general_dilated(x, params["w1"], (1, 1), 'SAME',
                                 dimension_numbers=('NHWC', 'HWIO', 'NHWC'),
                                 precision=lax.Precision.HIGHEST)
    y = jnp.maximum(y * params["scale1"] + params["shift1"], 0.0)
    y = lax.conv_general_dilated(y, params["w2"], (1, 1), 'SAME',
                                 dimension_numbers=('NHWC', 'HWIO', 'NHWC'),
                                 precision=lax.Precision.HIGHEST)
    y = jnp.maximum(y * params["scale2"] + params["shift2"], 0.0)
    return jnp.transpose(y, (0, 3, 1, 2))


# ----------------------------- main -------------------------------------------

if __name__ == "__main__":
    key = jax.random.PRNGKey(0)
    k_x, k_p = jax.random.split(key)

    N, in_ch, out_ch, S = 2, 4, 8, 16
    x = jax.random.normal(k_x, (N, in_ch, S, S), jnp.float32)   # NCHW, like PyTorch
    params = init_down_params(k_p, in_ch, out_ch)

    y = down_forward(x, params)
    jax.block_until_ready(y)

    assert y.shape == (N, out_ch, S // 2, S // 2), y.shape
    y_ref = down_reference(x, params)
    # Kernel uses bf16 MXU operands with f32 accumulation; reference is f32 HIGHEST.
    assert jnp.allclose(y, y_ref, rtol=3e-2, atol=3e-2), \
        float(jnp.max(jnp.abs(y - y_ref)))
    print("KERNEL_OK")
</pallas_src>

<mosaic_0001>
module attributes {stable_mosaic.version = 11 : i64} {
  func.func @down_fused_kernel(%arg0: i32, %arg1: memref<1x8x2x16x4xf32, #tpu.memory_space<vmem>>, %arg2: memref<9x4x8xbf16, #tpu.memory_space<vmem>>, %arg3: memref<1x8xf32, #tpu.memory_space<vmem>>, %arg4: memref<1x8xf32, #tpu.memory_space<vmem>>, %arg5: memref<9x8x8xbf16, #tpu.memory_space<vmem>>, %arg6: memref<1x8xf32, #tpu.memory_space<vmem>>, %arg7: memref<1x8xf32, #tpu.memory_space<vmem>>, %arg8: memref<1x8x8x8xf32, #tpu.memory_space<vmem>>, %arg9: memref<10x16x4xbf16, #tpu.memory_space<vmem>>, %arg10: memref<10x16x8xbf16, #tpu.memory_space<vmem>>) attributes {dimension_semantics = [#tpu.dimension_semantics<parallel>], iteration_bounds = array<i64: 2>, scalar_prefetch = 0 : i64, scratch_operands = 2 : i64, tpu.core_type = #tpu.core_type<tc>, window_params = [{transform_indices = @transform_0, window_bounds = array<i64: 1, 8, 2, 16, 4>}, {pipeline_mode = #tpu.pipeline_mode<synchronous>, transform_indices = @transform_1, window_bounds = array<i64: 9, 4, 8>}, {pipeline_mode = #tpu.pipeline_mode<synchronous>, transform_indices = @transform_2, window_bounds = array<i64: 1, 8>}, {pipeline_mode = #tpu.pipeline_mode<synchronous>, transform_indices = @transform_3, window_bounds = array<i64: 1, 8>}, {pipeline_mode = #tpu.pipeline_mode<synchronous>, transform_indices = @transform_4, window_bounds = array<i64: 9, 8, 8>}, {pipeline_mode = #tpu.pipeline_mode<synchronous>, transform_indices = @transform_5, window_bounds = array<i64: 1, 8>}, {pipeline_mode = #tpu.pipeline_mode<synchronous>, transform_indices = @transform_6, window_bounds = array<i64: 1, 8>}, {transform_indices = @transform_7, window_bounds = array<i64: 1, 8, 8, 8>}]} {
    %c0 = arith.constant 0 : index
    %c0_0 = arith.constant 0 : index
    %c0_1 = arith.constant 0 : index
    %c0_2 = arith.constant 0 : index
    %c0_3 = arith.constant 0 : index
    %0 = vector.load %arg1[%c0, %c0_0, %c0_1, %c0_2, %c0_3] : memref<1x8x2x16x4xf32, #tpu.memory_space<vmem>>, vector<1x8x1x16x4xf32>
    %1 = vector.shape_cast %0 : vector<1x8x1x16x4xf32> to vector<8x16x4xf32>
    %c0_4 = arith.constant 0 : index
    %c0_5 = arith.constant 0 : index
    %c1 = arith.constant 1 : index
    %c0_6 = arith.constant 0 : index
    %c0_7 = arith.constant 0 : index
    %2 = vector.load %arg1[%c0_4, %c0_5, %c1, %c0_6, %c0_7] : memref<1x8x2x16x4xf32, #tpu.memory_space<vmem>>, vector<1x8x1x16x4xf32>
    %3 = vector.shape_cast %2 : vector<1x8x1x16x4xf32> to vector<8x16x4xf32>
    %4 = arith.maximumf %1, %3 : vector<8x16x4xf32>
    %5 = vector.shape_cast %4 : vector<8x16x4xf32> to vector<8x8x2x4xf32>
    %6 = vector.extract_strided_slice %5 {offsets = [0, 0, 0, 0], sizes = [8, 8, 1, 4], strides = [1, 1, 1, 1]} : vector<8x8x2x4xf32> to vector<8x8x1x4xf32>
    %7 = vector.shape_cast %6 : vector<8x8x1x4xf32> to vector<8x8x4xf32>
    %8 = vector.extract_strided_slice %5 {offsets = [0, 0, 1, 0], sizes = [8, 8, 1, 4], strides = [1, 1, 1, 1]} : vector<8x8x2x4xf32> to vector<8x8x1x4xf32>
    %9 = vector.shape_cast %8 : vector<8x8x1x4xf32> to vector<8x8x4xf32>
    %10 = arith.maximumf %7, %9 : vector<8x8x4xf32>
    %cst = arith.constant 0.000000e+00 : bf16
    %11 = vector.broadcast %cst : bf16 to vector<16x4xbf16>
    %c0_8 = arith.constant 0 : index
    %c0_9 = arith.constant 0 : index
    %c0_10 = arith.constant 0 : index
    %12 = vector.load %arg9[%c0_8, %c0_9, %c0_10] : memref<10x16x4xbf16, #tpu.memory_space<vmem>>, vector<1x16x4xbf16>
    %13 = vector.shape_cast %12 : vector<1x16x4xbf16> to vector<16x4xbf16>
    %14 = vector.shape_cast %11 : vector<16x4xbf16> to vector<1x16x4xbf16>
    tpu.vector_store %arg9[%c0_8, %c0_9, %c0_10], %14 {strides = array<i32>} : memref<10x16x4xbf16, #tpu.memory_space<vmem>>, vector<1x16x4xbf16>,
    %cst_11 = arith.constant 0.000000e+00 : bf16
    %15 = vector.broadcast %cst_11 : bf16 to vector<16x4xbf16>
    %c9 = arith.constant 9 : index
    %c0_12 = arith.constant 0 : index
    %c0_13 = arith.constant 0 : index
    %16 = vector.load %arg9[%c9, %c0_12, %c0_13] : memref<10x16x4xbf16, #tpu.memory_space<vmem>>, vector<1x16x4xbf16>
    %17 = vector.shape_cast %16 : vector<1x16x4xbf16> to vector<16x4xbf16>
    %18 = vector.shape_cast %15 : vector<16x4xbf16> to vector<1x16x4xbf16>
    tpu.vector_store %arg9[%c9, %c0_12, %c0_13], %18 {strides = array<i32>} : memref<10x16x4xbf16, #tpu.memory_space<vmem>>, vector<1x16x4xbf16>,
    %cst_14 = arith.constant 0.000000e+00 : bf16
    %19 = vector.broadcast %cst_14 : bf16 to vector<10x1x4xbf16>
    %c0_15 = arith.constant 0 : index
    %c0_16 = arith.constant 0 : index
    %c0_17 = arith.constant 0 : index
    %20 = vector.load %arg9[%c0_15, %c0_16, %c0_17] : memref<10x16x4xbf16, #tpu.memory_space<vmem>>, vector<10x1x4xbf16>
    tpu.vector_store %arg9[%c0_15, %c0_16, %c0_17], %19 {strides = array<i32>} : memref<10x16x4xbf16, #tpu.memory_space<vmem>>, vector<10x1x4xbf16>,
    %cst_18 = arith.constant 0.000000e+00 : bf16
    %21 = vector.broadcast %cst_18 : bf16 to vector<10x1x4xbf16>
    %c0_19 = arith.constant 0 : index
    %c9_20 = arith.constant 9 : index
    %c0_21 = arith.constant 0 : index
    %22 = vector.load %arg9[%c0_19, %c9_20, %c0_21] : memref<10x16x4xbf16, #tpu.memory_space<vmem>>, vector<10x1x4xbf16>
    tpu.vector_store %arg9[%c0_19, %c9_20, %c0_21], %21 {strides = array<i32>} : memref<10x16x4xbf16, #tpu.memory_space<vmem>>, vector<10x1x4xbf16>,
    %23 = arith.truncf %10 : vector<8x8x4xf32> to vector<8x8x4xbf16>
    %c1_22 = arith.constant 1 : index
    %c1_23 = arith.constant 1 : index
    %c0_24 = arith.constant 0 : index
    %24 = vector.load %arg9[%c1_22, %c1_23, %c0_24] : memref<10x16x4xbf16, #tpu.memory_space<vmem>>, vector<8x8x4xbf16>
    tpu.vector_store %arg9[%c1_22, %c1_23, %c0_24], %23 {strides = array<i32>} : memref<10x16x4xbf16, #tpu.memory_space<vmem>>, vector<8x8x4xbf16>,
    %cst_25 = arith.constant 0.000000e+00 : f32
    %25 = vector.broadcast %cst_25 : f32 to vector<64x8xf32>
    %c0_26 = arith.constant 0 : index
    %c0_27 = arith.constant 0 : index
    %c0_28 = arith.constant 0 : index
    %26 = vector.load %arg9[%c0_26, %c0_27, %c0_28] : memref<10x16x4xbf16, #tpu.memory_space<vmem>>, vector<8x8x4xbf16>
    %27 = vector.shape_cast %26 : vector<8x8x4xbf16> to vector<64x4xbf16>
    %c0_29 = arith.constant 0 : index
    %c0_30 = arith.constant 0 : index
    %c0_31 = arith.constant 0 : index
    %28 = vector.load %arg2[%c0_29, %c0_30, %c0_31] : memref<9x4x8xbf16, #tpu.memory_space<vmem>>, vector<1x4x8xbf16>
    %29 = vector.shape_cast %28 : vector<1x4x8xbf16> to vector<4x8xbf16>
    %cst_32 = arith.constant dense<0.000000e+00> : vector<64x8xf32>
    %30 = tpu.matmul %27, %29, %cst_32 {dimension_numbers = #tpu.dot_dimension_numbers<[1], [0], [0], [1], [0, 0, 1, 1], [], []>} : vector<64x4xbf16>, vector<4x8xbf16>, vector<64x8xf32> -> vector<64x8xf32>
    %31 = arith.addf %25, %30 : vector<64x8xf32>
    %c0_33 = arith.constant 0 : index
    %c1_34 = arith.constant 1 : index
    %c0_35 = arith.constant 0 : index
    %32 = vector.load %arg9[%c0_33, %c1_34, %c0_35] : memref<10x16x4xbf16, #tpu.memory_space<vmem>>, vector<8x8x4xbf16>
    %33 = vector.shape_cast %32 : vector<8x8x4xbf16> to vector<64x4xbf16>
    %c1_36 = arith.constant 1 : index
    %c0_37 = arith.constant 0 : index
    %c0_38 = arith.constant 0 : index
    %34 = vector.load %arg2[%c1_36, %c0_37, %c0_38] : memref<9x4x8xbf16, #tpu.memory_space<vmem>>, vector<1x4x8xbf16>
    %35 = vector.shape_cast %34 : vector<1x4x8xbf16> to vector<4x8xbf16>
    %cst_39 = arith.constant dense<0.000000e+00> : vector<64x8xf32>
    %36 = tpu.matmul %33, %35, %cst_39 {dimension_numbers = #tpu.dot_dimension_numbers<[1], [0], [0], [1], [0, 0, 1, 1], [], []>} : vector<64x4xbf16>, vector<4x8xbf16>, vector<64x8xf32> -> vector<64x8xf32>
    %37 = arith.addf %31, %36 : vector<64x8xf32>
    %c0_40 = arith.constant 0 : index
    %c2 = arith.constant 2 : index
    %c0_41 = arith.constant 0 : index
    %38 = vector.load %arg9[%c0_40, %c2, %c0_41] : memref<10x16x4xbf16, #tpu.memory_space<vmem>>, vector<8x8x4xbf16>
    %39 = vector.shape_cast %38 : vector<8x8x4xbf16> to vector<64x4xbf16>
    %c2_42 = arith.constant 2 : index
    %c0_43 = arith.constant 0 : index
    %c0_44 = arith.constant 0 : index
    %40 = vector.load %arg2[%c2_42, %c0_43, %c0_44] : memref<9x4x8xbf16, #tpu.memory_space<vmem>>, vector<1x4x8xbf16>
    %41 = vector.shape_cast %40 : vector<1x4x8xbf16> to vector<4x8xbf16>
    %cst_45 = arith.constant dense<0.000000e+00> : vector<64x8xf32>
    %42 = tpu.matmul %39, %41, %cst_45 {dimension_numbers = #tpu.dot_dimension_numbers<[1], [0], [0], [1], [0, 0, 1, 1], [], []>} : vector<64x4xbf16>, vector<4x8xbf16>, vector<64x8xf32> -> vector<64x8xf32>
    %43 = arith.addf %37, %42 : vector<64x8xf32>
    %c1_46 = arith.constant 1 : index
    %c0_47 = arith.constant 0 : index
    %c0_48 = arith.constant 0 : index
    %44 = vector.load %arg9[%c1_46, %c0_47, %c0_48] : memref<10x16x4xbf16, #tpu.memory_space<vmem>>, vector<8x8x4xbf16>
    %45 = vector.shape_cast %44 : vector<8x8x4xbf16> to vector<64x4xbf16>
    %c3 = arith.constant 3 : index
    %c0_49 = arith.constant 0 : index
    %c0_50 = arith.constant 0 : index
    %46 = vector.load %arg2[%c3, %c0_49, %c0_50] : memref<9x4x8xbf16, #tpu.memory_space<vmem>>, vector<1x4x8xbf16>
    %47 = vector.shape_cast %46 : vector<1x4x8xbf16> to vector<4x8xbf16>
    %cst_51 = arith.constant dense<0.000000e+00> : vector<64x8xf32>
    %48 = tpu.matmul %45, %47, %cst_51 {dimension_numbers = #tpu.dot_dimension_numbers<[1], [0], [0], [1], [0, 0, 1, 1], [], []>} : vector<64x4xbf16>, vector<4x8xbf16>, vector<64x8xf32> -> vector<64x8xf32>
    %49 = arith.addf %43, %48 : vector<64x8xf32>
    %c1_52 = arith.constant 1 : index
    %c1_53 = arith.constant 1 : index
    %c0_54 = arith.constant 0 : index
    %50 = vector.load %arg9[%c1_52, %c1_53, %c0_54] : memref<10x16x4xbf16, #tpu.memory_space<vmem>>, vector<8x8x4xbf16>
    %51 = vector.shape_cast %50 : vector<8x8x4xbf16> to vector<64x4xbf16>
    %c4 = arith.constant 4 : index
    %c0_55 = arith.constant 0 : index
    %c0_56 = arith.constant 0 : index
    %52 = vector.load %arg2[%c4, %c0_55, %c0_56] : memref<9x4x8xbf16, #tpu.memory_space<vmem>>, vector<1x4x8xbf16>
    %53 = vector.shape_cast %52 : vector<1x4x8xbf16> to vector<4x8xbf16>
    %cst_57 = arith.constant dense<0.000000e+00> : vector<64x8xf32>
    %54 = tpu.matmul %51, %53, %cst_57 {dimension_numbers = #tpu.dot_dimension_numbers<[1], [0], [0], [1], [0, 0, 1, 1], [], []>} : vector<64x4xbf16>, vector<4x8xbf16>, vector<64x8xf32> -> vector<64x8xf32>
    %55 = arith.addf %49, %54 : vector<64x8xf32>
    %c1_58 = arith.constant 1 : index
    %c2_59 = arith.constant 2 : index
    %c0_60 = arith.constant 0 : index
    %56 = vector.load %arg9[%c1_58, %c2_59, %c0_60] : memref<10x16x4xbf16, #tpu.memory_space<vmem>>, vector<8x8x4xbf16>
    %57 = vector.shape_cast %56 : vector<8x8x4xbf16> to vector<64x4xbf16>
    %c5 = arith.constant 5 : index
    %c0_61 = arith.constant 0 : index
    %c0_62 = arith.constant 0 : index
    %58 = vector.load %arg2[%c5, %c0_61, %c0_62] : memref<9x4x8xbf16, #tpu.memory_space<vmem>>, vector<1x4x8xbf16>
    %59 = vector.shape_cast %58 : vector<1x4x8xbf16> to vector<4x8xbf16>
    %cst_63 = arith.constant dense<0.000000e+00> : vector<64x8xf32>
    %60 = tpu.matmul %57, %59, %cst_63 {dimension_numbers = #tpu.dot_dimension_numbers<[1], [0], [0], [1], [0, 0, 1, 1], [], []>} : vector<64x4xbf16>, vector<4x8xbf16>, vector<64x8xf32> -> vector<64x8xf32>
    %61 = arith.addf %55, %60 : vector<64x8xf32>
    %c2_64 = arith.constant 2 : index
    %c0_65 = arith.constant 0 : index
    %c0_66 = arith.constant 0 : index
    %62 = vector.load %arg9[%c2_64, %c0_65, %c0_66] : memref<10x16x4xbf16, #tpu.memory_space<vmem>>, vector<8x8x4xbf16>
    %63 = vector.shape_cast %62 : vector<8x8x4xbf16> to vector<64x4xbf16>
    %c6 = arith.constant 6 : index
    %c0_67 = arith.constant 0 : index
    %c0_68 = arith.constant 0 : index
    %64 = vector.load %arg2[%c6, %c0_67, %c0_68] : memref<9x4x8xbf16, #tpu.memory_space<vmem>>, vector<1x4x8xbf16>
    %65 = vector.shape_cast %64 : vector<1x4x8xbf16> to vector<4x8xbf16>
    %cst_69 = arith.constant dense<0.000000e+00> : vector<64x8xf32>
    %66 = tpu.matmul %63, %65, %cst_69 {dimension_numbers = #tpu.dot_dimension_numbers<[1], [0], [0], [1], [0, 0, 1, 1], [], []>} : vector<64x4xbf16>, vector<4x8xbf16>, vector<64x8xf32> -> vector<64x8xf32>
    %67 = arith.addf %61, %66 : vector<64x8xf32>
    %c2_70 = arith.constant 2 : index
    %c1_71 = arith.constant 1 : index
    %c0_72 = arith.constant 0 : index
    %68 = vector.load %arg9[%c2_70, %c1_71, %c0_72] : memref<10x16x4xbf16, #tpu.memory_space<vmem>>, vector<8x8x4xbf16>
    %69 = vector.shape_cast %68 : vector<8x8x4xbf16> to vector<64x4xbf16>
    %c7 = arith.constant 7 : index
    %c0_73 = arith.constant 0 : index
    %c0_74 = arith.constant 0 : index
    %70 = vector.load %arg2[%c7, %c0_73, %c0_74] : memref<9x4x8xbf16, #tpu.memory_space<vmem>>, vector<1x4x8xbf16>
    %71 = vector.shape_cast %70 : vector<1x4x8xbf16> to vector<4x8xbf16>
    %cst_75 = arith.constant dense<0.000000e+00> : vector<64x8xf32>
    %72 = tpu.matmul %69, %71, %cst_75 {dimension_numbers = #tpu.dot_dimension_numbers<[1], [0], [0], [1], [0, 0, 1, 1], [], []>} : vector<64x4xbf16>, vector<4x8xbf16>, vector<64x8xf32> -> vector<64x8xf32>
    %73 = arith.addf %67, %72 : vector<64x8xf32>
    %c2_76 = arith.constant 2 : index
    %c2_77 = arith.constant 2 : index
    %c0_78 = arith.constant 0 : index
    %74 = vector.load %arg9[%c2_76, %c2_77, %c0_78] : memref<10x16x4xbf16, #tpu.memory_space<vmem>>, vector<8x8x4xbf16>
    %75 = vector.shape_cast %74 : vector<8x8x4xbf16> to vector<64x4xbf16>
    %c8 = arith.constant 8 : index
    %c0_79 = arith.constant 0 : index
    %c0_80 = arith.constant 0 : index
    %76 = vector.load %arg2[%c8, %c0_79, %c0_80] : memref<9x4x8xbf16, #tpu.memory_space<vmem>>, vector<1x4x8xbf16>
    %77 = vector.shape_cast %76 : vector<1x4x8xbf16> to vector<4x8xbf16>
    %cst_81 = arith.constant dense<0.000000e+00> : vector<64x8xf32>
    %78 = tpu.matmul %75, %77, %cst_81 {dimension_numbers = #tpu.dot_dimension_numbers<[1], [0], [0], [1], [0, 0, 1, 1], [], []>} : vector<64x4xbf16>, vector<4x8xbf16>, vector<64x8xf32> -> vector<64x8xf32>
    %79 = arith.addf %73, %78 : vector<64x8xf32>
    %c0_82 = arith.constant 0 : index
    %c0_83 = arith.constant 0 : index
    %80 = vector.load %arg3[%c0_82, %c0_83] : memref<1x8xf32, #tpu.memory_space<vmem>>, vector<1x8xf32>
    %81 = vector.shape_cast %80 : vector<1x8xf32> to vector<8xf32>
    %82 = vector.shape_cast %81 : vector<8xf32> to vector<1x8xf32>
    %83 = vector.broadcast %82 : vector<1x8xf32> to vector<64x8xf32>
    %84 = arith.mulf %79, %83 : vector<64x8xf32>
    %c0_84 = arith.constant 0 : index
    %c0_85 = arith.constant 0 : index
    %85 = vector.load %arg4[%c0_84, %c0_85] : memref<1x8xf32, #tpu.memory_space<vmem>>, vector<1x8xf32>
    %86 = vector.shape_cast %85 : vector<1x8xf32> to vector<8xf32>
    %87 = vector.shape_cast %86 : vector<8xf32> to vector<1x8xf32>
    %88 = vector.broadcast %87 : vector<1x8xf32> to vector<64x8xf32>
    %89 = arith.addf %84, %88 : vector<64x8xf32>
    %cst_86 = arith.constant 0.000000e+00 : f32
    %90 = vector.broadcast %cst_86 : f32 to vector<64x8xf32>
    %91 = arith.maximumf %89, %90 : vector<64x8xf32>
    %cst_87 = arith.constant 0.000000e+00 : bf16
    %92 = vector.broadcast %cst_87 : bf16 to vector<16x8xbf16>
    %c0_88 = arith.constant 0 : index
    %c0_89 = arith.constant 0 : index
    %c0_90 = arith.constant 0 : index
    %93 = vector.load %arg10[%c0_88, %c0_89, %c0_90] : memref<10x16x8xbf16, #tpu.memory_space<vmem>>, vector<1x16x8xbf16>
    %94 = vector.shape_cast %93 : vector<1x16x8xbf16> to vector<16x8xbf16>
    %95 = vector.shape_cast %92 : vector<16x8xbf16> to vector<1x16x8xbf16>
    tpu.vector_store %arg10[%c0_88, %c0_89, %c0_90], %95 {strides = array<i32>} : memref<10x16x8xbf16, #tpu.memory_space<vmem>>, vector<1x16x8xbf16>,
    %cst_91 = arith.constant 0.000000e+00 : bf16
    %96 = vector.broadcast %cst_91 : bf16 to vector<16x8xbf16>
    %c9_92 = arith.constant 9 : index
    %c0_93 = arith.constant 0 : index
    %c0_94 = arith.constant 0 : index
    %97 = vector.load %arg10[%c9_92, %c0_93, %c0_94] : memref<10x16x8xbf16, #tpu.memory_space<vmem>>, vector<1x16x8xbf16>
    %98 = vector.shape_cast %97 : vector<1x16x8xbf16> to vector<16x8xbf16>
    %99 = vector.shape_cast %96 : vector<16x8xbf16> to vector<1x16x8xbf16>
    tpu.vector_store %arg10[%c9_92, %c0_93, %c0_94], %99 {strides = array<i32>} : memref<10x16x8xbf16, #tpu.memory_space<vmem>>, vector<1x16x8xbf16>,
    %cst_95 = arith.constant 0.000000e+00 : bf16
    %100 = vector.broadcast %cst_95 : bf16 to vector<10x1x8xbf16>
    %c0_96 = arith.constant 0 : index
    %c0_97 = arith.constant 0 : index
    %c0_98 = arith.constant 0 : index
    %101 = vector.load %arg10[%c0_96, %c0_97, %c0_98] : memref<10x16x8xbf16, #tpu.memory_space<vmem>>, vector<10x1x8xbf16>
    tpu.vector_store %arg10[%c0_96, %c0_97, %c0_98], %100 {strides = array<i32>} : memref<10x16x8xbf16, #tpu.memory_space<vmem>>, vector<10x1x8xbf16>,
    %cst_99 = arith.constant 0.000000e+00 : bf16
    %102 = vector.broadcast %cst_99 : bf16 to vector<10x1x8xbf16>
    %c0_100 = arith.constant 0 : index
    %c9_101 = arith.constant 9 : index
    %c0_102 = arith.constant 0 : index
    %103 = vector.load %arg10[%c0_100, %c9_101, %c0_102] : memref<10x16x8xbf16, #tpu.memory_space<vmem>>, vector<10x1x8xbf16>
    tpu.vector_store %arg10[%c0_100, %c9_101, %c0_102], %102 {strides = array<i32>} : memref<10x16x8xbf16, #tpu.memory_space<vmem>>, vector<10x1x8xbf16>,
    %104 = vector.shape_cast %91 : vector<64x8xf32> to vector<8x8x8xf32>
    %105 = arith.truncf %104 : vector<8x8x8xf32> to vector<8x8x8xbf16>
    %c1_103 = arith.constant 1 : index
    %c1_104 = arith.constant 1 : index
    %c0_105 = arith.constant 0 : index
    %106 = vector.load %arg10[%c1_103, %c1_104, %c0_105] : memref<10x16x8xbf16, #tpu.memory_space<vmem>>, vector<8x8x8xbf16>
    tpu.vector_store %arg10[%c1_103, %c1_104, %c0_105], %105 {strides = array<i32>} : memref<10x16x8xbf16, #tpu.memory_space<vmem>>, vector<8x8x8xbf16>,
    %cst_106 = arith.constant 0.000000e+00 : f32
    %107 = vector.broadcast %cst_106 : f32 to vector<64x8xf32>
    %c0_107 = arith.constant 0 : index
    %c0_108 = arith.constant 0 : index
    %c0_109 = arith.constant 0 : index
    %108 = vector.load %arg10[%c0_107, %c0_108, %c0_109] : memref<10x16x8xbf16, #tpu.memory_space<vmem>>, vector<8x8x8xbf16>
    %109 = vector.shape_cast %108 : vector<8x8x8xbf16> to vector<64x8xbf16>
    %c0_110 = arith.constant 0 : index
    %c0_111 = arith.constant 0 : index
    %c0_112 = arith.constant 0 : index
    %110 = vector.load %arg5[%c0_110, %c0_111, %c0_112] : memref<9x8x8xbf16, #tpu.memory_space<vmem>>, vector<1x8x8xbf16>
    %111 = vector.shape_cast %110 : vector<1x8x8xbf16> to vector<8x8xbf16>
    %cst_113 = arith.constant dense<0.000000e+00> : vector<64x8xf32>
    %112 = tpu.matmul %109, %111, %cst_113 {dimension_numbers = #tpu.dot_dimension_numbers<[1], [0], [0], [1], [0, 0, 1, 1], [], []>} : vector<64x8xbf16>, vector<8x8xbf16>, vector<64x8xf32> -> vector<64x8xf32>
    %113 = arith.addf %107, %112 : vector<64x8xf32>
    %c0_114 = arith.constant 0 : index
    %c1_115 = arith.constant 1 : index
    %c0_116 = arith.constant 0 : index
    %114 = vector.load %arg10[%c0_114, %c1_115, %c0_116] : memref<10x16x8xbf16, #tpu.memory_space<vmem>>, vector<8x8x8xbf16>
    %115 = vector.shape_cast %114 : vector<8x8x8xbf16> to vector<64x8xbf16>
    %c1_117 = arith.constant 1 : index
    %c0_118 = arith.constant 0 : index
    %c0_119 = arith.constant 0 : index
    %116 = vector.load %arg5[%c1_117, %c0_118, %c0_119] : memref<9x8x8xbf16, #tpu.memory_space<vmem>>, vector<1x8x8xbf16>
    %117 = vector.shape_cast %116 : vector<1x8x8xbf16> to vector<8x8xbf16>
    %cst_120 = arith.constant dense<0.000000e+00> : vector<64x8xf32>
    %118 = tpu.matmul %115, %117, %cst_120 {dimension_numbers = #tpu.dot_dimension_numbers<[1], [0], [0], [1], [0, 0, 1, 1], [], []>} : vector<64x8xbf16>, vector<8x8xbf16>, vector<64x8xf32> -> vector<64x8xf32>
    %119 = arith.addf %113, %118 : vector<64x8xf32>
    %c0_121 = arith.constant 0 : index
    %c2_122 = arith.constant 2 : index
    %c0_123 = arith.constant 0 : index
    %120 = vector.load %arg10[%c0_121, %c2_122, %c0_123] : memref<10x16x8xbf16, #tpu.memory_space<vmem>>, vector<8x8x8xbf16>
    %121 = vector.shape_cast %120 : vector<8x8x8xbf16> to vector<64x8xbf16>
    %c2_124 = arith.constant 2 : index
    %c0_125 = arith.constant 0 : index
    %c0_126 = arith.constant 0 : index
    %122 = vector.load %arg5[%c2_124, %c0_125, %c0_126] : memref<9x8x8xbf16, #tpu.memory_space<vmem>>, vector<1x8x8xbf16>
    %123 = vector.shape_cast %122 : vector<1x8x8xbf16> to vector<8x8xbf16>
    %cst_127 = arith.constant dense<0.000000e+00> : vector<64x8xf32>
    %124 = tpu.matmul %121, %123, %cst_127 {dimension_numbers = #tpu.dot_dimension_numbers<[1], [0], [0], [1], [0, 0, 1, 1], [], []>} : vector<64x8xbf16>, vector<8x8xbf16>, vector<64x8xf32> -> vector<64x8xf32>
    %125 = arith.addf %119, %124 : vector<64x8xf32>
    %c1_128 = arith.constant 1 : index
    %c0_129 = arith.constant 0 : index
    %c0_130 = arith.constant 0 : index
    %126 = vector.load %arg10[%c1_128, %c0_129, %c0_130] : memref<10x16x8xbf16, #tpu.memory_space<vmem>>, vector<8x8x8xbf16>
    %127 = vector.shape_cast %126 : vector<8x8x8xbf16> to vector<64x8xbf16>
    %c3_131 = arith.constant 3 : index
    %c0_132 = arith.constant 0 : index
    %c0_133 = arith.constant 0 : index
    %128 = vector.load %arg5[%c3_131, %c0_132, %c0_133] : memref<9x8x8xbf16, #tpu.memory_space<vmem>>, vector<1x8x8xbf16>
    %129 = vector.shape_cast %128 : vector<1x8x8xbf16> to vector<8x8xbf16>
    %cst_134 = arith.constant dense<0.000000e+00> : vector<64x8xf32>
    %130 = tpu.matmul %127, %129, %cst_134 {dimension_numbers = #tpu.dot_dimension_numbers<[1], [0], [0], [1], [0, 0, 1, 1], [], []>} : vector<64x8xbf16>, vector<8x8xbf16>, vector<64x8xf32> -> vector<64x8xf32>
    %131 = arith.addf %125, %130 : vector<64x8xf32>
    %c1_135 = arith.constant 1 : index
    %c1_136 = arith.constant 1 : index
    %c0_137 = arith.constant 0 : index
    %132 = vector.load %arg10[%c1_135, %c1_136, %c0_137] : memref<10x16x8xbf16, #tpu.memory_space<vmem>>, vector<8x8x8xbf16>
    %133 = vector.shape_cast %132 : vector<8x8x8xbf16> to vector<64x8xbf16>
    %c4_138 = arith.constant 4 : index
    %c0_139 = arith.constant 0 : index
    %c0_140 = arith.constant 0 : index
    %134 = vector.load %arg5[%c4_138, %c0_139, %c0_140] : memref<9x8x8xbf16, #tpu.memory_space<vmem>>, vector<1x8x8xbf16>
    %135 = vector.shape_cast %134 : vector<1x8x8xbf16> to vector<8x8xbf16>
    %cst_141 = arith.constant dense<0.000000e+00> : vector<64x8xf32>
    %136 = tpu.matmul %133, %135, %cst_141 {dimension_numbers = #tpu.dot_dimension_numbers<[1], [0], [0], [1], [0, 0, 1, 1], [], []>} : vector<64x8xbf16>, vector<8x8xbf16>, vector<64x8xf32> -> vector<64x8xf32>
    %137 = arith.addf %131, %136 : vector<64x8xf32>
    %c1_142 = arith.constant 1 : index
    %c2_143 = arith.constant 2 : index
    %c0_144 = arith.constant 0 : index
    %138 = vector.load %arg10[%c1_142, %c2_143, %c0_144] : memref<10x16x8xbf16, #tpu.memory_space<vmem>>, vector<8x8x8xbf16>
    %139 = vector.shape_cast %138 : vector<8x8x8xbf16> to vector<64x8xbf16>
    %c5_145 = arith.constant 5 : index
    %c0_146 = arith.constant 0 : index
    %c0_147 = arith.constant 0 : index
    %140 = vector.load %arg5[%c5_145, %c0_146, %c0_147] : memref<9x8x8xbf16, #tpu.memory_space<vmem>>, vector<1x8x8xbf16>
    %141 = vector.shape_cast %140 : vector<1x8x8xbf16> to vector<8x8xbf16>
    %cst_148 = arith.constant dense<0.000000e+00> : vector<64x8xf32>
    %142 = tpu.matmul %139, %141, %cst_148 {dimension_numbers = #tpu.dot_dimension_numbers<[1], [0], [0], [1], [0, 0, 1, 1], [], []>} : vector<64x8xbf16>, vector<8x8xbf16>, vector<64x8xf32> -> vector<64x8xf32>
    %143 = arith.addf %137, %142 : vector<64x8xf32>
    %c2_149 = arith.constant 2 : index
    %c0_150 = arith.constant 0 : index
    %c0_151 = arith.constant 0 : index
    %144 = vector.load %arg10[%c2_149, %c0_150, %c0_151] : memref<10x16x8xbf16, #tpu.memory_space<vmem>>, vector<8x8x8xbf16>
    %145 = vector.shape_cast %144 : vector<8x8x8xbf16> to vector<64x8xbf16>
    %c6_152 = arith.constant 6 : index
    %c0_153 = arith.constant 0 : index
    %c0_154 = arith.constant 0 : index
    %146 = vector.load %arg5[%c6_152, %c0_153, %c0_154] : memref<9x8x8xbf16, #tpu.memory_space<vmem>>, vector<1x8x8xbf16>
    %147 = vector.shape_cast %146 : vector<1x8x8xbf16> to vector<8x8xbf16>
    %cst_155 = arith.constant dense<0.000000e+00> : vector<64x8xf32>
    %148 = tpu.matmul %145, %147, %cst_155 {dimension_numbers = #tpu.dot_dimension_numbers<[1], [0], [0], [1], [0, 0, 1, 1], [], []>} : vector<64x8xbf16>, vector<8x8xbf16>, vector<64x8xf32> -> vector<64x8xf32>
    %149 = arith.addf %143, %148 : vector<64x8xf32>
    %c2_156 = arith.constant 2 : index
    %c1_157 = arith.constant 1 : index
    %c0_158 = arith.constant 0 : index
    %150 = vector.load %arg10[%c2_156, %c1_157, %c0_158] : memref<10x16x8xbf16, #tpu.memory_space<vmem>>, vector<8x8x8xbf16>
    %151 = vector.shape_cast %150 : vector<8x8x8xbf16> to vector<64x8xbf16>
    %c7_159 = arith.constant 7 : index
    %c0_160 = arith.constant 0 : index
    %c0_161 = arith.constant 0 : index
    %152 = vector.load %arg5[%c7_159, %c0_160, %c0_161] : memref<9x8x8xbf16, #tpu.memory_space<vmem>>, vector<1x8x8xbf16>
    %153 = vector.shape_cast %152 : vector<1x8x8xbf16> to vector<8x8xbf16>
    %cst_162 = arith.constant dense<0.000000e+00> : vector<64x8xf32>
    %154 = tpu.matmul %151, %153, %cst_162 {dimension_numbers = #tpu.dot_dimension_numbers<[1], [0], [0], [1], [0, 0, 1, 1], [], []>} : vector<64x8xbf16>, vector<8x8xbf16>, vector<64x8xf32> -> vector<64x8xf32>
    %155 = arith.addf %149, %154 : vector<64x8xf32>
    %c2_163 = arith.constant 2 : index
    %c2_164 = arith.constant 2 : index
    %c0_165 = arith.constant 0 : index
    %156 = vector.load %arg10[%c2_163, %c2_164, %c0_165] : memref<10x16x8xbf16, #tpu.memory_space<vmem>>, vector<8x8x8xbf16>
    %157 = vector.shape_cast %156 : vector<8x8x8xbf16> to vector<64x8xbf16>
    %c8_166 = arith.constant 8 : index
    %c0_167 = arith.constant 0 : index
    %c0_168 = arith.constant 0 : index
    %158 = vector.load %arg5[%c8_166, %c0_167, %c0_168] : memref<9x8x8xbf16, #tpu.memory_space<vmem>>, vector<1x8x8xbf16>
    %159 = vector.shape_cast %158 : vector<1x8x8xbf16> to vector<8x8xbf16>
    %cst_169 = arith.constant dense<0.000000e+00> : vector<64x8xf32>
    %160 = tpu.matmul %157, %159, %cst_169 {dimension_numbers = #tpu.dot_dimension_numbers<[1], [0], [0], [1], [0, 0, 1, 1], [], []>} : vector<64x8xbf16>, vector<8x8xbf16>, vector<64x8xf32> -> vector<64x8xf32>
    %161 = arith.addf %155, %160 : vector<64x8xf32>
    %c0_170 = arith.constant 0 : index
    %c0_171 = arith.constant 0 : index
    %162 = vector.load %arg6[%c0_170, %c0_171] : memref<1x8xf32, #tpu.memory_space<vmem>>, vector<1x8xf32>
    %163 = vector.shape_cast %162 : vector<1x8xf32> to vector<8xf32>
    %164 = vector.shape_cast %163 : vector<8xf32> to vector<1x8xf32>
    %165 = vector.broadcast %164 : vector<1x8xf32> to vector<64x8xf32>
    %166 = arith.mulf %161, %165 : vector<64x8xf32>
    %c0_172 = arith.constant 0 : index
    %c0_173 = arith.constant 0 : index
    %167 = vector.load %arg7[%c0_172, %c0_173] : memref<1x8xf32, #tpu.memory_space<vmem>>, vector<1x8xf32>
    %168 = vector.shape_cast %167 : vector<1x8xf32> to vector<8xf32>
    %169 = vector.shape_cast %168 : vector<8xf32> to vector<1x8xf32>
    %170 = vector.broadcast %169 : vector<1x8xf32> to vector<64x8xf32>
    %171 = arith.addf %166, %170 : vector<64x8xf32>
    %cst_174 = arith.constant 0.000000e+00 : f32
    %172 = vector.broadcast %cst_174 : f32 to vector<64x8xf32>
    %173 = arith.maximumf %171, %172 : vector<64x8xf32>
    %174 = vector.shape_cast %173 : vector<64x8xf32> to vector<8x8x8xf32>
    %c0_175 = arith.constant 0 : index
    %c0_176 = arith.constant 0 : index
    %c0_177 = arith.constant 0 : index
    %c0_178 = arith.constant 0 : index
    %175 = vector.load %arg8[%c0_175, %c0_176, %c0_177, %c0_178] : memref<1x8x8x8xf32, #tpu.memory_space<vmem>>, vector<1x8x8x8xf32>
    %176 = vector.shape_cast %175 : vector<1x8x8x8xf32> to vector<8x8x8xf32>
    %177 = vector.shape_cast %174 : vector<8x8x8xf32> to vector<1x8x8x8xf32>
    tpu.vector_store %arg8[%c0_175, %c0_176, %c0_177, %c0_178], %177 {strides = array<i32>} : memref<1x8x8x8xf32, #tpu.memory_space<vmem>>, vector<1x8x8x8xf32>,
    return
  }
  func.func @transform_0(%arg0: i32) -> (i32, i32, i32, i32, i32) {
    %c0_i32 = arith.constant 0 : i32
    %c0_i32_0 = arith.constant 0 : i32
    %c0_i32_1 = arith.constant 0 : i32
    %c0_i32_2 = arith.constant 0 : i32
    %c0_i32_3 = arith.constant 0 : i32
    return %arg0, %c0_i32, %c0_i32_0, %c0_i32_1, %c0_i32_2 : i32, i32, i32, i32, i32
  }
  func.func @transform_1(%arg0: i32) -> (i32, i32, i32) {
    %c0_i32 = arith.constant 0 : i32
    %c0_i32_0 = arith.constant 0 : i32
    %c0_i32_1 = arith.constant 0 : i32
    %c0_i32_2 = arith.constant 0 : i32
    return %c0_i32, %c0_i32_0, %c0_i32_1 : i32, i32, i32
  }
  func.func @transform_2(%arg0: i32) -> (i32, i32) {
    %c0_i32 = arith.constant 0 : i32
    %c0_i32_0 = arith.constant 0 : i32
    %c0_i32_1 = arith.constant 0 : i32
    return %c0_i32, %c0_i32_0 : i32, i32
  }
  func.func @transform_3(%arg0: i32) -> (i32, i32) {
    %c0_i32 = arith.constant 0 : i32
    %c0_i32_0 = arith.constant 0 : i32
    %c0_i32_1 = arith.constant 0 : i32
    return %c0_i32, %c0_i32_0 : i32, i32
  }
  func.func @transform_4(%arg0: i32) -> (i32, i32, i32) {
    %c0_i32 = arith.constant 0 : i32
    %c0_i32_0 = arith.constant 0 : i32
    %c0_i32_1 = arith.constant 0 : i32
    %c0_i32_2 = arith.constant 0 : i32
    return %c0_i32, %c0_i32_0, %c0_i32_1 : i32, i32, i32
  }
  func.func @transform_5(%arg0: i32) -> (i32, i32) {
    %c0_i32 = arith.constant 0 : i32
    %c0_i32_0 = arith.constant 0 : i32
    %c0_i32_1 = arith.constant 0 : i32
    return %c0_i32, %c0_i32_0 : i32, i32
  }
  func.func @transform_6(%arg0: i32) -> (i32, i32) {
    %c0_i32 = arith.constant 0 : i32
    %c0_i32_0 = arith.constant 0 : i32
    %c0_i32_1 = arith.constant 0 : i32
    return %c0_i32, %c0_i32_0 : i32, i32
  }
  func.func @transform_7(%arg0: i32) -> (i32, i32, i32, i32) {
    %c0_i32 = arith.constant 0 : i32
    %c0_i32_0 = arith.constant 0 : i32
    %c0_i32_1 = arith.constant 0 : i32
    %c0_i32_2 = arith.constant 0 : i32
    return %arg0, %c0_i32, %c0_i32_0, %c0_i32_1 : i32, i32, i32, i32
  }
}

</mosaic_0001>

<llo_original>
// kernel: down_forward.1
$region0: #{down_forward.1}
  #allocation0 [shape = 'u32[]', space=smem, size = 0x4, offset = 0x4, fixed_abs, tag = 'smem constant byte address 0x4 - core index']
  #allocation1 [shape = 'u32[72,128]{1,0:T(1,128)}', space=vmem, size = 0x9000, scoped, tag = 'internal scratch']
  #allocation2 [shape = 'bf16[10,16,4]{2,1,0:T(8,128)(2,1)}', space=vmem, size = 0xa000, scoped, tag = 'scratch operand']
  #allocation3 [shape = 'bf16[10,16,8]{2,1,0:T(8,128)(2,1)}', space=vmem, size = 0xa000, scoped, tag = 'scratch operand']
  %s0 = inlined_call_operand.vmem [shape: f32[2,8,2,16,4], index: 0, kind: input, shape index: {}]
  %s1 = inlined_call_operand.vmem [shape: bf16[9,4,8], index: 1, kind: input, shape index: {}]
  %s2 = inlined_call_operand.vmem [shape: f32[1,8], index: 2, kind: input, shape index: {}]
  %s3 = inlined_call_operand.vmem [shape: f32[1,8], index: 3, kind: input, shape index: {}]
  %s4 = inlined_call_operand.vmem [shape: bf16[9,8,8], index: 4, kind: input, shape index: {}]
  %s5 = inlined_call_operand.vmem [shape: f32[1,8], index: 5, kind: input, shape index: {}]
  %s6 = inlined_call_operand.vmem [shape: f32[1,8], index: 6, kind: input, shape index: {}]
  %s7 = inlined_call_operand.vmem [shape: f32[2,8,8,8], index: 7, kind: output, shape index: {}]
  %s8 = sld [smem:[#allocation0]]
  $region61: #{down_forward.1} parent=0
    _
  %s10 = ssub.s32 1, %s8
  %s11 = scalar_select 0, %s10, %s8
  loop: start=0, step=1, limit=4
  $region2: #{down_forward.1} parent=0 // loop_pre_header
    _
  $region3: #{down_forward.1} parent=0 // loop_header
    %s13 = sphi 0, %s17
    %p14 = scmp.ge.s32.totalorder %s13, 4
    %s23 = sphi 0, %s25
    %s26 = sphi 0, %s23
    %s27 = sphi 0, %s26
    %s43 = sphi 0, %s27
    %s47 = sphi 0, %s47
    %s49 = sphi 0, %s47
    %s50 = sphi 0, %s49
    %s64 = sphi 0, %s50
    %s68 = sphi 0, %s68
    %s70 = sphi 0, %s68
    %s71 = sphi 0, %s70
    %s85 = sphi 0, %s71
    %s89 = sphi 0, %s89
    %s91 = sphi 0, %s89
    %s92 = sphi 0, %s91
    %s106 = sphi 0, %s92
    %s110 = sphi 0, %s110
    %s112 = sphi 0, %s110
    %s113 = sphi 0, %s112
    %s127 = sphi 0, %s113
    %s131 = sphi 0, %s131
    %s133 = sphi 0, %s131
    %s134 = sphi 0, %s133
    %s148 = sphi 0, %s134
    %s152 = sphi 0, %s152
    %s154 = sphi 0, %s152
    %s155 = sphi 0, %s154
    %s169 = sphi 0, %s155
    %s175 = sphi 0, %s177
    %s178 = sphi 0, %s175
    %s179 = sphi 0, %s178
    %s195 = sphi 0, %s179
  $region4: #{down_forward.1} parent=0 // loop_header_branch
    %16 = sbr.rel (%p14) target = $region8
  $region5: #{down_forward.1} parent=0 // loop_body
    %s18 = ssub.s32 %s13, 1
    %s19 = ssub.s32 %s13, 2
    %s20 = sadd.s32 %s13, 1
    %s21 = ssub.s32 %s13, %s20
    %p22 = scmp.eq.s32.totalorder %s21, 0
    %s24 = sadd.s32 %s23, 1
    %s25 = scalar_select %p22, %s23, %s24
    %p28 = pneg %p22
    %p29 = scmp.eq.s32.totalorder %s13, 1
    %p30 = por %p28, %p29
    %p31 = scmp.ne.s32.totalorder %s23, %s26
    %p32 = scmp.eq.s32.totalorder %s13, 0
    %p33 = por %p31, %p32
    %p34 = scmp.ne.s32.totalorder %s23, %s26
    %p35 = scmp.eq.s32.totalorder %s18, 1
    %p36 = por %p34, %p35
    %p37 = scmp.ne.s32.totalorder %s26, %s27
    %p38 = scmp.eq.s32.totalorder %s18, 0
    %p39 = por %p37, %p38
    %p40 = scmp.ne.s32.totalorder %s26, %s27
    %p41 = scmp.eq.s32.totalorder %s19, 1
    %p42 = por %p40, %p41
    %p44 = scmp.ne.s32.totalorder %s27, %s43
    %p45 = scmp.eq.s32.totalorder %s19, 0
    %p46 = por %p44, %p45
    %s48 = sadd.s32 %s47, 1
    %p51 = scmp.eq.s32.totalorder %s13, 1
    %p52 = scmp.ne.s32.totalorder %s47, %s49
    %p53 = scmp.eq.s32.totalorder %s13, 0
    %p54 = por %p52, %p53
    %p55 = scmp.ne.s32.totalorder %s47, %s49
    %p56 = scmp.eq.s32.totalorder %s18, 1
    %p57 = por %p55, %p56
    %p58 = scmp.ne.s32.totalorder %s49, %s50
    %p59 = scmp.eq.s32.totalorder %s18, 0
    %p60 = por %p58, %p59
    %p61 = scmp.ne.s32.totalorder %s49, %s50
    %p62 = scmp.eq.s32.totalorder %s19, 1
    %p63 = por %p61, %p62
    %p65 = scmp.ne.s32.totalorder %s50, %s64
    %p66 = scmp.eq.s32.totalorder %s19, 0
    %p67 = por %p65, %p66
    %s69 = sadd.s32 %s68, 1
    %p72 = scmp.eq.s32.totalorder %s13, 1
    %p73 = scmp.ne.s32.totalorder %s68, %s70
    %p74 = scmp.eq.s32.totalorder %s13, 0
    %p75 = por %p73, %p74
    %p76 = scmp.ne.s32.totalorder %s68, %s70
    %p77 = scmp.eq.s32.totalorder %s18, 1
    %p78 = por %p76, %p77
    %p79 = scmp.ne.s32.totalorder %s70, %s71
    %p80 = scmp.eq.s32.totalorder %s18, 0
    %p81 = por %p79, %p80
    %p82 = scmp.ne.s32.totalorder %s70, %s71
    %p83 = scmp.eq.s32.totalorder %s19, 1
    %p84 = por %p82, %p83
    %p86 = scmp.ne.s32.totalorder %s71, %s85
    %p87 = scmp.eq.s32.totalorder %s19, 0
    %p88 = por %p86, %p87
    %s90 = sadd.s32 %s89, 1
    %p93 = scmp.eq.s32.totalorder %s13, 1
    %p94 = scmp.ne.s32.totalorder %s89, %s91
    %p95 = scmp.eq.s32.totalorder %s13, 0
    %p96 = por %p94, %p95
    %p97 = scmp.ne.s32.totalorder %s89, %s91
    %p98 = scmp.eq.s32.totalorder %s18, 1
    %p99 = por %p97, %p98
    %p100 = scmp.ne.s32.totalorder %s91, %s92
    %p101 = scmp.eq.s32.totalorder %s18, 0
    %p102 = por %p100, %p101
    %p103 = scmp.ne.s32.totalorder %s91, %s92
    %p104 = scmp.eq.s32.totalorder %s19, 1
    %p105 = por %p103, %p104
    %p107 = scmp.ne.s32.totalorder %s92, %s106
    %p108 = scmp.eq.s32.totalorder %s19, 0
    %p109 = por %p107, %p108
    %s111 = sadd.s32 %s110, 1
    %p114 = scmp.eq.s32.totalorder %s13, 1
    %p115 = scmp.ne.s32.totalorder %s110, %s112
    %p116 = scmp.eq.s32.totalorder %s13, 0
    %p117 = por %p115, %p116
    %p118 = scmp.ne.s32.totalorder %s110, %s112
    %p119 = scmp.eq.s32.totalorder %s18, 1
    %p120 = por %p118, %p119
    %p121 = scmp.ne.s32.totalorder %s112, %s113
    %p122 = scmp.eq.s32.totalorder %s18, 0
    %p123 = por %p121, %p122
    %p124 = scmp.ne.s32.totalorder %s112, %s113
    %p125 = scmp.eq.s32.totalorder %s19, 1
    %p126 = por %p124, %p125
    %p128 = scmp.ne.s32.totalorder %s113, %s127
    %p129 = scmp.eq.s32.totalorder %s19, 0
    %p130 = por %p128, %p129
    %s132 = sadd.s32 %s131, 1
    %p135 = scmp.eq.s32.totalorder %s13, 1
    %p136 = scmp.ne.s32.totalorder %s131, %s133
    %p137 = scmp.eq.s32.totalorder %s13, 0
    %p138 = por %p136, %p137
    %p139 = scmp.ne.s32.totalorder %s131, %s133
    %p140 = scmp.eq.s32.totalorder %s18, 1
    %p141 = por %p139, %p140
    %p142 = scmp.ne.s32.totalorder %s133, %s134
    %p143 = scmp.eq.s32.totalorder %s18, 0
    %p144 = por %p142, %p143
    %p145 = scmp.ne.s32.totalorder %s133, %s134
    %p146 = scmp.eq.s32.totalorder %s19, 1
    %p147 = por %p145, %p146
    %p149 = scmp.ne.s32.totalorder %s134, %s148
    %p150 = scmp.eq.s32.totalorder %s19, 0
    %p151 = por %p149, %p150
    %s153 = sadd.s32 %s152, 1
    %p156 = scmp.eq.s32.totalorder %s13, 1
    %p157 = scmp.ne.s32.totalorder %s152, %s154
    %p158 = scmp.eq.s32.totalorder %s13, 0
    %p159 = por %p157, %p158
    %p160 = scmp.ne.s32.totalorder %s152, %s154
    %p161 = scmp.eq.s32.totalorder %s18, 1
    %p162 = por %p160, %p161
    %p163 = scmp.ne.s32.totalorder %s154, %s155
    %p164 = scmp.eq.s32.totalorder %s18, 0
    %p165 = por %p163, %p164
    %p166 = scmp.ne.s32.totalorder %s154, %s155
    %p167 = scmp.eq.s32.totalorder %s19, 1
    %p168 = por %p166, %p167
    %p170 = scmp.ne.s32.totalorder %s155, %s169
    %p171 = scmp.eq.s32.totalorder %s19, 0
    %p172 = por %p170, %p171
    %s173 = ssub.s32 %s13, %s20
    %p174 = scmp.eq.s32.totalorder %s173, 0
    %s176 = sadd.s32 %s175, 1
    %s177 = scalar_select %p174, %s175, %s176
    %p180 = pneg %p174
    %p181 = scmp.eq.s32.totalorder %s13, 1
    %p182 = por %p180, %p181
    %p183 = scmp.ne.s32.totalorder %s175, %s178
    %p184 = scmp.eq.s32.totalorder %s13, 0
    %p185 = por %p183, %p184
    %p186 = scmp.ne.s32.totalorder %s175, %s178
    %p187 = scmp.eq.s32.totalorder %s18, 1
    %p188 = por %p186, %p187
    %p189 = scmp.ne.s32.totalorder %s178, %s179
    %p190 = scmp.eq.s32.totalorder %s18, 0
    %p191 = por %p189, %p190
    %p192 = scmp.ne.s32.totalorder %s178, %s179
    %p193 = scmp.eq.s32.totalorder %s19, 1
    %p194 = por %p192, %p193
    %p196 = scmp.ne.s32.totalorder %s179, %s195
    %p197 = scmp.eq.s32.totalorder %s19, 0
    %p198 = por %p196, %p197
    %p199 = scmp.le.s32.totalorder 1, %s13
    %p200 = scmp.lt.s32.totalorder %s13, 3
    %p201 = pnand %p199, %p200
    %p202 = pneg %p201
    // Predicated region
    $region9: #{down_forward.1} parent=5 // pred_check
      _
    $region10: #{down_forward.1} parent=5 // pred_check_branch
      %204 = sbr.rel (%p201) target = $region12
    $region11: #{down_forward.1} parent=5 // pred_region
      %s205 = ssub.s32 %s13, 1
      // Predicated region
      $region13: #{down_forward.1} parent=11 // pred_check
        %p206 = pneg %p60
      $region14: #{down_forward.1} parent=11 // pred_check_branch
        %208 = sbr.rel (%p206) target = $region16
      $region15: #{down_forward.1} parent=11 // pred_region
        _
      $region16: #{down_forward.1} parent=11 // pred_fallthru
        _
      // Predicated region
      $region17: #{down_forward.1} parent=11 // pred_check
        %p209 = pneg %p81
      $region18: #{down_forward.1} parent=11 // pred_check_branch
        %211 = sbr.rel (%p209) target = $region20
      $region19: #{down_forward.1} parent=11 // pred_region
        _
      $region20: #{down_forward.1} parent=11 // pred_fallthru
        _
      // Predicated region
      $region21: #{down_forward.1} parent=11 // pred_check
        %p212 = pneg %p102
      $region22: #{down_forward.1} parent=11 // pred_check_branch
        %214 = sbr.rel (%p212) target = $region24
      $region23: #{down_forward.1} parent=11 // pred_region
        _
      $region24: #{down_forward.1} parent=11 // pred_fallthru
        _
      // Predicated region
      $region25: #{down_forward.1} parent=11 // pred_check
        %p215 = pneg %p123
      $region26: #{down_forward.1} parent=11 // pred_check_branch
        %217 = sbr.rel (%p215) target = $region28
      $region27: #{down_forward.1} parent=11 // pred_region
        _
      $region28: #{down_forward.1} parent=11 // pred_fallthru
        _
      // Predicated region
      $region29: #{down_forward.1} parent=11 // pred_check
        %p218 = pneg %p144
      $region30: #{down_forward.1} parent=11 // pred_check_branch
        %220 = sbr.rel (%p218) target = $region32
      $region31: #{down_forward.1} parent=11 // pred_region
        _
      $region32: #{down_forward.1} parent=11 // pred_fallthru
        _
      // Predicated region
      $region33: #{down_forward.1} parent=11 // pred_check
        %p221 = pneg %p165
      $region34: #{down_forward.1} parent=11 // pred_check_branch
        %223 = sbr.rel (%p221) target = $region36
      $region35: #{down_forward.1} parent=11 // pred_region
        _
      $region36: #{down_forward.1} parent=11 // pred_fallthru
        _
    $region12: #{down_forward.1} parent=5 // pred_fallthru
      _
    %p224 = scmp.lt.s32.totalorder %s13, 2
    // Predicated region
    $region37: #{down_forward.1} parent=5 // pred_check
      %p225 = pneg %p224
    $region38: #{down_forward.1} parent=5 // pred_check_branch
      %227 = sbr.rel (%p225) target = $region40
    $region39: #{down_forward.1} parent=5 // pred_region
      // Predicated region
      $region41: #{down_forward.1} parent=39 // pred_check
        %p228 = pneg %p33
      $region42: #{down_forward.1} parent=39 // pred_check_branch
        %230 = sbr.rel (%p228) target = $region44
      $region43: #{down_forward.1} parent=39 // pred_region
        %p231 = scmp.lt.s32.totalorder %s13, 1
        %s232 = scalar_select %p231, %s13, 1
        %s233 = smul.addr %s232, 32
        %s234 = smul.addr %s233, 8
        %s235 = scalar_lea.vmem %s0, %s234
      $region44: #{down_forward.1} parent=39 // pred_fallthru
        _
    $region40: #{down_forward.1} parent=5 // pred_fallthru
      _
    %p236 = scmp.le.s32.totalorder 1, %s13
    %p237 = scmp.lt.s32.totalorder %s13, 3
    %p238 = pnand %p236, %p237
    %p239 = pneg %p238
    // Predicated region
    $region45: #{down_forward.1} parent=5 // pred_check
      _
    $region46: #{down_forward.1} parent=5 // pred_check_branch
      %241 = sbr.rel (%p238) target = $region48
    $region47: #{down_forward.1} parent=5 // pred_region
      %s242 = ssub.s32 %s13, 1
      %p243 = scmp.lt.s32.totalorder %s18, 1
      %s244 = scalar_select %p243, %s18, 1
      %s245 = smul.addr %s244, 32
      %s246 = smul.addr %s245, 8
      %s247 = scalar_lea.vmem %s0, %s246
      %p248 = pneg %p39
      %p249 = pneg %p36
      %p250 = pneg %p60
      %p251 = pneg %p57
      %p252 = pneg %p81
      %p253 = pneg %p78
      %p254 = pneg %p102
      %p255 = pneg %p99
      %p256 = pneg %p123
      %p257 = pneg %p120
      %p258 = pneg %p144
      %p259 = pneg %p141
      %p260 = pneg %p165
      %p261 = pneg %p162
      %p262 = pneg %p191
      %p263 = pneg %p188
      %p264 = scmp.lt.s32.totalorder %s18, 1
      %s265 = scalar_select %p264, %s18, 1
      %s266 = smul.addr %s265, 8
      %s267 = smul.addr %s266, 8
      %s268 = scalar_lea.vmem %s7, %s267
      %p269 = scmp.lt.s32.totalorder %s18, 1
      %s270 = scalar_select %p269, %s18, 1
      %s271 = smul.addr %s270, 32
      %s272 = smul.addr %s271, 8
      %s273 = scalar_lea.vmem %s0, %s272
      %p274 = scmp.lt.s32.totalorder %s18, 1
      %s275 = scalar_select %p274, %s18, 1
      %s276 = smul.addr %s275, 8
      %s277 = smul.addr %s276, 8
      %s278 = scalar_lea.vmem %s7, %s277
      %v280 = vld [vmem:[%s273] sm:$0xff]
      %v281 = vld [vmem:[%s273 + $0x8] sm:$0xff]
      %v282 = vld [vmem:[%s273 + $0x20] sm:$0xff]
      %v283 = vld [vmem:[%s273 + $0x28] sm:$0xff]
      %v284 = vld [vmem:[%s273 + $0x40] sm:$0xff]
      %v285 = vld [vmem:[%s273 + $0x48] sm:$0xff]
      %v286 = vld [vmem:[%s273 + $0x60] sm:$0xff]
      %v287 = vld [vmem:[%s273 + $0x68] sm:$0xff]
      %v288 = vld [vmem:[%s273 + $0x80] sm:$0xff]
      %v289 = vld [vmem:[%s273 + $0x88] sm:$0xff]
      %v290 = vld [vmem:[%s273 + $0xa0] sm:$0xff]
      %v291 = vld [vmem:[%s273 + $0xa8] sm:$0xff]
      %v292 = vld [vmem:[%s273 + $0xc0] sm:$0xff]
      %v293 = vld [vmem:[%s273 + $0xc8] sm:$0xff]
      %v294 = vld [vmem:[%s273 + $0xe0] sm:$0xff]
      %v295 = vld [vmem:[%s273 + $0xe8] sm:$0xff]
      %s296 = scalar_lea.vmem %s273, 16
      %v297 = vld [vmem:[%s296] sm:$0xff]
      %v298 = vld [vmem:[%s296 + $0x8] sm:$0xff]
      %v299 = vld [vmem:[%s296 + $0x20] sm:$0xff]
      %v300 = vld [vmem:[%s296 + $0x28] sm:$0xff]
      %v301 = vld [vmem:[%s296 + $0x40] sm:$0xff]
      %v302 = vld [vmem:[%s296 + $0x48] sm:$0xff]
      %v303 = vld [vmem:[%s296 + $0x60] sm:$0xff]
      %v304 = vld [vmem:[%s296 + $0x68] sm:$0xff]
      %v305 = vld [vmem:[%s296 + $0x80] sm:$0xff]
      %v306 = vld [vmem:[%s296 + $0x88] sm:$0xff]
      %v307 = vld [vmem:[%s296 + $0xa0] sm:$0xff]
      %v308 = vld [vmem:[%s296 + $0xa8] sm:$0xff]
      %v309 = vld [vmem:[%s296 + $0xc0] sm:$0xff]
      %v310 = vld [vmem:[%s296 + $0xc8] sm:$0xff]
      %v311 = vld [vmem:[%s296 + $0xe0] sm:$0xff]
      %v312 = vld [vmem:[%s296 + $0xe8] sm:$0xff]
      %v313 = vmax.f32 %v280, %v297
      %v314 = vmax.f32 %v281, %v298
      %v315 = vmax.f32 %v282, %v299
      %v316 = vmax.f32 %v283, %v300
      %v317 = vmax.f32 %v284, %v301
      %v318 = vmax.f32 %v285, %v302
      %v319 = vmax.f32 %v286, %v303
      %v320 = vmax.f32 %v287, %v304
      %v321 = vmax.f32 %v288, %v305
      %v322 = vmax.f32 %v289, %v306
      %v323 = vmax.f32 %v290, %v307
      %v324 = vmax.f32 %v291, %v308
      %v325 = vmax.f32 %v292, %v309
      %v326 = vmax.f32 %v293, %v310
      %v327 = vmax.f32 %v294, %v311
      %v328 = vmax.f32 %v295, %v312
      %v345 = vrot.slane %v313, 2
      %v346 = vrot.slane %v313, 4
      %v347 = vrot.slane %v313, 6
      %v348 = vrot.slane %v314, 2
      %v349 = vrot.slane %v314, 4
      %v350 = vrot.slane %v314, 6
      %v351 = vrot.slane %v315, 2
      %v352 = vrot.slane %v315, 4
      %v353 = vrot.slane %v315, 6
      %v354 = vrot.slane %v316, 2
      %v355 = vrot.slane %v316, 4
      %v356 = vrot.slane %v316, 6
      %v357 = vrot.slane %v317, 2
      %v358 = vrot.slane %v317, 4
      %v359 = vrot.slane %v317, 6
      %v360 = vrot.slane %v318, 2
      %v361 = vrot.slane %v318, 4
      %v362 = vrot.slane %v318, 6
      %v363 = vrot.slane %v319, 2
      %v364 = vrot.slane %v319, 4
      %v365 = vrot.slane %v319, 6
      %v366 = vrot.slane %v320, 2
      %v367 = vrot.slane %v320, 4
      %v368 = vrot.slane %v320, 6
      %v369 = vrot.slane %v321, 2
      %v370 = vrot.slane %v321, 4
      %v371 = vrot.slane %v321, 6
      %v372 = vrot.slane %v322, 2
      %v373 = vrot.slane %v322, 4
      %v374 = vrot.slane %v322, 6
      %v375 = vrot.slane %v323, 2
      %v376 = vrot.slane %v323, 4
      %v377 = vrot.slane %v323, 6
      %v378 = vrot.slane %v324, 2
      %v379 = vrot.slane %v324, 4
      %v380 = vrot.slane %v324, 6
      %v381 = vrot.slane %v325, 2
      %v382 = vrot.slane %v325, 4
      %v383 = vrot.slane %v325, 6
      %v384 = vrot.slane %v326, 2
      %v385 = vrot.slane %v326, 4
      %v386 = vrot.slane %v326, 6
      %v387 = vrot.slane %v327, 2
      %v388 = vrot.slane %v327, 4
      %v389 = vrot.slane %v327, 6
      %v390 = vrot.slane %v328, 2
      %v391 = vrot.slane %v328, 4
      %v392 = vrot.slane %v328, 6
      %v441 = vrot.slane %v313, 7
      %v442 = vrot.slane %v441, 2
      %v443 = vrot.slane %v345, 7
      %v444 = vrot.slane %v443, 2
      %v445 = vrot.slane %v346, 7
      %v446 = vrot.slane %v445, 2
      %v447 = vrot.slane %v347, 7
      %v448 = vrot.slane %v447, 2
      %v449 = vrot.slane %v314, 7
      %v450 = vrot.slane %v449, 2
      %v451 = vrot.slane %v348, 7
      %v452 = vrot.slane %v451, 2
      %v453 = vrot.slane %v349, 7
      %v454 = vrot.slane %v453, 2
      %v455 = vrot.slane %v350, 7
      %v456 = vrot.slane %v455, 2
      %v457 = vrot.slane %v315, 7
      %v458 = vrot.slane %v457, 2
      %v459 = vrot.slane %v351, 7
      %v460 = vrot.slane %v459, 2
      %v461 = vrot.slane %v352, 7
      %v462 = vrot.slane %v461, 2
      %v463 = vrot.slane %v353, 7
      %v464 = vrot.slane %v463, 2
      %v465 = vrot.slane %v316, 7
      %v466 = vrot.slane %v465, 2
      %v467 = vrot.slane %v354, 7
      %v468 = vrot.slane %v467, 2
      %v469 = vrot.slane %v355, 7
      %v470 = vrot.slane %v469, 2
      %v471 = vrot.slane %v356, 7
      %v472 = vrot.slane %v471, 2
      %v473 = vrot.slane %v317, 7
      %v474 = vrot.slane %v473, 2
      %v475 = vrot.slane %v357, 7
      %v476 = vrot.slane %v475, 2
      %v477 = vrot.slane %v358, 7
      %v478 = vrot.slane %v477, 2
      %v479 = vrot.slane %v359, 7
      %v480 = vrot.slane %v479, 2
      %v481 = vrot.slane %v318, 7
      %v482 = vrot.slane %v481, 2
      %v483 = vrot.slane %v360, 7
      %v484 = vrot.slane %v483, 2
      %v485 = vrot.slane %v361, 7
      %v486 = vrot.slane %v485, 2
      %v487 = vrot.slane %v362, 7
      %v488 = vrot.slane %v487, 2
      %v489 = vrot.slane %v319, 7
      %v490 = vrot.slane %v489, 2
      %v491 = vrot.slane %v363, 7
      %v492 = vrot.slane %v491, 2
      %v493 = vrot.slane %v364, 7
      %v494 = vrot.slane %v493, 2
      %v495 = vrot.slane %v365, 7
      %v496 = vrot.slane %v495, 2
      %v497 = vrot.slane %v320, 7
      %v498 = vrot.slane %v497, 2
      %v499 = vrot.slane %v366, 7
      %v500 = vrot.slane %v499, 2
      %v501 = vrot.slane %v367, 7
      %v502 = vrot.slane %v501, 2
      %v503 = vrot.slane %v368, 7
      %v504 = vrot.slane %v503, 2
      %v505 = vrot.slane %v321, 7
      %v506 = vrot.slane %v505, 2
      %v507 = vrot.slane %v369, 7
      %v508 = vrot.slane %v507, 2
      %v509 = vrot.slane %v370, 7
      %v510 = vrot.slane %v509, 2
      %v511 = vrot.slane %v371, 7
      %v512 = vrot.slane %v511, 2
      %v513 = vrot.slane %v322, 7
      %v514 = vrot.slane %v513, 2
      %v515 = vrot.slane %v372, 7
      %v516 = vrot.slane %v515, 2
      %v517 = vrot.slane %v373, 7
      %v518 = vrot.slane %v517, 2
      %v519 = vrot.slane %v374, 7
      %v520 = vrot.slane %v519, 2
      %v521 = vrot.slane %v323, 7
      %v522 = vrot.slane %v521, 2
      %v523 = vrot.slane %v375, 7
      %v524 = vrot.slane %v523, 2
      %v525 = vrot.slane %v376, 7
      %v526 = vrot.slane %v525, 2
      %v527 = vrot.slane %v377, 7
      %v528 = vrot.slane %v527, 2
      %v529 = vrot.slane %v324, 7
      %v530 = vrot.slane %v529, 2
      %v531 = vrot.slane %v378, 7
      %v532 = vrot.slane %v531, 2
      %v533 = vrot.slane %v379, 7
      %v534 = vrot.slane %v533, 2
      %v535 = vrot.slane %v380, 7
      %v536 = vrot.slane %v535, 2
      %v537 = vrot.slane %v325, 7
      %v538 = vrot.slane %v537, 2
      %v539 = vrot.slane %v381, 7
      %v540 = vrot.slane %v539, 2
      %v541 = vrot.slane %v382, 7
      %v542 = vrot.slane %v541, 2
      %v543 = vrot.slane %v383, 7
      %v544 = vrot.slane %v543, 2
      %v545 = vrot.slane %v326, 7
      %v546 = vrot.slane %v545, 2
      %v547 = vrot.slane %v384, 7
      %v548 = vrot.slane %v547, 2
      %v549 = vrot.slane %v385, 7
      %v550 = vrot.slane %v549, 2
      %v551 = vrot.slane %v386, 7
      %v552 = vrot.slane %v551, 2
      %v553 = vrot.slane %v327, 7
      %v554 = vrot.slane %v553, 2
      %v555 = vrot.slane %v387, 7
      %v556 = vrot.slane %v555, 2
      %v557 = vrot.slane %v388, 7
      %v558 = vrot.slane %v557, 2
      %v559 = vrot.slane %v389, 7
      %v560 = vrot.slane %v559, 2
      %v561 = vrot.slane %v328, 7
      %v562 = vrot.slane %v561, 2
      %v563 = vrot.slane %v390, 7
      %v564 = vrot.slane %v563, 2
      %v565 = vrot.slane %v391, 7
      %v566 = vrot.slane %v565, 2
      %v567 = vrot.slane %v392, 7
      %v568 = vrot.slane %v567, 2
      %v633 = vmax.f32 %v313, %v442
      %v634 = vmax.f32 %v345, %v444
      %v635 = vmax.f32 %v346, %v446
      %v636 = vmax.f32 %v347, %v448
      %v637 = vmax.f32 %v314, %v450
      %v638 = vmax.f32 %v348, %v452
      %v639 = vmax.f32 %v349, %v454
      %v640 = vmax.f32 %v350, %v456
      %v641 = vmax.f32 %v315, %v458
      %v642 = vmax.f32 %v351, %v460
      %v643 = vmax.f32 %v352, %v462
      %v644 = vmax.f32 %v353, %v464
      %v645 = vmax.f32 %v316, %v466
      %v646 = vmax.f32 %v354, %v468
      %v647 = vmax.f32 %v355, %v470
      %v648 = vmax.f32 %v356, %v472
      %v649 = vmax.f32 %v317, %v474
      %v650 = vmax.f32 %v357, %v476
      %v651 = vmax.f32 %v358, %v478
      %v652 = vmax.f32 %v359, %v480
      %v653 = vmax.f32 %v318, %v482
      %v654 = vmax.f32 %v360, %v484
      %v655 = vmax.f32 %v361, %v486
      %v656 = vmax.f32 %v362, %v488
      %v657 = vmax.f32 %v319, %v490
      %v658 = vmax.f32 %v363, %v492
      %v659 = vmax.f32 %v364, %v494
      %v660 = vmax.f32 %v365, %v496
      %v661 = vmax.f32 %v320, %v498
      %v662 = vmax.f32 %v366, %v500
      %v663 = vmax.f32 %v367, %v502
      %v664 = vmax.f32 %v368, %v504
      %v665 = vmax.f32 %v321, %v506
      %v666 = vmax.f32 %v369, %v508
      %v667 = vmax.f32 %v370, %v510
      %v668 = vmax.f32 %v371, %v512
      %v669 = vmax.f32 %v322, %v514
      %v670 = vmax.f32 %v372, %v516
      %v671 = vmax.f32 %v373, %v518
      %v672 = vmax.f32 %v374, %v520
      %v673 = vmax.f32 %v323, %v522
      %v674 = vmax.f32 %v375, %v524
      %v675 = vmax.f32 %v376, %v526
      %v676 = vmax.f32 %v377, %v528
      %v677 = vmax.f32 %v324, %v530
      %v678 = vmax.f32 %v378, %v532
      %v679 = vmax.f32 %v379, %v534
      %v680 = vmax.f32 %v380, %v536
      %v681 = vmax.f32 %v325, %v538
      %v682 = vmax.f32 %v381, %v540
      %v683 = vmax.f32 %v382, %v542
      %v684 = vmax.f32 %v383, %v544
      %v685 = vmax.f32 %v326, %v546
      %v686 = vmax.f32 %v384, %v548
      %v687 = vmax.f32 %v385, %v550
      %v688 = vmax.f32 %v386, %v552
      %v689 = vmax.f32 %v327, %v554
      %v690 = vmax.f32 %v387, %v556
      %v691 = vmax.f32 %v388, %v558
      %v692 = vmax.f32 %v389, %v560
      %v693 = vmax.f32 %v328, %v562
      %v694 = vmax.f32 %v390, %v564
      %v695 = vmax.f32 %v391, %v566
      %v696 = vmax.f32 %v392, %v568
      %vm697 = vcmask 27648
      %698 = vst.msk [vmem:[#allocation2] sm:$0xf] %vm697, 0
      %699 = vst.msk [vmem:[#allocation2 + $0x4] sm:$0xf] %vm697, 0
      %s700 = scalar_lea.vmem [#allocation2], 72
      %701 = vst.msk [vmem:[%s700] sm:$0xf] %vm697, 0
      %702 = vst.msk [vmem:[%s700 + $0x4] sm:$0xf] %vm697, 0
      %vm703 = vcmask 24576
      %vm704 = vsmask.f32 256
      %vm705 = vmand %vm703, %vm704
      %v706 = vld [vmem:[#allocation2] sm:$0x1]
      %v707 = vsel %vm705, 0, %v706
      %708 = vst [vmem:[#allocation2] sm:$0x1] %v707
      %v709 = vld [vmem:[#allocation2 + $0x8] sm:$0x1]
      %v710 = vsel %vm705, 0, %v709
      %711 = vst [vmem:[#allocation2 + $0x8] sm:$0x1] %v710
      %v712 = vld [vmem:[#allocation2 + $0x10] sm:$0x1]
      %v713 = vsel %vm705, 0, %v712
      %714 = vst [vmem:[#allocation2 + $0x10] sm:$0x1] %v713
      %v715 = vld [vmem:[#allocation2 + $0x18] sm:$0x1]
      %v716 = vsel %vm705, 0, %v715
      %717 = vst [vmem:[#allocation2 + $0x18] sm:$0x1] %v716
      %v718 = vld [vmem:[#allocation2 + $0x20] sm:$0x1]
      %v719 = vsel %vm705, 0, %v718
      %720 = vst [vmem:[#allocation2 + $0x20] sm:$0x1] %v719
      %v721 = vld [vmem:[#allocation2 + $0x28] sm:$0x1]
      %v722 = vsel %vm705, 0, %v721
      %723 = vst [vmem:[#allocation2 + $0x28] sm:$0x1] %v722
      %v724 = vld [vmem:[#allocation2 + $0x30] sm:$0x1]
      %v725 = vsel %vm705, 0, %v724
      %726 = vst [vmem:[#allocation2 + $0x30] sm:$0x1] %v725
      %v727 = vld [vmem:[#allocation2 + $0x38] sm:$0x1]
      %v728 = vsel %vm705, 0, %v727
      %729 = vst [vmem:[#allocation2 + $0x38] sm:$0x1] %v728
      %v730 = vld [vmem:[#allocation2 + $0x40] sm:$0x1]
      %v731 = vsel %vm705, 0, %v730
      %732 = vst [vmem:[#allocation2 + $0x40] sm:$0x1] %v731
      %v733 = vld [vmem:[#allocation2 + $0x48] sm:$0x1]
      %v734 = vsel %vm705, 0, %v733
      %735 = vst [vmem:[#allocation2 + $0x48] sm:$0x1] %v734
      %vm736 = vsmask.f32 7938
      %vm737 = vmand %vm703, %vm736
      %v738 = vld [vmem:[#allocation2 + $0x4] sm:$0x1]
      %v739 = vsel %vm737, 0, %v738
      %740 = vst [vmem:[#allocation2 + $0x4] sm:$0x1] %v739
      %v741 = vld [vmem:[#allocation2 + $0xc] sm:$0x1]
      %v742 = vsel %vm737, 0, %v741
      %743 = vst [vmem:[#allocation2 + $0xc] sm:$0x1] %v742
      %v744 = vld [vmem:[#allocation2 + $0x14] sm:$0x1]
      %v745 = vsel %vm737, 0, %v744
      %746 = vst [vmem:[#allocation2 + $0x14] sm:$0x1] %v745
      %v747 = vld [vmem:[#allocation2 + $0x1c] sm:$0x1]
      %v748 = vsel %vm737, 0, %v747
      %749 = vst [vmem:[#allocation2 + $0x1c] sm:$0x1] %v748
      %v750 = vld [vmem:[#allocation2 + $0x24] sm:$0x1]
      %v751 = vsel %vm737, 0, %v750
      %752 = vst [vmem:[#allocation2 + $0x24] sm:$0x1] %v751
      %v753 = vld [vmem:[#allocation2 + $0x2c] sm:$0x1]
      %v754 = vsel %vm737, 0, %v753
      %755 = vst [vmem:[#allocation2 + $0x2c] sm:$0x1] %v754
      %v756 = vld [vmem:[#allocation2 + $0x34] sm:$0x1]
      %v757 = vsel %vm737, 0, %v756
      %758 = vst [vmem:[#allocation2 + $0x34] sm:$0x1] %v757
      %v759 = vld [vmem:[#allocation2 + $0x3c] sm:$0x1]
      %v760 = vsel %vm737, 0, %v759
      %761 = vst [vmem:[#allocation2 + $0x3c] sm:$0x1] %v760
      %v762 = vld [vmem:[#allocation2 + $0x44] sm:$0x1]
      %v763 = vsel %vm737, 0, %v762
      %764 = vst [vmem:[#allocation2 + $0x44] sm:$0x1] %v763
      %v765 = vld [vmem:[#allocation2 + $0x4c] sm:$0x1]
      %v766 = vsel %vm737, 0, %v765
      %767 = vst [vmem:[#allocation2 + $0x4c] sm:$0x1] %v766
      %v768 = vpack.c.bf16 %v633, %v633
      %v769 = vpack.c.bf16 %v634, %v634
      %v770 = vpack.c.bf16 %v635, %v635
      %v771 = vpack.c.bf16 %v636, %v636
      %v772 = vpack.c.bf16 %v637, %v637
      %v773 = vpack.c.bf16 %v638, %v638
      %v774 = vpack.c.bf16 %v639, %v639
      %v775 = vpack.c.bf16 %v640, %v640
      %v776 = vpack.c.bf16 %v641, %v641
      %v777 = vpack.c.bf16 %v642, %v642
      %v778 = vpack.c.bf16 %v643, %v643
      %v779 = vpack.c.bf16 %v644, %v644
      %v780 = vpack.c.bf16 %v645, %v645
      %v781 = vpack.c.bf16 %v646, %v646
      %v782 = vpack.c.bf16 %v647, %v647
      %v783 = vpack.c.bf16 %v648, %v648
      %v784 = vpack.c.bf16 %v649, %v649
      %v785 = vpack.c.bf16 %v650, %v650
      %v786 = vpack.c.bf16 %v651, %v651
      %v787 = vpack.c.bf16 %v652, %v652
      %v788 = vpack.c.bf16 %v653, %v653
      %v789 = vpack.c.bf16 %v654, %v654
      %v790 = vpack.c.bf16 %v655, %v655
      %v791 = vpack.c.bf16 %v656, %v656
      %v792 = vpack.c.bf16 %v657, %v657
      %v793 = vpack.c.bf16 %v658, %v658
      %v794 = vpack.c.bf16 %v659, %v659
      %v795 = vpack.c.bf16 %v660, %v660
      %v796 = vpack.c.bf16 %v661, %v661
      %v797 = vpack.c.bf16 %v662, %v662
      %v798 = vpack.c.bf16 %v663, %v663
      %v799 = vpack.c.bf16 %v664, %v664
      %v800 = vpack.c.bf16 %v665, %v665
      %v801 = vpack.c.bf16 %v666, %v666
      %v802 = vpack.c.bf16 %v667, %v667
      %v803 = vpack.c.bf16 %v668, %v668
      %v804 = vpack.c.bf16 %v669, %v669
      %v805 = vpack.c.bf16 %v670, %v670
      %v806 = vpack.c.bf16 %v671, %v671
      %v807 = vpack.c.bf16 %v672, %v672
      %v808 = vpack.c.bf16 %v673, %v673
      %v809 = vpack.c.bf16 %v674, %v674
      %v810 = vpack.c.bf16 %v675, %v675
      %v811 = vpack.c.bf16 %v676, %v676
      %v812 = vpack.c.bf16 %v677, %v677
      %v813 = vpack.c.bf16 %v678, %v678
      %v814 = vpack.c.bf16 %v679, %v679
      %v815 = vpack.c.bf16 %v680, %v680
      %v816 = vpack.c.bf16 %v681, %v681
      %v817 = vpack.c.bf16 %v682, %v682
      %v818 = vpack.c.bf16 %v683, %v683
      %v819 = vpack.c.bf16 %v684, %v684
      %v820 = vpack.c.bf16 %v685, %v685
      %v821 = vpack.c.bf16 %v686, %v686
      %v822 = vpack.c.bf16 %v687, %v687
      %v823 = vpack.c.bf16 %v688, %v688
      %v824 = vpack.c.bf16 %v689, %v689
      %v825 = vpack.c.bf16 %v690, %v690
      %v826 = vpack.c.bf16 %v691, %v691
      %v827 = vpack.c.bf16 %v692, %v692
      %v828 = vpack.c.bf16 %v693, %v693
      %v829 = vpack.c.bf16 %v694, %v694
      %v830 = vpack.c.bf16 %v695, %v695
      %v831 = vpack.c.bf16 %v696, %v696
      %v896 = vunpack.c.l.b16 %v768
      %v897 = vunpack.c.l.b16 %v769
      %v898 = vunpack.c.l.b16 %v770
      %v899 = vunpack.c.l.b16 %v771
      %v900 = vunpack.c.l.b16 %v772
      %v901 = vunpack.c.l.b16 %v773
      %v902 = vunpack.c.l.b16 %v774
      %v903 = vunpack.c.l.b16 %v775
      %v904 = vunpack.c.l.b16 %v776
      %v905 = vunpack.c.l.b16 %v777
      %v906 = vunpack.c.l.b16 %v778
      %v907 = vunpack.c.l.b16 %v779
      %v908 = vunpack.c.l.b16 %v780
      %v909 = vunpack.c.l.b16 %v781
      %v910 = vunpack.c.l.b16 %v782
      %v911 = vunpack.c.l.b16 %v783
      %v912 = vunpack.c.l.b16 %v784
      %v913 = vunpack.c.l.b16 %v785
      %v914 = vunpack.c.l.b16 %v786
      %v915 = vunpack.c.l.b16 %v787
      %v916 = vunpack.c.l.b16 %v788
      %v917 = vunpack.c.l.b16 %v789
      %v918 = vunpack.c.l.b16 %v790
      %v919 = vunpack.c.l.b16 %v791
      %v920 = vunpack.c.l.b16 %v792
      %v921 = vunpack.c.l.b16 %v793
      %v922 = vunpack.c.l.b16 %v794
      %v923 = vunpack.c.l.b16 %v795
      %v924 = vunpack.c.l.b16 %v796
      %v925 = vunpack.c.l.b16 %v797
      %v926 = vunpack.c.l.b16 %v798
      %v927 = vunpack.c.l.b16 %v799
      %v928 = vunpack.c.l.b16 %v800
      %v929 = vunpack.c.l.b16 %v801
      %v930 = vunpack.c.l.b16 %v802
      %v931 = vunpack.c.l.b16 %v803
      %v932 = vunpack.c.l.b16 %v804
      %v933 = vunpack.c.l.b16 %v805
      %v934 = vunpack.c.l.b16 %v806
      %v935 = vunpack.c.l.b16 %v807
      %v936 = vunpack.c.l.b16 %v808
      %v937 = vunpack.c.l.b16 %v809
      %v938 = vunpack.c.l.b16 %v810
      %v939 = vunpack.c.l.b16 %v811
      %v940 = vunpack.c.l.b16 %v812
      %v941 = vunpack.c.l.b16 %v813
      %v942 = vunpack.c.l.b16 %v814
      %v943 = vunpack.c.l.b16 %v815
      %v944 = vunpack.c.l.b16 %v816
      %v945 = vunpack.c.l.b16 %v817
      %v946 = vunpack.c.l.b16 %v818
      %v947 = vunpack.c.l.b16 %v819
      %v948 = vunpack.c.l.b16 %v820
      %v949 = vunpack.c.l.b16 %v821
      %v950 = vunpack.c.l.b16 %v822
      %v951 = vunpack.c.l.b16 %v823
      %v952 = vunpack.c.l.b16 %v824
      %v953 = vunpack.c.l.b16 %v825
      %v954 = vunpack.c.l.b16 %v826
      %v955 = vunpack.c.l.b16 %v827
      %v956 = vunpack.c.l.b16 %v828
      %v957 = vunpack.c.l.b16 %v829
      %v958 = vunpack.c.l.b16 %v830
      %v959 = vunpack.c.l.b16 %v831
      %v960 = vrot.slane %v896, 7
      %v961 = vrot.slane %v897, 6
      %vm962 = vcmask 1042434
      %v963 = vsel %vm962, %v961, %v960
      %v964 = vrot.slane %v898, 5
      %vm965 = vcmask 1043459
      %v966 = vsel %vm965, %v964, %v963
      %v967 = vrot.slane %v899, 4
      %vm968 = vcmask 1044484
      %v969 = vsel %vm968, %v967, %v966
      %v970 = vrot.slane %v900, 3
      %vm971 = vcmask 1045509
      %v972 = vsel %vm971, %v970, %v969
      %v973 = vrot.slane %v901, 2
      %vm974 = vcmask 1046534
      %v975 = vsel %vm974, %v973, %v972
      %v976 = vrot.slane %v902, 1
      %vm977 = vcmask 1047559
      %v978 = vsel %vm977, %v976, %v975
      %v979 = vrot.slane %v904, 7
      %v980 = vrot.slane %v905, 6
      %v981 = vsel %vm962, %v980, %v979
      %v982 = vrot.slane %v906, 5
      %v983 = vsel %vm965, %v982, %v981
      %v984 = vrot.slane %v907, 4
      %v985 = vsel %vm968, %v984, %v983
      %v986 = vrot.slane %v908, 3
      %v987 = vsel %vm971, %v986, %v985
      %v988 = vrot.slane %v909, 2
      %v989 = vsel %vm974, %v988, %v987
      %v990 = vrot.slane %v910, 1
      %v991 = vsel %vm977, %v990, %v989
      %v992 = vrot.slane %v912, 7
      %v993 = vrot.slane %v913, 6
      %v994 = vsel %vm962, %v993, %v992
      %v995 = vrot.slane %v914, 5
      %v996 = vsel %vm965, %v995, %v994
      %v997 = vrot.slane %v915, 4
      %v998 = vsel %vm968, %v997, %v996
      %v999 = vrot.slane %v916, 3
      %v1000 = vsel %vm971, %v999, %v998
      %v1001 = vrot.slane %v917, 2
      %v1002 = vsel %vm974, %v1001, %v1000
      %v1003 = vrot.slane %v918, 1
      %v1004 = vsel %vm977, %v1003, %v1002
      %v1005 = vrot.slane %v920, 7
      %v1006 = vrot.slane %v921, 6
      %v1007 = vsel %vm962, %v1006, %v1005
      %v1008 = vrot.slane %v922, 5
      %v1009 = vsel %vm965, %v1008, %v1007
      %v1010 = vrot.slane %v923, 4
      %v1011 = vsel %vm968, %v1010, %v1009
      %v1012 = vrot.slane %v924, 3
      %v1013 = vsel %vm971, %v1012, %v1011
      %v1014 = vrot.slane %v925, 2
      %v1015 = vsel %vm974, %v1014, %v1013
      %v1016 = vrot.slane %v926, 1
      %v1017 = vsel %vm977, %v1016, %v1015
      %v1018 = vrot.slane %v928, 7
      %v1019 = vrot.slane %v929, 6
      %v1020 = vsel %vm962, %v1019, %v1018
      %v1021 = vrot.slane %v930, 5
      %v1022 = vsel %vm965, %v1021, %v1020
      %v1023 = vrot.slane %v931, 4
      %v1024 = vsel %vm968, %v1023, %v1022
      %v1025 = vrot.slane %v932, 3
      %v1026 = vsel %vm971, %v1025, %v1024
      %v1027 = vrot.slane %v933, 2
      %v1028 = vsel %vm974, %v1027, %v1026
      %v1029 = vrot.slane %v934, 1
      %v1030 = vsel %vm977, %v1029, %v1028
      %v1031 = vrot.slane %v936, 7
      %v1032 = vrot.slane %v937, 6
      %v1033 = vsel %vm962, %v1032, %v1031
      %v1034 = vrot.slane %v938, 5
      %v1035 = vsel %vm965, %v1034, %v1033
      %v1036 = vrot.slane %v939, 4
      %v1037 = vsel %vm968, %v1036, %v1035
      %v1038 = vrot.slane %v940, 3
      %v1039 = vsel %vm971, %v1038, %v1037
      %v1040 = vrot.slane %v941, 2
      %v1041 = vsel %vm974, %v1040, %v1039
      %v1042 = vrot.slane %v942, 1
      %v1043 = vsel %vm977, %v1042, %v1041
      %v1044 = vrot.slane %v944, 7
      %v1045 = vrot.slane %v945, 6
      %v1046 = vsel %vm962, %v1045, %v1044
      %v1047 = vrot.slane %v946, 5
      %v1048 = vsel %vm965, %v1047, %v1046
      %v1049 = vrot.slane %v947, 4
      %v1050 = vsel %vm968, %v1049, %v1048
      %v1051 = vrot.slane %v948, 3
      %v1052 = vsel %vm971, %v1051, %v1050
      %v1053 = vrot.slane %v949, 2
      %v1054 = vsel %vm974, %v1053, %v1052
      %v1055 = vrot.slane %v950, 1
      %v1056 = vsel %vm977, %v1055, %v1054
      %v1057 = vrot.slane %v952, 7
      %v1058 = vrot.slane %v953, 6
      %v1059 = vsel %vm962, %v1058, %v1057
      %v1060 = vrot.slane %v954, 5
      %v1061 = vsel %vm965, %v1060, %v1059
      %v1062 = vrot.slane %v955, 4
      %v1063 = vsel %vm968, %v1062, %v1061
      %v1064 = vrot.slane %v956, 3
      %v1065 = vsel %vm971, %v1064, %v1063
      %v1066 = vrot.slane %v957, 2
      %v1067 = vsel %vm974, %v1066, %v1065
      %v1068 = vrot.slane %v958, 1
      %v1069 = vsel %vm977, %v1068, %v1067
      %v1070 = vpack.c.b16 %v978, %v978
      %v1071 = vpack.c.b16 %v903, %v903
      %v1072 = vpack.c.b16 %v991, %v991
      %v1073 = vpack.c.b16 %v911, %v911
      %v1074 = vpack.c.b16 %v1004, %v1004
      %v1075 = vpack.c.b16 %v919, %v919
      %v1076 = vpack.c.b16 %v1017, %v1017
      %v1077 = vpack.c.b16 %v927, %v927
      %v1078 = vpack.c.b16 %v1030, %v1030
      %v1079 = vpack.c.b16 %v935, %v935
      %v1080 = vpack.c.b16 %v1043, %v1043
      %v1081 = vpack.c.b16 %v943, %v943
      %v1082 = vpack.c.b16 %v1056, %v1056
      %v1083 = vpack.c.b16 %v951, %v951
      %v1084 = vpack.c.b16 %v1069, %v1069
      %v1085 = vpack.c.b16 %v959, %v959
      %s1102 = scalar_lea.vmem [#allocation2], 8
      %vm1103 = vcmask 27648
      %vm1104 = vmand %vm1103, %vm736
      %v1105 = vld [vmem:[%s1102] sm:$0xf]
      %v1106 = vsel %vm1104, %v1070, %v1105
      %1107 = vst [vmem:[%s1102] sm:$0xf] %v1106
      %v1108 = vld [vmem:[%s1102 + $0x4] sm:$0x1]
      %v1109 = vsel %vm705, %v1071, %v1108
      %1110 = vst [vmem:[%s1102 + $0x4] sm:$0x1] %v1109
      %v1111 = vld [vmem:[%s1102 + $0x8] sm:$0xf]
      %v1112 = vsel %vm1104, %v1072, %v1111
      %1113 = vst [vmem:[%s1102 + $0x8] sm:$0xf] %v1112
      %v1114 = vld [vmem:[%s1102 + $0xc] sm:$0x1]
      %v1115 = vsel %vm705, %v1073, %v1114
      %1116 = vst [vmem:[%s1102 + $0xc] sm:$0x1] %v1115
      %v1117 = vld [vmem:[%s1102 + $0x10] sm:$0xf]
      %v1118 = vsel %vm1104, %v1074, %v1117
      %1119 = vst [vmem:[%s1102 + $0x10] sm:$0xf] %v1118
      %v1120 = vld [vmem:[%s1102 + $0x14] sm:$0x1]
      %v1121 = vsel %vm705, %v1075, %v1120
      %1122 = vst [vmem:[%s1102 + $0x14] sm:$0x1] %v1121
      %v1123 = vld [vmem:[%s1102 + $0x18] sm:$0xf]
      %v1124 = vsel %vm1104, %v1076, %v1123
      %1125 = vst [vmem:[%s1102 + $0x18] sm:$0xf] %v1124
      %v1126 = vld [vmem:[%s1102 + $0x1c] sm:$0x1]
      %v1127 = vsel %vm705, %v1077, %v1126
      %1128 = vst [vmem:[%s1102 + $0x1c] sm:$0x1] %v1127
      %v1129 = vld [vmem:[%s1102 + $0x20] sm:$0xf]
      %v1130 = vsel %vm1104, %v1078, %v1129
      %1131 = vst [vmem:[%s1102 + $0x20] sm:$0xf] %v1130
      %v1132 = vld [vmem:[%s1102 + $0x24] sm:$0x1]
      %v1133 = vsel %vm705, %v1079, %v1132
      %1134 = vst [vmem:[%s1102 + $0x24] sm:$0x1] %v1133
      %v1135 = vld [vmem:[%s1102 + $0x28] sm:$0xf]
      %v1136 = vsel %vm1104, %v1080, %v1135
      %1137 = vst [vmem:[%s1102 + $0x28] sm:$0xf] %v1136
      %v1138 = vld [vmem:[%s1102 + $0x2c] sm:$0x1]
      %v1139 = vsel %vm705, %v1081, %v1138
      %1140 = vst [vmem:[%s1102 + $0x2c] sm:$0x1] %v1139
      %v1141 = vld [vmem:[%s1102 + $0x30] sm:$0xf]
      %v1142 = vsel %vm1104, %v1082, %v1141
      %1143 = vst [vmem:[%s1102 + $0x30] sm:$0xf] %v1142
      %v1144 = vld [vmem:[%s1102 + $0x34] sm:$0x1]
      %v1145 = vsel %vm705, %v1083, %v1144
      %1146 = vst [vmem:[%s1102 + $0x34] sm:$0x1] %v1145
      %v1147 = vld [vmem:[%s1102 + $0x38] sm:$0xf]
      %v1148 = vsel %vm1104, %v1084, %v1147
      %1149 = vst [vmem:[%s1102 + $0x38] sm:$0xf] %v1148
      %v1150 = vld [vmem:[%s1102 + $0x3c] sm:$0x1]
      %v1151 = vsel %vm705, %v1085, %v1150
      %1152 = vst [vmem:[%s1102 + $0x3c] sm:$0x1] %v1151
      %v1153 = vld [vmem:[#allocation2] sm:$0xf]
      %v1154 = vld [vmem:[#allocation2 + $0x8] sm:$0xf]
      %v1155 = vld [vmem:[#allocation2 + $0x10] sm:$0xf]
      %v1156 = vld [vmem:[#allocation2 + $0x18] sm:$0xf]
      %v1157 = vld [vmem:[#allocation2 + $0x20] sm:$0xf]
      %v1158 = vld [vmem:[#allocation2 + $0x28] sm:$0xf]
      %v1159 = vld [vmem:[#allocation2 + $0x30] sm:$0xf]
      %v1160 = vld [vmem:[#allocation2 + $0x38] sm:$0xf]
      %v1161 = vld [vmem:[%s1] sm:$0x3]
      %v1162 = vld [vmem:[#allocation2 + $0x4] sm:$0x1]
      %v1163 = vld [vmem:[#allocation2 + $0xc] sm:$0x1]
      %v1164 = vld [vmem:[#allocation2 + $0x14] sm:$0x1]
      %v1165 = vld [vmem:[#allocation2 + $0x1c] sm:$0x1]
      %v1166 = vld [vmem:[#allocation2 + $0x24] sm:$0x1]
      %v1167 = vld [vmem:[#allocation2 + $0x2c] sm:$0x1]
      %v1168 = vld [vmem:[#allocation2 + $0x34] sm:$0x1]
      %v1169 = vld [vmem:[#allocation2 + $0x3c] sm:$0x1]
      %vm1170 = vsmask.f32 3328
      %vm1171 = vsmask.f32 7440
      %vm1172 = vmor %vm1170, %vm1171
      %v1174 = vshrl.u32 %v1153, 16
      %v1176 = vrot.slane %v1174, 4
      %v1177 = vshll.u32 %v1153, 16
      %v1179 = vrot.slane %v1177, 5
      %v1180 = vor.u32 %v1176, %v1179
      %v1181 = vrot.slane %v1180, 4
      %v1183 = vshll.u32 %v1162, 16
      %v1185 = vrot.slane %v1183, 5
      %v1186 = vsel %vm1172, %v1181, %v1185
      %v1188 = vshrl.u32 %v1154, 16
      %v1190 = vrot.slane %v1188, 4
      %v1191 = vshll.u32 %v1154, 16
      %v1193 = vrot.slane %v1191, 5
      %v1194 = vor.u32 %v1190, %v1193
      %v1195 = vrot.slane %v1194, 4
      %v1197 = vshll.u32 %v1163, 16
      %v1199 = vrot.slane %v1197, 5
      %v1200 = vsel %vm1172, %v1195, %v1199
      %v1202 = vshrl.u32 %v1155, 16
      %v1204 = vrot.slane %v1202, 4
      %v1205 = vshll.u32 %v1155, 16
      %v1207 = vrot.slane %v1205, 5
      %v1208 = vor.u32 %v1204, %v1207
      %v1209 = vrot.slane %v1208, 4
      %v1211 = vshll.u32 %v1164, 16
      %v1213 = vrot.slane %v1211, 5
      %v1214 = vsel %vm1172, %v1209, %v1213
      %v1216 = vshrl.u32 %v1156, 16
      %v1218 = vrot.slane %v1216, 4
      %v1219 = vshll.u32 %v1156, 16
      %v1221 = vrot.slane %v1219, 5
      %v1222 = vor.u32 %v1218, %v1221
      %v1223 = vrot.slane %v1222, 4
      %v1225 = vshll.u32 %v1165, 16
      %v1227 = vrot.slane %v1225, 5
      %v1228 = vsel %vm1172, %v1223, %v1227
      %v1230 = vshrl.u32 %v1157, 16
      %v1232 = vrot.slane %v1230, 4
      %v1233 = vshll.u32 %v1157, 16
      %v1235 = vrot.slane %v1233, 5
      %v1236 = vor.u32 %v1232, %v1235
      %v1237 = vrot.slane %v1236, 4
      %v1239 = vshll.u32 %v1166, 16
      %v1241 = vrot.slane %v1239, 5
      %v1242 = vsel %vm1172, %v1237, %v1241
      %v1244 = vshrl.u32 %v1158, 16
      %v1246 = vrot.slane %v1244, 4
      %v1247 = vshll.u32 %v1158, 16
      %v1249 = vrot.slane %v1247, 5
      %v1250 = vor.u32 %v1246, %v1249
      %v1251 = vrot.slane %v1250, 4
      %v1253 = vshll.u32 %v1167, 16
      %v1255 = vrot.slane %v1253, 5
      %v1256 = vsel %vm1172, %v1251, %v1255
      %v1258 = vshrl.u32 %v1159, 16
      %v1260 = vrot.slane %v1258, 4
      %v1261 = vshll.u32 %v1159, 16
      %v1263 = vrot.slane %v1261, 5
      %v1264 = vor.u32 %v1260, %v1263
      %v1265 = vrot.slane %v1264, 4
      %v1267 = vshll.u32 %v1168, 16
      %v1269 = vrot.slane %v1267, 5
      %v1270 = vsel %vm1172, %v1265, %v1269
      %v1272 = vshrl.u32 %v1160, 16
      %v1274 = vrot.slane %v1272, 4
      %v1275 = vshll.u32 %v1160, 16
      %v1277 = vrot.slane %v1275, 5
      %v1278 = vor.u32 %v1274, %v1277
      %v1279 = vrot.slane %v1278, 4
      %v1281 = vshll.u32 %v1169, 16
      %v1283 = vrot.slane %v1281, 5
      %v1284 = vsel %vm1172, %v1279, %v1283
      %s1285 = scalar_lea.vmem %s1, 2
      %v1286 = vld [vmem:[%s1285] sm:$0x3]
      %v1287 = vunpack.c.l.b16 %v1186
      %v1288 = vunpack.c.l.b16 %v1200
      %v1289 = vunpack.c.l.b16 %v1214
      %v1290 = vunpack.c.l.b16 %v1228
      %v1291 = vunpack.c.l.b16 %v1242
      %v1292 = vunpack.c.l.b16 %v1256
      %v1293 = vunpack.c.l.b16 %v1270
      %v1294 = vunpack.c.l.b16 %v1284
      %v1295 = vpack.c.b16 %v1288, %v1287
      %v1296 = vpack.c.b16 %v1290, %v1289
      %v1297 = vpack.c.b16 %v1292, %v1291
      %v1298 = vpack.c.b16 %v1294, %v1293
      %vm1299 = vcmask 31744
      %v1301 = vsel %vm1299, %v1295, 0
      %v1304 = vsel %vm1299, %v1296, 0
      %v1307 = vsel %vm1299, %v1297, 0
      %v1310 = vsel %vm1299, %v1298, 0
      %vm1312 = vcmask 1041408
      %v1314 = vsel %vm1312, %v1286, 0
      %1316 = vmatpush.bf16.msra.mxu0 0
      %1317 = vmatpush.bf16.msra.mxu0 0
      %1318 = vmatpush.bf16.msra.mxu0 0
      %1319 = vmatpush.bf16.msra.mxu0 0
      %1320 = vmatpush.bf16.msra.mxu0 0
      %1321 = vmatpush.bf16.msra.mxu0 0
      %1322 = vmatpush.bf16.msra.mxu0 0
      %1323 = vmatpush.bf16.msra.mxu0 %v1314
      %1324 = vmatmul.bf16.gmra.mxu0 %v1301
      %v1325 = vpop.f32.mrf.mxu0
      %v1326 = vadd.f32 0.0, %v1325
      %v1327 = vpop.f32.mrf.mxu0
      %v1328 = vadd.f32 0.0, %v1327
      %1329 = vmatmul.bf16.gmra.mxu0 %v1304
      %v1330 = vpop.f32.mrf.mxu0
      %v1331 = vadd.f32 0.0, %v1330
      %v1332 = vpop.f32.mrf.mxu0
      %v1333 = vadd.f32 0.0, %v1332
      %1334 = vmatmul.bf16.gmra.mxu0 %v1307
      %v1335 = vpop.f32.mrf.mxu0
      %v1336 = vadd.f32 0.0, %v1335
      %v1337 = vpop.f32.mrf.mxu0
      %v1338 = vadd.f32 0.0, %v1337
      %1339 = vmatmul.bf16.gmra.mxu0 %v1310
      %v1340 = vpop.f32.mrf.mxu0
      %v1341 = vadd.f32 0.0, %v1340
      %v1342 = vpop.f32.mrf.mxu0
      %v1343 = vadd.f32 0.0, %v1342
      %1344 = vdwg.mxu0
      %v1353 = vunpack.c.l.b16 %v1153
      %v1354 = vunpack.c.l.b16 %v1154
      %v1355 = vunpack.c.l.b16 %v1155
      %v1356 = vunpack.c.l.b16 %v1156
      %v1357 = vunpack.c.l.b16 %v1157
      %v1358 = vunpack.c.l.b16 %v1158
      %v1359 = vunpack.c.l.b16 %v1159
      %v1360 = vunpack.c.l.b16 %v1160
      %v1361 = vpack.c.b16 %v1354, %v1353
      %v1362 = vpack.c.b16 %v1356, %v1355
      %v1363 = vpack.c.b16 %v1358, %v1357
      %v1364 = vpack.c.b16 %v1360, %v1359
      %v1366 = vsel %vm1299, %v1361, 0
      %v1369 = vsel %vm1299, %v1362, 0
      %v1372 = vsel %vm1299, %v1363, 0
      %v1375 = vsel %vm1299, %v1364, 0
      %v1378 = vsel %vm1312, %v1161, 0
      %1380 = vmatpush.bf16.msra.mxu0 0
      %1381 = vmatpush.bf16.msra.mxu0 0
      %1382 = vmatpush.bf16.msra.mxu0 0
      %1383 = vmatpush.bf16.msra.mxu0 0
      %1384 = vmatpush.bf16.msra.mxu0 0
      %1385 = vmatpush.bf16.msra.mxu0 0
      %1386 = vmatpush.bf16.msra.mxu0 0
      %1387 = vmatpush.bf16.msra.mxu0 %v1378
      %1388 = vmatmul.bf16.gmra.mxu0 %v1366
      %v1389 = vpop.f32.mrf.mxu0
      %v1390 = vadd.f32 %v1326, %v1389
      %v1391 = vpop.f32.mrf.mxu0
      %v1392 = vadd.f32 %v1328, %v1391
      %1393 = vmatmul.bf16.gmra.mxu0 %v1369
      %v1394 = vpop.f32.mrf.mxu0
      %v1395 = vadd.f32 %v1331, %v1394
      %v1396 = vpop.f32.mrf.mxu0
      %v1397 = vadd.f32 %v1333, %v1396
      %1398 = vmatmul.bf16.gmra.mxu0 %v1372
      %v1399 = vpop.f32.mrf.mxu0
      %v1400 = vadd.f32 %v1336, %v1399
      %v1401 = vpop.f32.mrf.mxu0
      %v1402 = vadd.f32 %v1338, %v1401
      %1403 = vmatmul.bf16.gmra.mxu0 %v1375
      %v1404 = vpop.f32.mrf.mxu0
      %v1405 = vadd.f32 %v1341, %v1404
      %v1406 = vpop.f32.mrf.mxu0
      %v1407 = vadd.f32 %v1343, %v1406
      %1408 = vdwg.mxu0
      %v1409 = vld [vmem:[#allocation2] sm:$0xe]
      %v1410 = vld [vmem:[#allocation2 + $0x8] sm:$0xe]
      %v1411 = vld [vmem:[#allocation2 + $0x10] sm:$0xe]
      %v1412 = vld [vmem:[#allocation2 + $0x18] sm:$0xe]
      %v1413 = vld [vmem:[#allocation2 + $0x20] sm:$0xe]
      %v1414 = vld [vmem:[#allocation2 + $0x28] sm:$0xe]
      %v1415 = vld [vmem:[#allocation2 + $0x30] sm:$0xe]
      %v1416 = vld [vmem:[#allocation2 + $0x38] sm:$0xe]
      %vm1433 = vcmask 1042432
      %vm1434 = vcmask 1046532
      %vm1435 = vmor %vm1433, %vm1434
      %v1436 = vrot.slane %v1409, 5
      %v1437 = vrot.slane %v1436, 4
      %v1438 = vrot.slane %v1162, 5
      %v1439 = vsel %vm1435, %v1437, %v1438
      %v1440 = vrot.slane %v1410, 5
      %v1441 = vrot.slane %v1440, 4
      %v1442 = vrot.slane %v1163, 5
      %v1443 = vsel %vm1435, %v1441, %v1442
      %v1444 = vrot.slane %v1411, 5
      %v1445 = vrot.slane %v1444, 4
      %v1446 = vrot.slane %v1164, 5
      %v1447 = vsel %vm1435, %v1445, %v1446
      %v1448 = vrot.slane %v1412, 5
      %v1449 = vrot.slane %v1448, 4
      %v1450 = vrot.slane %v1165, 5
      %v1451 = vsel %vm1435, %v1449, %v1450
      %v1452 = vrot.slane %v1413, 5
      %v1453 = vrot.slane %v1452, 4
      %v1454 = vrot.slane %v1166, 5
      %v1455 = vsel %vm1435, %v1453, %v1454
      %v1456 = vrot.slane %v1414, 5
      %v1457 = vrot.slane %v1456, 4
      %v1458 = vrot.slane %v1167, 5
      %v1459 = vsel %vm1435, %v1457, %v1458
      %v1460 = vrot.slane %v1415, 5
      %v1461 = vrot.slane %v1460, 4
      %v1462 = vrot.slane %v1168, 5
      %v1463 = vsel %vm1435, %v1461, %v1462
      %v1464 = vrot.slane %v1416, 5
      %v1465 = vrot.slane %v1464, 4
      %v1466 = vrot.slane %v1169, 5
      %v1467 = vsel %vm1435, %v1465, %v1466
      %s1468 = scalar_lea.vmem %s1, 4
      %v1469 = vld [vmem:[%s1468] sm:$0x3]
      %v1470 = vunpack.c.l.b16 %v1439
      %v1471 = vunpack.c.l.b16 %v1443
      %v1472 = vunpack.c.l.b16 %v1447
      %v1473 = vunpack.c.l.b16 %v1451
      %v1474 = vunpack.c.l.b16 %v1455
      %v1475 = vunpack.c.l.b16 %v1459
      %v1476 = vunpack.c.l.b16 %v1463
      %v1477 = vunpack.c.l.b16 %v1467
      %v1478 = vpack.c.b16 %v1471, %v1470
      %v1479 = vpack.c.b16 %v1473, %v1472
      %v1480 = vpack.c.b16 %v1475, %v1474
      %v1481 = vpack.c.b16 %v1477, %v1476
      %v1483 = vsel %vm1299, %v1478, 0
      %v1486 = vsel %vm1299, %v1479, 0
      %v1489 = vsel %vm1299, %v1480, 0
      %v1492 = vsel %vm1299, %v1481, 0
      %v1495 = vsel %vm1312, %v1469, 0
      %1497 = vmatpush.bf16.msra.mxu0 0
      %1498 = vmatpush.bf16.msra.mxu0 0
      %1499 = vmatpush.bf16.msra.mxu0 0
      %1500 = vmatpush.bf16.msra.mxu0 0
      %1501 = vmatpush.bf16.msra.mxu0 0
      %1502 = vmatpush.bf16.msra.mxu0 0
      %1503 = vmatpush.bf16.msra.mxu0 0
      %1504 = vmatpush.bf16.msra.mxu0 %v1495
      %1505 = vmatmul.bf16.gmra.mxu0 %v1483
      %v1506 = vpop.f32.mrf.mxu0
      %v1507 = vadd.f32 0.0, %v1506
      %v1508 = vpop.f32.mrf.mxu0
      %v1509 = vadd.f32 0.0, %v1508
      %1510 = vmatmul.bf16.gmra.mxu0 %v1486
      %v1511 = vpop.f32.mrf.mxu0
      %v1512 = vadd.f32 0.0, %v1511
      %v1513 = vpop.f32.mrf.mxu0
      %v1514 = vadd.f32 0.0, %v1513
      %1515 = vmatmul.bf16.gmra.mxu0 %v1489
      %v1516 = vpop.f32.mrf.mxu0
      %v1517 = vadd.f32 0.0, %v1516
      %v1518 = vpop.f32.mrf.mxu0
      %v1519 = vadd.f32 0.0, %v1518
      %1520 = vmatmul.bf16.gmra.mxu0 %v1492
      %v1521 = vpop.f32.mrf.mxu0
      %v1522 = vadd.f32 0.0, %v1521
      %v1523 = vpop.f32.mrf.mxu0
      %v1524 = vadd.f32 0.0, %v1523
      %1525 = vdwg.mxu0
      %v1526 = vadd.f32 %v1390, %v1507
      %v1527 = vadd.f32 %v1392, %v1509
      %v1528 = vadd.f32 %v1395, %v1512
      %v1529 = vadd.f32 %v1397, %v1514
      %v1530 = vadd.f32 %v1400, %v1517
      %v1531 = vadd.f32 %v1402, %v1519
      %v1532 = vadd.f32 %v1405, %v1522
      %v1533 = vadd.f32 %v1407, %v1524
      %v1534 = vld [vmem:[%s1102] sm:$0xf]
      %v1535 = vld [vmem:[%s1102 + $0x8] sm:$0xf]
      %v1536 = vld [vmem:[%s1102 + $0x10] sm:$0xf]
      %v1537 = vld [vmem:[%s1102 + $0x18] sm:$0xf]
      %v1538 = vld [vmem:[%s1102 + $0x20] sm:$0xf]
      %v1539 = vld [vmem:[%s1102 + $0x28] sm:$0xf]
      %v1540 = vld [vmem:[%s1102 + $0x30] sm:$0xf]
      %v1541 = vld [vmem:[%s1102 + $0x38] sm:$0xf]
      %s1542 = scalar_lea.vmem %s1, 6
      %v1543 = vld [vmem:[%s1542] sm:$0x3]
      %v1552 = vunpack.c.l.b16 %v1534
      %v1553 = vunpack.c.l.b16 %v1535
      %v1554 = vunpack.c.l.b16 %v1536
      %v1555 = vunpack.c.l.b16 %v1537
      %v1556 = vunpack.c.l.b16 %v1538
      %v1557 = vunpack.c.l.b16 %v1539
      %v1558 = vunpack.c.l.b16 %v1540
      %v1559 = vunpack.c.l.b16 %v1541
      %v1560 = vpack.c.b16 %v1553, %v1552
      %v1561 = vpack.c.b16 %v1555, %v1554
      %v1562 = vpack.c.b16 %v1557, %v1556
      %v1563 = vpack.c.b16 %v1559, %v1558
      %v1565 = vsel %vm1299, %v1560, 0
      %v1568 = vsel %vm1299, %v1561, 0
      %v1571 = vsel %vm1299, %v1562, 0
      %v1574 = vsel %vm1299, %v1563, 0
      %v1577 = vsel %vm1312, %v1543, 0
      %1579 = vmatpush.bf16.msra.mxu0 0
      %1580 = vmatpush.bf16.msra.mxu0 0
      %1581 = vmatpush.bf16.msra.mxu0 0
      %1582 = vmatpush.bf16.msra.mxu0 0
      %1583 = vmatpush.bf16.msra.mxu0 0
      %1584 = vmatpush.bf16.msra.mxu0 0
      %1585 = vmatpush.bf16.msra.mxu0 0
      %1586 = vmatpush.bf16.msra.mxu0 %v1577
      %1587 = vmatmul.bf16.gmra.mxu0 %v1565
      %v1588 = vpop.f32.mrf.mxu0
      %v1589 = vadd.f32 0.0, %v1588
      %v1590 = vpop.f32.mrf.mxu0
      %v1591 = vadd.f32 0.0, %v1590
      %1592 = vmatmul.bf16.gmra.mxu0 %v1568
      %v1593 = vpop.f32.mrf.mxu0
      %v1594 = vadd.f32 0.0, %v1593
      %v1595 = vpop.f32.mrf.mxu0
      %v1596 = vadd.f32 0.0, %v1595
      %1597 = vmatmul.bf16.gmra.mxu0 %v1571
      %v1598 = vpop.f32.mrf.mxu0
      %v1599 = vadd.f32 0.0, %v1598
      %v1600 = vpop.f32.mrf.mxu0
      %v1601 = vadd.f32 0.0, %v1600
      %1602 = vmatmul.bf16.gmra.mxu0 %v1574
      %v1603 = vpop.f32.mrf.mxu0
      %v1604 = vadd.f32 0.0, %v1603
      %v1605 = vpop.f32.mrf.mxu0
      %v1606 = vadd.f32 0.0, %v1605
      %1607 = vdwg.mxu0
      %v1608 = vadd.f32 %v1526, %v1589
      %v1609 = vadd.f32 %v1527, %v1591
      %v1610 = vadd.f32 %v1528, %v1594
      %v1611 = vadd.f32 %v1529, %v1596
      %v1612 = vadd.f32 %v1530, %v1599
      %v1613 = vadd.f32 %v1531, %v1601
      %v1614 = vadd.f32 %v1532, %v1604
      %v1615 = vadd.f32 %v1533, %v1606
      %v1616 = vld [vmem:[%s1102] sm:$0xf]
      %v1617 = vld [vmem:[%s1102 + $0x4] sm:$0x1]
      %v1618 = vld [vmem:[%s1102 + $0x8] sm:$0xf]
      %v1619 = vld [vmem:[%s1102 + $0xc] sm:$0x1]
      %v1620 = vld [vmem:[%s1102 + $0x10] sm:$0xf]
      %v1621 = vld [vmem:[%s1102 + $0x14] sm:$0x1]
      %v1622 = vld [vmem:[%s1102 + $0x18] sm:$0xf]
      %v1623 = vld [vmem:[%s1102 + $0x1c] sm:$0x1]
      %v1624 = vld [vmem:[%s1102 + $0x20] sm:$0xf]
      %v1625 = vld [vmem:[%s1102 + $0x24] sm:$0x1]
      %v1626 = vld [vmem:[%s1102 + $0x28] sm:$0xf]
      %v1627 = vld [vmem:[%s1102 + $0x2c] sm:$0x1]
      %v1628 = vld [vmem:[%s1102 + $0x30] sm:$0xf]
      %v1629 = vld [vmem:[%s1102 + $0x34] sm:$0x1]
      %v1630 = vld [vmem:[%s1102 + $0x38] sm:$0xf]
      %v1631 = vld [vmem:[%s1102 + $0x3c] sm:$0x1]
      %v1633 = vshrl.u32 %v1616, 16
      %v1635 = vrot.slane %v1633, 4
      %v1636 = vshll.u32 %v1616, 16
      %v1638 = vrot.slane %v1636, 5
      %v1639 = vor.u32 %v1635, %v1638
      %v1640 = vrot.slane %v1639, 4
      %v1642 = vshll.u32 %v1617, 16
      %v1644 = vrot.slane %v1642, 5
      %v1645 = vsel %vm1172, %v1640, %v1644
      %v1647 = vshrl.u32 %v1618, 16
      %v1649 = vrot.slane %v1647, 4
      %v1650 = vshll.u32 %v1618, 16
      %v1652 = vrot.slane %v1650, 5
      %v1653 = vor.u32 %v1649, %v1652
      %v1654 = vrot.slane %v1653, 4
      %v1656 = vshll.u32 %v1619, 16
      %v1658 = vrot.slane %v1656, 5
      %v1659 = vsel %vm1172, %v1654, %v1658
      %v1661 = vshrl.u32 %v1620, 16
      %v1663 = vrot.slane %v1661, 4
      %v1664 = vshll.u32 %v1620, 16
      %v1666 = vrot.slane %v1664, 5
      %v1667 = vor.u32 %v1663, %v1666
      %v1668 = vrot.slane %v1667, 4
      %v1670 = vshll.u32 %v1621, 16
      %v1672 = vrot.slane %v1670, 5
      %v1673 = vsel %vm1172, %v1668, %v1672
      %v1675 = vshrl.u32 %v1622, 16
      %v1677 = vrot.slane %v1675, 4
      %v1678 = vshll.u32 %v1622, 16
      %v1680 = vrot.slane %v1678, 5
      %v1681 = vor.u32 %v1677, %v1680
      %v1682 = vrot.slane %v1681, 4
      %v1684 = vshll.u32 %v1623, 16
      %v1686 = vrot.slane %v1684, 5
      %v1687 = vsel %vm1172, %v1682, %v1686
      %v1689 = vshrl.u32 %v1624, 16
      %v1691 = vrot.slane %v1689, 4
      %v1692 = vshll.u32 %v1624, 16
      %v1694 = vrot.slane %v1692, 5
      %v1695 = vor.u32 %v1691, %v1694
      %v1696 = vrot.slane %v1695, 4
      %v1698 = vshll.u32 %v1625, 16
      %v1700 = vrot.slane %v1698, 5
      %v1701 = vsel %vm1172, %v1696, %v1700
      %v1703 = vshrl.u32 %v1626, 16
      %v1705 = vrot.slane %v1703, 4
      %v1706 = vshll.u32 %v1626, 16
      %v1708 = vrot.slane %v1706, 5
      %v1709 = vor.u32 %v1705, %v1708
      %v1710 = vrot.slane %v1709, 4
      %v1712 = vshll.u32 %v1627, 16
      %v1714 = vrot.slane %v1712, 5
      %v1715 = vsel %vm1172, %v1710, %v1714
      %v1717 = vshrl.u32 %v1628, 16
      %v1719 = vrot.slane %v1717, 4
      %v1720 = vshll.u32 %v1628, 16
      %v1722 = vrot.slane %v1720, 5
      %v1723 = vor.u32 %v1719, %v1722
      %v1724 = vrot.slane %v1723, 4
      %v1726 = vshll.u32 %v1629, 16
      %v1728 = vrot.slane %v1726, 5
      %v1729 = vsel %vm1172, %v1724, %v1728
      %v1731 = vshrl.u32 %v1630, 16
      %v1733 = vrot.slane %v1731, 4
      %v1734 = vshll.u32 %v1630, 16
      %v1736 = vrot.slane %v1734, 5
      %v1737 = vor.u32 %v1733, %v1736
      %v1738 = vrot.slane %v1737, 4
      %v1740 = vshll.u32 %v1631, 16
      %v1742 = vrot.slane %v1740, 5
      %v1743 = vsel %vm1172, %v1738, %v1742
      %s1744 = scalar_lea.vmem %s1, 8
      %v1745 = vld [vmem:[%s1744] sm:$0x3]
      %v1746 = vunpack.c.l.b16 %v1645
      %v1747 = vunpack.c.l.b16 %v1659
      %v1748 = vunpack.c.l.b16 %v1673
      %v1749 = vunpack.c.l.b16 %v1687
      %v1750 = vunpack.c.l.b16 %v1701
      %v1751 = vunpack.c.l.b16 %v1715
      %v1752 = vunpack.c.l.b16 %v1729
      %v1753 = vunpack.c.l.b16 %v1743
      %v1754 = vpack.c.b16 %v1747, %v1746
      %v1755 = vpack.c.b16 %v1749, %v1748
      %v1756 = vpack.c.b16 %v1751, %v1750
      %v1757 = vpack.c.b16 %v1753, %v1752
      %v1759 = vsel %vm1299, %v1754, 0
      %v1762 = vsel %vm1299, %v1755, 0
      %v1765 = vsel %vm1299, %v1756, 0
      %v1768 = vsel %vm1299, %v1757, 0
      %v1771 = vsel %vm1312, %v1745, 0
      %1773 = vmatpush.bf16.msra.mxu0 0
      %1774 = vmatpush.bf16.msra.mxu0 0
      %1775 = vmatpush.bf16.msra.mxu0 0
      %1776 = vmatpush.bf16.msra.mxu0 0
      %1777 = vmatpush.bf16.msra.mxu0 0
      %1778 = vmatpush.bf16.msra.mxu0 0
      %1779 = vmatpush.bf16.msra.mxu0 0
      %1780 = vmatpush.bf16.msra.mxu0 %v1771
      %1781 = vmatmul.bf16.gmra.mxu0 %v1759
      %v1782 = vpop.f32.mrf.mxu0
      %v1783 = vadd.f32 0.0, %v1782
      %v1784 = vpop.f32.mrf.mxu0
      %v1785 = vadd.f32 0.0, %v1784
      %1786 = vmatmul.bf16.gmra.mxu0 %v1762
      %v1787 = vpop.f32.mrf.mxu0
      %v1788 = vadd.f32 0.0, %v1787
      %v1789 = vpop.f32.mrf.mxu0
      %v1790 = vadd.f32 0.0, %v1789
      %1791 = vmatmul.bf16.gmra.mxu0 %v1765
      %v1792 = vpop.f32.mrf.mxu0
      %v1793 = vadd.f32 0.0, %v1792
      %v1794 = vpop.f32.mrf.mxu0
      %v1795 = vadd.f32 0.0, %v1794
      %1796 = vmatmul.bf16.gmra.mxu0 %v1768
      %v1797 = vpop.f32.mrf.mxu0
      %v1798 = vadd.f32 0.0, %v1797
      %v1799 = vpop.f32.mrf.mxu0
      %v1800 = vadd.f32 0.0, %v1799
      %1801 = vdwg.mxu0
      %v1802 = vadd.f32 %v1608, %v1783
      %v1803 = vadd.f32 %v1609, %v1785
      %v1804 = vadd.f32 %v1610, %v1788
      %v1805 = vadd.f32 %v1611, %v1790
      %v1806 = vadd.f32 %v1612, %v1793
      %v1807 = vadd.f32 %v1613, %v1795
      %v1808 = vadd.f32 %v1614, %v1798
      %v1809 = vadd.f32 %v1615, %v1800
      %v1810 = vld [vmem:[%s1102] sm:$0xe]
      %v1811 = vld [vmem:[%s1102 + $0x8] sm:$0xe]
      %v1812 = vld [vmem:[%s1102 + $0x10] sm:$0xe]
      %v1813 = vld [vmem:[%s1102 + $0x18] sm:$0xe]
      %v1814 = vld [vmem:[%s1102 + $0x20] sm:$0xe]
      %v1815 = vld [vmem:[%s1102 + $0x28] sm:$0xe]
      %v1816 = vld [vmem:[%s1102 + $0x30] sm:$0xe]
      %v1817 = vld [vmem:[%s1102 + $0x38] sm:$0xe]
      %v1834 = vrot.slane %v1810, 5
      %v1835 = vrot.slane %v1834, 4
      %v1836 = vrot.slane %v1617, 5
      %v1837 = vsel %vm1435, %v1835, %v1836
      %v1838 = vrot.slane %v1811, 5
      %v1839 = vrot.slane %v1838, 4
      %v1840 = vrot.slane %v1619, 5
      %v1841 = vsel %vm1435, %v1839, %v1840
      %v1842 = vrot.slane %v1812, 5
      %v1843 = vrot.slane %v1842, 4
      %v1844 = vrot.slane %v1621, 5
      %v1845 = vsel %vm1435, %v1843, %v1844
      %v1846 = vrot.slane %v1813, 5
      %v1847 = vrot.slane %v1846, 4
      %v1848 = vrot.slane %v1623, 5
      %v1849 = vsel %vm1435, %v1847, %v1848
      %v1850 = vrot.slane %v1814, 5
      %v1851 = vrot.slane %v1850, 4
      %v1852 = vrot.slane %v1625, 5
      %v1853 = vsel %vm1435, %v1851, %v1852
      %v1854 = vrot.slane %v1815, 5
      %v1855 = vrot.slane %v1854, 4
      %v1856 = vrot.slane %v1627, 5
      %v1857 = vsel %vm1435, %v1855, %v1856
      %v1858 = vrot.slane %v1816, 5
      %v1859 = vrot.slane %v1858, 4
      %v1860 = vrot.slane %v1629, 5
      %v1861 = vsel %vm1435, %v1859, %v1860
      %v1862 = vrot.slane %v1817, 5
      %v1863 = vrot.slane %v1862, 4
      %v1864 = vrot.slane %v1631, 5
      %v1865 = vsel %vm1435, %v1863, %v1864
      %s1866 = scalar_lea.vmem %s1, 10
      %v1867 = vld [vmem:[%s1866] sm:$0x3]
      %v1868 = vunpack.c.l.b16 %v1837
      %v1869 = vunpack.c.l.b16 %v1841
      %v1870 = vunpack.c.l.b16 %v1845
      %v1871 = vunpack.c.l.b16 %v1849
      %v1872 = vunpack.c.l.b16 %v1853
      %v1873 = vunpack.c.l.b16 %v1857
      %v1874 = vunpack.c.l.b16 %v1861
      %v1875 = vunpack.c.l.b16 %v1865
      %v1876 = vpack.c.b16 %v1869, %v1868
      %v1877 = vpack.c.b16 %v1871, %v1870
      %v1878 = vpack.c.b16 %v1873, %v1872
      %v1879 = vpack.c.b16 %v1875, %v1874
      %v1881 = vsel %vm1299, %v1876, 0
      %v1884 = vsel %vm1299, %v1877, 0
      %v1887 = vsel %vm1299, %v1878, 0
      %v1890 = vsel %vm1299, %v1879, 0
      %v1893 = vsel %vm1312, %v1867, 0
      %1895 = vmatpush.bf16.msra.mxu0 0
      %1896 = vmatpush.bf16.msra.mxu0 0
      %1897 = vmatpush.bf16.msra.mxu0 0
      %1898 = vmatpush.bf16.msra.mxu0 0
      %1899 = vmatpush.bf16.msra.mxu0 0
      %1900 = vmatpush.bf16.msra.mxu0 0
      %1901 = vmatpush.bf16.msra.mxu0 0
      %1902 = vmatpush.bf16.msra.mxu0 %v1893
      %1903 = vmatmul.bf16.gmra.mxu0 %v1881
      %v1904 = vpop.f32.mrf.mxu0
      %v1905 = vadd.f32 0.0, %v1904
      %v1906 = vpop.f32.mrf.mxu0
      %v1907 = vadd.f32 0.0, %v1906
      %1908 = vmatmul.bf16.gmra.mxu0 %v1884
      %v1909 = vpop.f32.mrf.mxu0
      %v1910 = vadd.f32 0.0, %v1909
      %v1911 = vpop.f32.mrf.mxu0
      %v1912 = vadd.f32 0.0, %v1911
      %1913 = vmatmul.bf16.gmra.mxu0 %v1887
      %v1914 = vpop.f32.mrf.mxu0
      %v1915 = vadd.f32 0.0, %v1914
      %v1916 = vpop.f32.mrf.mxu0
      %v1917 = vadd.f32 0.0, %v1916
      %1918 = vmatmul.bf16.gmra.mxu0 %v1890
      %v1919 = vpop.f32.mrf.mxu0
      %v1920 = vadd.f32 0.0, %v1919
      %v1921 = vpop.f32.mrf.mxu0
      %v1922 = vadd.f32 0.0, %v1921
      %1923 = vdwg.mxu0
      %v1924 = vadd.f32 %v1802, %v1905
      %v1925 = vadd.f32 %v1803, %v1907
      %v1926 = vadd.f32 %v1804, %v1910
      %v1927 = vadd.f32 %v1805, %v1912
      %v1928 = vadd.f32 %v1806, %v1915
      %v1929 = vadd.f32 %v1807, %v1917
      %v1930 = vadd.f32 %v1808, %v1920
      %v1931 = vadd.f32 %v1809, %v1922
      %s1932 = scalar_lea.vmem [#allocation2], 16
      %v1933 = vld [vmem:[%s1932] sm:$0xf]
      %v1934 = vld [vmem:[%s1932 + $0x8] sm:$0xf]
      %v1935 = vld [vmem:[%s1932 + $0x10] sm:$0xf]
      %v1936 = vld [vmem:[%s1932 + $0x18] sm:$0xf]
      %v1937 = vld [vmem:[%s1932 + $0x20] sm:$0xf]
      %v1938 = vld [vmem:[%s1932 + $0x28] sm:$0xf]
      %v1939 = vld [vmem:[%s1932 + $0x30] sm:$0xf]
      %v1940 = vld [vmem:[%s1932 + $0x38] sm:$0xf]
      %s1941 = scalar_lea.vmem %s1, 12
      %v1942 = vld [vmem:[%s1941] sm:$0x3]
      %v1951 = vunpack.c.l.b16 %v1933
      %v1952 = vunpack.c.l.b16 %v1934
      %v1953 = vunpack.c.l.b16 %v1935
      %v1954 = vunpack.c.l.b16 %v1936
      %v1955 = vunpack.c.l.b16 %v1937
      %v1956 = vunpack.c.l.b16 %v1938
      %v1957 = vunpack.c.l.b16 %v1939
      %v1958 = vunpack.c.l.b16 %v1940
      %v1959 = vpack.c.b16 %v1952, %v1951
      %v1960 = vpack.c.b16 %v1954, %v1953
      %v1961 = vpack.c.b16 %v1956, %v1955
      %v1962 = vpack.c.b16 %v1958, %v1957
      %v1964 = vsel %vm1299, %v1959, 0
      %v1967 = vsel %vm1299, %v1960, 0
      %v1970 = vsel %vm1299, %v1961, 0
      %v1973 = vsel %vm1299, %v1962, 0
      %v1976 = vsel %vm1312, %v1942, 0
      %1978 = vmatpush.bf16.msra.mxu0 0
      %1979 = vmatpush.bf16.msra.mxu0 0
      %1980 = vmatpush.bf16.msra.mxu0 0
      %1981 = vmatpush.bf16.msra.mxu0 0
      %1982 = vmatpush.bf16.msra.mxu0 0
      %1983 = vmatpush.bf16.msra.mxu0 0
      %1984 = vmatpush.bf16.msra.mxu0 0
      %1985 = vmatpush.bf16.msra.mxu0 %v1976
      %1986 = vmatmul.bf16.gmra.mxu0 %v1964
      %v1987 = vpop.f32.mrf.mxu0
      %v1988 = vadd.f32 0.0, %v1987
      %v1989 = vpop.f32.mrf.mxu0
      %v1990 = vadd.f32 0.0, %v1989
      %1991 = vmatmul.bf16.gmra.mxu0 %v1967
      %v1992 = vpop.f32.mrf.mxu0
      %v1993 = vadd.f32 0.0, %v1992
      %v1994 = vpop.f32.mrf.mxu0
      %v1995 = vadd.f32 0.0, %v1994
      %1996 = vmatmul.bf16.gmra.mxu0 %v1970
      %v1997 = vpop.f32.mrf.mxu0
      %v1998 = vadd.f32 0.0, %v1997
      %v1999 = vpop.f32.mrf.mxu0
      %v2000 = vadd.f32 0.0, %v1999
      %2001 = vmatmul.bf16.gmra.mxu0 %v1973
      %v2002 = vpop.f32.mrf.mxu0
      %v2003 = vadd.f32 0.0, %v2002
      %v2004 = vpop.f32.mrf.mxu0
      %v2005 = vadd.f32 0.0, %v2004
      %2006 = vdwg.mxu0
      %v2007 = vadd.f32 %v1924, %v1988
      %v2008 = vadd.f32 %v1925, %v1990
      %v2009 = vadd.f32 %v1926, %v1993
      %v2010 = vadd.f32 %v1927, %v1995
      %v2011 = vadd.f32 %v1928, %v1998
      %v2012 = vadd.f32 %v1929, %v2000
      %v2013 = vadd.f32 %v1930, %v2003
      %v2014 = vadd.f32 %v1931, %v2005
      %v2015 = vld [vmem:[%s1932] sm:$0xf]
      %v2016 = vld [vmem:[%s1932 + $0x4] sm:$0x1]
      %v2017 = vld [vmem:[%s1932 + $0x8] sm:$0xf]
      %v2018 = vld [vmem:[%s1932 + $0xc] sm:$0x1]
      %v2019 = vld [vmem:[%s1932 + $0x10] sm:$0xf]
      %v2020 = vld [vmem:[%s1932 + $0x14] sm:$0x1]
      %v2021 = vld [vmem:[%s1932 + $0x18] sm:$0xf]
      %v2022 = vld [vmem:[%s1932 + $0x1c] sm:$0x1]
      %v2023 = vld [vmem:[%s1932 + $0x20] sm:$0xf]
      %v2024 = vld [vmem:[%s1932 + $0x24] sm:$0x1]
      %v2025 = vld [vmem:[%s1932 + $0x28] sm:$0xf]
      %v2026 = vld [vmem:[%s1932 + $0x2c] sm:$0x1]
      %v2027 = vld [vmem:[%s1932 + $0x30] sm:$0xf]
      %v2028 = vld [vmem:[%s1932 + $0x34] sm:$0x1]
      %v2029 = vld [vmem:[%s1932 + $0x38] sm:$0xf]
      %v2030 = vld [vmem:[%s1932 + $0x3c] sm:$0x1]
      %v2032 = vshrl.u32 %v2015, 16
      %v2034 = vrot.slane %v2032, 4
      %v2035 = vshll.u32 %v2015, 16
      %v2037 = vrot.slane %v2035, 5
      %v2038 = vor.u32 %v2034, %v2037
      %v2039 = vrot.slane %v2038, 4
      %v2041 = vshll.u32 %v2016, 16
      %v2043 = vrot.slane %v2041, 5
      %v2044 = vsel %vm1172, %v2039, %v2043
      %v2046 = vshrl.u32 %v2017, 16
      %v2048 = vrot.slane %v2046, 4
      %v2049 = vshll.u32 %v2017, 16
      %v2051 = vrot.slane %v2049, 5
      %v2052 = vor.u32 %v2048, %v2051
      %v2053 = vrot.slane %v2052, 4
      %v2055 = vshll.u32 %v2018, 16
      %v2057 = vrot.slane %v2055, 5
      %v2058 = vsel %vm1172, %v2053, %v2057
      %v2060 = vshrl.u32 %v2019, 16
      %v2062 = vrot.slane %v2060, 4
      %v2063 = vshll.u32 %v2019, 16
      %v2065 = vrot.slane %v2063, 5
      %v2066 = vor.u32 %v2062, %v2065
      %v2067 = vrot.slane %v2066, 4
      %v2069 = vshll.u32 %v2020, 16
      %v2071 = vrot.slane %v2069, 5
      %v2072 = vsel %vm1172, %v2067, %v2071
      %v2074 = vshrl.u32 %v2021, 16
      %v2076 = vrot.slane %v2074, 4
      %v2077 = vshll.u32 %v2021, 16
      %v2079 = vrot.slane %v2077, 5
      %v2080 = vor.u32 %v2076, %v2079
      %v2081 = vrot.slane %v2080, 4
      %v2083 = vshll.u32 %v2022, 16
      %v2085 = vrot.slane %v2083, 5
      %v2086 = vsel %vm1172, %v2081, %v2085
      %v2088 = vshrl.u32 %v2023, 16
      %v2090 = vrot.slane %v2088, 4
      %v2091 = vshll.u32 %v2023, 16
      %v2093 = vrot.slane %v2091, 5
      %v2094 = vor.u32 %v2090, %v2093
      %v2095 = vrot.slane %v2094, 4
      %v2097 = vshll.u32 %v2024, 16
      %v2099 = vrot.slane %v2097, 5
      %v2100 = vsel %vm1172, %v2095, %v2099
      %v2102 = vshrl.u32 %v2025, 16
      %v2104 = vrot.slane %v2102, 4
      %v2105 = vshll.u32 %v2025, 16
      %v2107 = vrot.slane %v2105, 5
      %v2108 = vor.u32 %v2104, %v2107
      %v2109 = vrot.slane %v2108, 4
      %v2111 = vshll.u32 %v2026, 16
      %v2113 = vrot.slane %v2111, 5
      %v2114 = vsel %vm1172, %v2109, %v2113
      %v2116 = vshrl.u32 %v2027, 16
      %v2118 = vrot.slane %v2116, 4
      %v2119 = vshll.u32 %v2027, 16
      %v2121 = vrot.slane %v2119, 5
      %v2122 = vor.u32 %v2118, %v2121
      %v2123 = vrot.slane %v2122, 4
      %v2125 = vshll.u32 %v2028, 16
      %v2127 = vrot.slane %v2125, 5
      %v2128 = vsel %vm1172, %v2123, %v2127
      %v2130 = vshrl.u32 %v2029, 16
      %v2132 = vrot.slane %v2130, 4
      %v2133 = vshll.u32 %v2029, 16
      %v2135 = vrot.slane %v2133, 5
      %v2136 = vor.u32 %v2132, %v2135
      %v2137 = vrot.slane %v2136, 4
      %v2139 = vshll.u32 %v2030, 16
      %v2141 = vrot.slane %v2139, 5
      %v2142 = vsel %vm1172, %v2137, %v2141
      %s2143 = scalar_lea.vmem %s1, 14
      %v2144 = vld [vmem:[%s2143] sm:$0x3]
      %v2145 = vunpack.c.l.b16 %v2044
      %v2146 = vunpack.c.l.b16 %v2058
      %v2147 = vunpack.c.l.b16 %v2072
      %v2148 = vunpack.c.l.b16 %v2086
      %v2149 = vunpack.c.l.b16 %v2100
      %v2150 = vunpack.c.l.b16 %v2114
      %v2151 = vunpack.c.l.b16 %v2128
      %v2152 = vunpack.c.l.b16 %v2142
      %v2153 = vpack.c.b16 %v2146, %v2145
      %v2154 = vpack.c.b16 %v2148, %v2147
      %v2155 = vpack.c.b16 %v2150, %v2149
      %v2156 = vpack.c.b16 %v2152, %v2151
      %v2158 = vsel %vm1299, %v2153, 0
      %v2161 = vsel %vm1299, %v2154, 0
      %v2164 = vsel %vm1299, %v2155, 0
      %v2167 = vsel %vm1299, %v2156, 0
      %v2170 = vsel %vm1312, %v2144, 0
      %2172 = vmatpush.bf16.msra.mxu0 0
      %2173 = vmatpush.bf16.msra.mxu0 0
      %2174 = vmatpush.bf16.msra.mxu0 0
      %2175 = vmatpush.bf16.msra.mxu0 0
      %2176 = vmatpush.bf16.msra.mxu0 0
      %2177 = vmatpush.bf16.msra.mxu0 0
      %2178 = vmatpush.bf16.msra.mxu0 0
      %2179 = vmatpush.bf16.msra.mxu0 %v2170
      %2180 = vmatmul.bf16.gmra.mxu0 %v2158
      %v2181 = vpop.f32.mrf.mxu0
      %v2182 = vadd.f32 0.0, %v2181
      %v2183 = vpop.f32.mrf.mxu0
      %v2184 = vadd.f32 0.0, %v2183
      %2185 = vmatmul.bf16.gmra.mxu0 %v2161
      %v2186 = vpop.f32.mrf.mxu0
      %v2187 = vadd.f32 0.0, %v2186
      %v2188 = vpop.f32.mrf.mxu0
      %v2189 = vadd.f32 0.0, %v2188
      %2190 = vmatmul.bf16.gmra.mxu0 %v2164
      %v2191 = vpop.f32.mrf.mxu0
      %v2192 = vadd.f32 0.0, %v2191
      %v2193 = vpop.f32.mrf.mxu0
      %v2194 = vadd.f32 0.0, %v2193
      %2195 = vmatmul.bf16.gmra.mxu0 %v2167
      %v2196 = vpop.f32.mrf.mxu0
      %v2197 = vadd.f32 0.0, %v2196
      %v2198 = vpop.f32.mrf.mxu0
      %v2199 = vadd.f32 0.0, %v2198
      %2200 = vdwg.mxu0
      %v2201 = vadd.f32 %v2007, %v2182
      %v2202 = vadd.f32 %v2008, %v2184
      %v2203 = vadd.f32 %v2009, %v2187
      %v2204 = vadd.f32 %v2010, %v2189
      %v2205 = vadd.f32 %v2011, %v2192
      %v2206 = vadd.f32 %v2012, %v2194
      %v2207 = vadd.f32 %v2013, %v2197
      %v2208 = vadd.f32 %v2014, %v2199
      %v2209 = vld [vmem:[%s1932] sm:$0xe]
      %v2210 = vld [vmem:[%s1932 + $0x8] sm:$0xe]
      %v2211 = vld [vmem:[%s1932 + $0x10] sm:$0xe]
      %v2212 = vld [vmem:[%s1932 + $0x18] sm:$0xe]
      %v2213 = vld [vmem:[%s1932 + $0x20] sm:$0xe]
      %v2214 = vld [vmem:[%s1932 + $0x28] sm:$0xe]
      %v2215 = vld [vmem:[%s1932 + $0x30] sm:$0xe]
      %v2216 = vld [vmem:[%s1932 + $0x38] sm:$0xe]
      %v2233 = vrot.slane %v2209, 5
      %v2234 = vrot.slane %v2233, 4
      %v2235 = vrot.slane %v2016, 5
      %v2236 = vsel %vm1435, %v2234, %v2235
      %v2237 = vrot.slane %v2210, 5
      %v2238 = vrot.slane %v2237, 4
      %v2239 = vrot.slane %v2018, 5
      %v2240 = vsel %vm1435, %v2238, %v2239
      %v2241 = vrot.slane %v2211, 5
      %v2242 = vrot.slane %v2241, 4
      %v2243 = vrot.slane %v2020, 5
      %v2244 = vsel %vm1435, %v2242, %v2243
      %v2245 = vrot.slane %v2212, 5
      %v2246 = vrot.slane %v2245, 4
      %v2247 = vrot.slane %v2022, 5
      %v2248 = vsel %vm1435, %v2246, %v2247
      %v2249 = vrot.slane %v2213, 5
      %v2250 = vrot.slane %v2249, 4
      %v2251 = vrot.slane %v2024, 5
      %v2252 = vsel %vm1435, %v2250, %v2251
      %v2253 = vrot.slane %v2214, 5
      %v2254 = vrot.slane %v2253, 4
      %v2255 = vrot.slane %v2026, 5
      %v2256 = vsel %vm1435, %v2254, %v2255
      %v2257 = vrot.slane %v2215, 5
      %v2258 = vrot.slane %v2257, 4
      %v2259 = vrot.slane %v2028, 5
      %v2260 = vsel %vm1435, %v2258, %v2259
      %v2261 = vrot.slane %v2216, 5
      %v2262 = vrot.slane %v2261, 4
      %v2263 = vrot.slane %v2030, 5
      %v2264 = vsel %vm1435, %v2262, %v2263
      %s2265 = scalar_lea.vmem %s1, 16
      %v2266 = vld [vmem:[%s2265] sm:$0x3]
      %v2267 = vunpack.c.l.b16 %v2236
      %v2268 = vunpack.c.l.b16 %v2240
      %v2269 = vunpack.c.l.b16 %v2244
      %v2270 = vunpack.c.l.b16 %v2248
      %v2271 = vunpack.c.l.b16 %v2252
      %v2272 = vunpack.c.l.b16 %v2256
      %v2273 = vunpack.c.l.b16 %v2260
      %v2274 = vunpack.c.l.b16 %v2264
      %v2275 = vpack.c.b16 %v2268, %v2267
      %v2276 = vpack.c.b16 %v2270, %v2269
      %v2277 = vpack.c.b16 %v2272, %v2271
      %v2278 = vpack.c.b16 %v2274, %v2273
      %v2280 = vsel %vm1299, %v2275, 0
      %v2283 = vsel %vm1299, %v2276, 0
      %v2286 = vsel %vm1299, %v2277, 0
      %v2289 = vsel %vm1299, %v2278, 0
      %v2292 = vsel %vm1312, %v2266, 0
      %2294 = vmatpush.bf16.msra.mxu0 0
      %2295 = vmatpush.bf16.msra.mxu0 0
      %2296 = vmatpush.bf16.msra.mxu0 0
      %2297 = vmatpush.bf16.msra.mxu0 0
      %2298 = vmatpush.bf16.msra.mxu0 0
      %2299 = vmatpush.bf16.msra.mxu0 0
      %2300 = vmatpush.bf16.msra.mxu0 0
      %2301 = vmatpush.bf16.msra.mxu0 %v2292
      %2302 = vmatmul.bf16.gmra.mxu0 %v2280
      %v2303 = vpop.f32.mrf.mxu0
      %v2304 = vadd.f32 0.0, %v2303
      %v2305 = vpop.f32.mrf.mxu0
      %v2306 = vadd.f32 0.0, %v2305
      %2307 = vmatmul.bf16.gmra.mxu0 %v2283
      %v2308 = vpop.f32.mrf.mxu0
      %v2309 = vadd.f32 0.0, %v2308
      %v2310 = vpop.f32.mrf.mxu0
      %v2311 = vadd.f32 0.0, %v2310
      %2312 = vmatmul.bf16.gmra.mxu0 %v2286
      %v2313 = vpop.f32.mrf.mxu0
      %v2314 = vadd.f32 0.0, %v2313
      %v2315 = vpop.f32.mrf.mxu0
      %v2316 = vadd.f32 0.0, %v2315
      %2317 = vmatmul.bf16.gmra.mxu0 %v2289
      %v2318 = vpop.f32.mrf.mxu0
      %v2319 = vadd.f32 0.0, %v2318
      %v2320 = vpop.f32.mrf.mxu0
      %v2321 = vadd.f32 0.0, %v2320
      %2322 = vdwg.mxu0
      %v2323 = vadd.f32 %v2201, %v2304
      %v2324 = vadd.f32 %v2202, %v2306
      %v2325 = vadd.f32 %v2203, %v2309
      %v2326 = vadd.f32 %v2204, %v2311
      %v2327 = vadd.f32 %v2205, %v2314
      %v2328 = vadd.f32 %v2206, %v2316
      %v2329 = vadd.f32 %v2207, %v2319
      %v2330 = vadd.f32 %v2208, %v2321
      %v2331 = vld [vmem:[%s2] sm:$0x1]
      %v2333 = vperm.slane %v2331, 0
      %v2335 = vmul.f32 %v2323, %v2333
      %v2336 = vmul.f32 %v2324, %v2333
      %v2337 = vmul.f32 %v2325, %v2333
      %v2338 = vmul.f32 %v2326, %v2333
      %v2339 = vmul.f32 %v2327, %v2333
      %v2340 = vmul.f32 %v2328, %v2333
      %v2341 = vmul.f32 %v2329, %v2333
      %v2342 = vmul.f32 %v2330, %v2333
      %v2343 = vld [vmem:[%s3] sm:$0x1]
      %v2345 = vperm.slane %v2343, 0
      %v2347 = vadd.f32 %v2335, %v2345
      %v2348 = vadd.f32 %v2336, %v2345
      %v2349 = vadd.f32 %v2337, %v2345
      %v2350 = vadd.f32 %v2338, %v2345
      %v2351 = vadd.f32 %v2339, %v2345
      %v2352 = vadd.f32 %v2340, %v2345
      %v2353 = vadd.f32 %v2341, %v2345
      %v2354 = vadd.f32 %v2342, %v2345
      %v2355 = vmax.f32 %v2347, 0.0
      %v2356 = vmax.f32 %v2348, 0.0
      %v2357 = vmax.f32 %v2349, 0.0
      %v2358 = vmax.f32 %v2350, 0.0
      %v2359 = vmax.f32 %v2351, 0.0
      %v2360 = vmax.f32 %v2352, 0.0
      %v2361 = vmax.f32 %v2353, 0.0
      %v2362 = vmax.f32 %v2354, 0.0
      %vm2363 = vcmask 60416
      %2364 = vst.msk [vmem:[#allocation3] sm:$0xf] %vm2363, 0
      %2365 = vst.msk [vmem:[#allocation3 + $0x4] sm:$0xf] %vm2363, 0
      %s2366 = scalar_lea.vmem [#allocation3], 72
      %2367 = vst.msk [vmem:[%s2366] sm:$0xf] %vm2363, 0
      %2368 = vst.msk [vmem:[%s2366 + $0x4] sm:$0xf] %vm2363, 0
      %vm2369 = vcmask 57344
      %vm2370 = vmand %vm2369, %vm704
      %v2371 = vld [vmem:[#allocation3] sm:$0x1]
      %v2372 = vsel %vm2370, 0, %v2371
      %2373 = vst [vmem:[#allocation3] sm:$0x1] %v2372
      %v2374 = vld [vmem:[#allocation3 + $0x8] sm:$0x1]
      %v2375 = vsel %vm2370, 0, %v2374
      %2376 = vst [vmem:[#allocation3 + $0x8] sm:$0x1] %v2375
      %v2377 = vld [vmem:[#allocation3 + $0x10] sm:$0x1]
      %v2378 = vsel %vm2370, 0, %v2377
      %2379 = vst [vmem:[#allocation3 + $0x10] sm:$0x1] %v2378
      %v2380 = vld [vmem:[#allocation3 + $0x18] sm:$0x1]
      %v2381 = vsel %vm2370, 0, %v2380
      %2382 = vst [vmem:[#allocation3 + $0x18] sm:$0x1] %v2381
      %v2383 = vld [vmem:[#allocation3 + $0x20] sm:$0x1]
      %v2384 = vsel %vm2370, 0, %v2383
      %2385 = vst [vmem:[#allocation3 + $0x20] sm:$0x1] %v2384
      %v2386 = vld [vmem:[#allocation3 + $0x28] sm:$0x1]
      %v2387 = vsel %vm2370, 0, %v2386
      %2388 = vst [vmem:[#allocation3 + $0x28] sm:$0x1] %v2387
      %v2389 = vld [vmem:[#allocation3 + $0x30] sm:$0x1]
      %v2390 = vsel %vm2370, 0, %v2389
      %2391 = vst [vmem:[#allocation3 + $0x30] sm:$0x1] %v2390
      %v2392 = vld [vmem:[#allocation3 + $0x38] sm:$0x1]
      %v2393 = vsel %vm2370, 0, %v2392
      %2394 = vst [vmem:[#allocation3 + $0x38] sm:$0x1] %v2393
      %v2395 = vld [vmem:[#allocation3 + $0x40] sm:$0x1]
      %v2396 = vsel %vm2370, 0, %v2395
      %2397 = vst [vmem:[#allocation3 + $0x40] sm:$0x1] %v2396
      %v2398 = vld [vmem:[#allocation3 + $0x48] sm:$0x1]
      %v2399 = vsel %vm2370, 0, %v2398
      %2400 = vst [vmem:[#allocation3 + $0x48] sm:$0x1] %v2399
      %vm2401 = vmand %vm2369, %vm736
      %v2402 = vld [vmem:[#allocation3 + $0x4] sm:$0x1]
      %v2403 = vsel %vm2401, 0, %v2402
      %2404 = vst [vmem:[#allocation3 + $0x4] sm:$0x1] %v2403
      %v2405 = vld [vmem:[#allocation3 + $0xc] sm:$0x1]
      %v2406 = vsel %vm2401, 0, %v2405
      %2407 = vst [vmem:[#allocation3 + $0xc] sm:$0x1] %v2406
      %v2408 = vld [vmem:[#allocation3 + $0x14] sm:$0x1]
      %v2409 = vsel %vm2401, 0, %v2408
      %2410 = vst [vmem:[#allocation3 + $0x14] sm:$0x1] %v2409
      %v2411 = vld [vmem:[#allocation3 + $0x1c] sm:$0x1]
      %v2412 = vsel %vm2401, 0, %v2411
      %2413 = vst [vmem:[#allocation3 + $0x1c] sm:$0x1] %v2412
      %v2414 = vld [vmem:[#allocation3 + $0x24] sm:$0x1]
      %v2415 = vsel %vm2401, 0, %v2414
      %2416 = vst [vmem:[#allocation3 + $0x24] sm:$0x1] %v2415
      %v2417 = vld [vmem:[#allocation3 + $0x2c] sm:$0x1]
      %v2418 = vsel %vm2401, 0, %v2417
      %2419 = vst [vmem:[#allocation3 + $0x2c] sm:$0x1] %v2418
      %v2420 = vld [vmem:[#allocation3 + $0x34] sm:$0x1]
      %v2421 = vsel %vm2401, 0, %v2420
      %2422 = vst [vmem:[#allocation3 + $0x34] sm:$0x1] %v2421
      %v2423 = vld [vmem:[#allocation3 + $0x3c] sm:$0x1]
      %v2424 = vsel %vm2401, 0, %v2423
      %2425 = vst [vmem:[#allocation3 + $0x3c] sm:$0x1] %v2424
      %v2426 = vld [vmem:[#allocation3 + $0x44] sm:$0x1]
      %v2427 = vsel %vm2401, 0, %v2426
      %2428 = vst [vmem:[#allocation3 + $0x44] sm:$0x1] %v2427
      %v2429 = vld [vmem:[#allocation3 + $0x4c] sm:$0x1]
      %v2430 = vsel %vm2401, 0, %v2429
      %2431 = vst [vmem:[#allocation3 + $0x4c] sm:$0x1] %v2430
      %v2432 = vpack.c.bf16 %v2355, %v2355
      %v2433 = vpack.c.bf16 %v2356, %v2356
      %v2434 = vpack.c.bf16 %v2357, %v2357
      %v2435 = vpack.c.bf16 %v2358, %v2358
      %v2436 = vpack.c.bf16 %v2359, %v2359
      %v2437 = vpack.c.bf16 %v2360, %v2360
      %v2438 = vpack.c.bf16 %v2361, %v2361
      %v2439 = vpack.c.bf16 %v2362, %v2362
      %v2441 = vshrl.u32 %v2432, 16
      %v2443 = vrot.slane %v2441, 7
      %v2444 = vshll.u32 %v2432, 16
      %v2446 = vor.u32 %v2443, %v2444
      %v2447 = vrot.slane %v2443, 4
      %v2449 = vshrl.u32 %v2433, 16
      %v2451 = vrot.slane %v2449, 7
      %v2452 = vshll.u32 %v2433, 16
      %v2454 = vor.u32 %v2451, %v2452
      %v2455 = vrot.slane %v2451, 4
      %v2457 = vshrl.u32 %v2434, 16
      %v2459 = vrot.slane %v2457, 7
      %v2460 = vshll.u32 %v2434, 16
      %v2462 = vor.u32 %v2459, %v2460
      %v2463 = vrot.slane %v2459, 4
      %v2465 = vshrl.u32 %v2435, 16
      %v2467 = vrot.slane %v2465, 7
      %v2468 = vshll.u32 %v2435, 16
      %v2470 = vor.u32 %v2467, %v2468
      %v2471 = vrot.slane %v2467, 4
      %v2473 = vshrl.u32 %v2436, 16
      %v2475 = vrot.slane %v2473, 7
      %v2476 = vshll.u32 %v2436, 16
      %v2478 = vor.u32 %v2475, %v2476
      %v2479 = vrot.slane %v2475, 4
      %v2481 = vshrl.u32 %v2437, 16
      %v2483 = vrot.slane %v2481, 7
      %v2484 = vshll.u32 %v2437, 16
      %v2486 = vor.u32 %v2483, %v2484
      %v2487 = vrot.slane %v2483, 4
      %v2489 = vshrl.u32 %v2438, 16
      %v2491 = vrot.slane %v2489, 7
      %v2492 = vshll.u32 %v2438, 16
      %v2494 = vor.u32 %v2491, %v2492
      %v2495 = vrot.slane %v2491, 4
      %v2497 = vshrl.u32 %v2439, 16
      %v2499 = vrot.slane %v2497, 7
      %v2500 = vshll.u32 %v2439, 16
      %v2502 = vor.u32 %v2499, %v2500
      %v2503 = vrot.slane %v2499, 4
      %s2520 = scalar_lea.vmem [#allocation3], 8
      %vm2521 = vcmask 60416
      %vm2522 = vmand %vm2521, %vm736
      %v2523 = vld [vmem:[%s2520] sm:$0xf]
      %v2524 = vsel %vm2522, %v2446, %v2523
      %2525 = vst [vmem:[%s2520] sm:$0xf] %v2524
      %v2526 = vld [vmem:[%s2520 + $0x4] sm:$0x1]
      %v2527 = vsel %vm2370, %v2447, %v2526
      %2528 = vst [vmem:[%s2520 + $0x4] sm:$0x1] %v2527
      %v2529 = vld [vmem:[%s2520 + $0x8] sm:$0xf]
      %v2530 = vsel %vm2522, %v2454, %v2529
      %2531 = vst [vmem:[%s2520 + $0x8] sm:$0xf] %v2530
      %v2532 = vld [vmem:[%s2520 + $0xc] sm:$0x1]
      %v2533 = vsel %vm2370, %v2455, %v2532
      %2534 = vst [vmem:[%s2520 + $0xc] sm:$0x1] %v2533
      %v2535 = vld [vmem:[%s2520 + $0x10] sm:$0xf]
      %v2536 = vsel %vm2522, %v2462, %v2535
      %2537 = vst [vmem:[%s2520 + $0x10] sm:$0xf] %v2536
      %v2538 = vld [vmem:[%s2520 + $0x14] sm:$0x1]
      %v2539 = vsel %vm2370, %v2463, %v2538
      %2540 = vst [vmem:[%s2520 + $0x14] sm:$0x1] %v2539
      %v2541 = vld [vmem:[%s2520 + $0x18] sm:$0xf]
      %v2542 = vsel %vm2522, %v2470, %v2541
      %2543 = vst [vmem:[%s2520 + $0x18] sm:$0xf] %v2542
      %v2544 = vld [vmem:[%s2520 + $0x1c] sm:$0x1]
      %v2545 = vsel %vm2370, %v2471, %v2544
      %2546 = vst [vmem:[%s2520 + $0x1c] sm:$0x1] %v2545
      %v2547 = vld [vmem:[%s2520 + $0x20] sm:$0xf]
      %v2548 = vsel %vm2522, %v2478, %v2547
      %2549 = vst [vmem:[%s2520 + $0x20] sm:$0xf] %v2548
      %v2550 = vld [vmem:[%s2520 + $0x24] sm:$0x1]
      %v2551 = vsel %vm2370, %v2479, %v2550
      %2552 = vst [vmem:[%s2520 + $0x24] sm:$0x1] %v2551
      %v2553 = vld [vmem:[%s2520 + $0x28] sm:$0xf]
      %v2554 = vsel %vm2522, %v2486, %v2553
      %2555 = vst [vmem:[%s2520 + $0x28] sm:$0xf] %v2554
      %v2556 = vld [vmem:[%s2520 + $0x2c] sm:$0x1]
      %v2557 = vsel %vm2370, %v2487, %v2556
      %2558 = vst [vmem:[%s2520 + $0x2c] sm:$0x1] %v2557
      %v2559 = vld [vmem:[%s2520 + $0x30] sm:$0xf]
      %v2560 = vsel %vm2522, %v2494, %v2559
      %2561 = vst [vmem:[%s2520 + $0x30] sm:$0xf] %v2560
      %v2562 = vld [vmem:[%s2520 + $0x34] sm:$0x1]
      %v2563 = vsel %vm2370, %v2495, %v2562
      %2564 = vst [vmem:[%s2520 + $0x34] sm:$0x1] %v2563
      %v2565 = vld [vmem:[%s2520 + $0x38] sm:$0xf]
      %v2566 = vsel %vm2522, %v2502, %v2565
      %2567 = vst [vmem:[%s2520 + $0x38] sm:$0xf] %v2566
      %v2568 = vld [vmem:[%s2520 + $0x3c] sm:$0x1]
      %v2569 = vsel %vm2370, %v2503, %v2568
      %2570 = vst [vmem:[%s2520 + $0x3c] sm:$0x1] %v2569
      %v2571 = vld [vmem:[#allocation3] sm:$0xf]
      %v2572 = vld [vmem:[#allocation3 + $0x8] sm:$0xf]
      %v2573 = vld [vmem:[#allocation3 + $0x10] sm:$0xf]
      %v2574 = vld [vmem:[#allocation3 + $0x18] sm:$0xf]
      %v2575 = vld [vmem:[#allocation3 + $0x20] sm:$0xf]
      %v2576 = vld [vmem:[#allocation3 + $0x28] sm:$0xf]
      %v2577 = vld [vmem:[#allocation3 + $0x30] sm:$0xf]
      %v2578 = vld [vmem:[#allocation3 + $0x38] sm:$0xf]
      %v2579 = vld [vmem:[%s4] sm:$0xf]
      %v2580 = vld [vmem:[#allocation3 + $0x4] sm:$0x1]
      %v2581 = vld [vmem:[#allocation3 + $0xc] sm:$0x1]
      %v2582 = vld [vmem:[#allocation3 + $0x14] sm:$0x1]
      %v2583 = vld [vmem:[#allocation3 + $0x1c] sm:$0x1]
      %v2584 = vld [vmem:[#allocation3 + $0x24] sm:$0x1]
      %v2585 = vld [vmem:[#allocation3 + $0x2c] sm:$0x1]
      %v2586 = vld [vmem:[#allocation3 + $0x34] sm:$0x1]
      %v2587 = vld [vmem:[#allocation3 + $0x3c] sm:$0x1]
      %v2589 = vshrl.u32 %v2571, 16
      %v2591 = vrot.slane %v2589, 4
      %v2592 = vshll.u32 %v2571, 16
      %v2594 = vrot.slane %v2592, 5
      %v2595 = vor.u32 %v2591, %v2594
      %v2596 = vrot.slane %v2595, 4
      %v2598 = vshll.u32 %v2580, 16
      %v2600 = vrot.slane %v2598, 5
      %v2601 = vsel %vm1172, %v2596, %v2600
      %v2603 = vshrl.u32 %v2572, 16
      %v2605 = vrot.slane %v2603, 4
      %v2606 = vshll.u32 %v2572, 16
      %v2608 = vrot.slane %v2606, 5
      %v2609 = vor.u32 %v2605, %v2608
      %v2610 = vrot.slane %v2609, 4
      %v2612 = vshll.u32 %v2581, 16
      %v2614 = vrot.slane %v2612, 5
      %v2615 = vsel %vm1172, %v2610, %v2614
      %v2617 = vshrl.u32 %v2573, 16
      %v2619 = vrot.slane %v2617, 4
      %v2620 = vshll.u32 %v2573, 16
      %v2622 = vrot.slane %v2620, 5
      %v2623 = vor.u32 %v2619, %v2622
      %v2624 = vrot.slane %v2623, 4
      %v2626 = vshll.u32 %v2582, 16
      %v2628 = vrot.slane %v2626, 5
      %v2629 = vsel %vm1172, %v2624, %v2628
      %v2631 = vshrl.u32 %v2574, 16
      %v2633 = vrot.slane %v2631, 4
      %v2634 = vshll.u32 %v2574, 16
      %v2636 = vrot.slane %v2634, 5
      %v2637 = vor.u32 %v2633, %v2636
      %v2638 = vrot.slane %v2637, 4
      %v2640 = vshll.u32 %v2583, 16
      %v2642 = vrot.slane %v2640, 5
      %v2643 = vsel %vm1172, %v2638, %v2642
      %v2645 = vshrl.u32 %v2575, 16
      %v2647 = vrot.slane %v2645, 4
      %v2648 = vshll.u32 %v2575, 16
      %v2650 = vrot.slane %v2648, 5
      %v2651 = vor.u32 %v2647, %v2650
      %v2652 = vrot.slane %v2651, 4
      %v2654 = vshll.u32 %v2584, 16
      %v2656 = vrot.slane %v2654, 5
      %v2657 = vsel %vm1172, %v2652, %v2656
      %v2659 = vshrl.u32 %v2576, 16
      %v2661 = vrot.slane %v2659, 4
      %v2662 = vshll.u32 %v2576, 16
      %v2664 = vrot.slane %v2662, 5
      %v2665 = vor.u32 %v2661, %v2664
      %v2666 = vrot.slane %v2665, 4
      %v2668 = vshll.u32 %v2585, 16
      %v2670 = vrot.slane %v2668, 5
      %v2671 = vsel %vm1172, %v2666, %v2670
      %v2673 = vshrl.u32 %v2577, 16
      %v2675 = vrot.slane %v2673, 4
      %v2676 = vshll.u32 %v2577, 16
      %v2678 = vrot.slane %v2676, 5
      %v2679 = vor.u32 %v2675, %v2678
      %v2680 = vrot.slane %v2679, 4
      %v2682 = vshll.u32 %v2586, 16
      %v2684 = vrot.slane %v2682, 5
      %v2685 = vsel %vm1172, %v2680, %v2684
      %v2687 = vshrl.u32 %v2578, 16
      %v2689 = vrot.slane %v2687, 4
      %v2690 = vshll.u32 %v2578, 16
      %v2692 = vrot.slane %v2690, 5
      %v2693 = vor.u32 %v2689, %v2692
      %v2694 = vrot.slane %v2693, 4
      %v2696 = vshll.u32 %v2587, 16
      %v2698 = vrot.slane %v2696, 5
      %v2699 = vsel %vm1172, %v2694, %v2698
      %s2700 = scalar_lea.vmem %s4, 4
      %v2701 = vld [vmem:[%s2700] sm:$0xf]
      %v2702 = vunpack.c.l.b16 %v2601
      %v2703 = vunpack.c.l.b16 %v2615
      %v2704 = vunpack.c.l.b16 %v2629
      %v2705 = vunpack.c.l.b16 %v2643
      %v2706 = vunpack.c.l.b16 %v2657
      %v2707 = vunpack.c.l.b16 %v2671
      %v2708 = vunpack.c.l.b16 %v2685
      %v2709 = vunpack.c.l.b16 %v2699
      %v2710 = vpack.c.b16 %v2703, %v2702
      %v2711 = vpack.c.b16 %v2705, %v2704
      %v2712 = vpack.c.b16 %v2707, %v2706
      %v2713 = vpack.c.b16 %v2709, %v2708
      %vm2714 = vcmask 64512
      %v2716 = vsel %vm2714, %v2710, 0
      %v2719 = vsel %vm2714, %v2711, 0
      %v2722 = vsel %vm2714, %v2712, 0
      %v2725 = vsel %vm2714, %v2713, 0
      %vm2727 = vcmask 1043456
      %v2729 = vsel %vm2727, %v2701, 0
      %2731 = vmatpush.bf16.msra.mxu0 0
      %2732 = vmatpush.bf16.msra.mxu0 0
      %2733 = vmatpush.bf16.msra.mxu0 0
      %2734 = vmatpush.bf16.msra.mxu0 0
      %2735 = vmatpush.bf16.msra.mxu0 0
      %2736 = vmatpush.bf16.msra.mxu0 0
      %2737 = vmatpush.bf16.msra.mxu0 0
      %2738 = vmatpush.bf16.msra.mxu0 %v2729
      %2739 = vmatmul.bf16.gmra.mxu0 %v2716
      %v2740 = vpop.f32.mrf.mxu0
      %v2741 = vadd.f32 0.0, %v2740
      %v2742 = vpop.f32.mrf.mxu0
      %v2743 = vadd.f32 0.0, %v2742
      %2744 = vmatmul.bf16.gmra.mxu0 %v2719
      %v2745 = vpop.f32.mrf.mxu0
      %v2746 = vadd.f32 0.0, %v2745
      %v2747 = vpop.f32.mrf.mxu0
      %v2748 = vadd.f32 0.0, %v2747
      %2749 = vmatmul.bf16.gmra.mxu0 %v2722
      %v2750 = vpop.f32.mrf.mxu0
      %v2751 = vadd.f32 0.0, %v2750
      %v2752 = vpop.f32.mrf.mxu0
      %v2753 = vadd.f32 0.0, %v2752
      %2754 = vmatmul.bf16.gmra.mxu0 %v2725
      %v2755 = vpop.f32.mrf.mxu0
      %v2756 = vadd.f32 0.0, %v2755
      %v2757 = vpop.f32.mrf.mxu0
      %v2758 = vadd.f32 0.0, %v2757
      %2759 = vdwg.mxu0
      %v2768 = vunpack.c.l.b16 %v2571
      %v2769 = vunpack.c.l.b16 %v2572
      %v2770 = vunpack.c.l.b16 %v2573
      %v2771 = vunpack.c.l.b16 %v2574
      %v2772 = vunpack.c.l.b16 %v2575
      %v2773 = vunpack.c.l.b16 %v2576
      %v2774 = vunpack.c.l.b16 %v2577
      %v2775 = vunpack.c.l.b16 %v2578
      %v2776 = vpack.c.b16 %v2769, %v2768
      %v2777 = vpack.c.b16 %v2771, %v2770
      %v2778 = vpack.c.b16 %v2773, %v2772
      %v2779 = vpack.c.b16 %v2775, %v2774
      %v2781 = vsel %vm2714, %v2776, 0
      %v2784 = vsel %vm2714, %v2777, 0
      %v2787 = vsel %vm2714, %v2778, 0
      %v2790 = vsel %vm2714, %v2779, 0
      %v2793 = vsel %vm2727, %v2579, 0
      %2795 = vmatpush.bf16.msra.mxu0 0
      %2796 = vmatpush.bf16.msra.mxu0 0
      %2797 = vmatpush.bf16.msra.mxu0 0
      %2798 = vmatpush.bf16.msra.mxu0 0
      %2799 = vmatpush.bf16.msra.mxu0 0
      %2800 = vmatpush.bf16.msra.mxu0 0
      %2801 = vmatpush.bf16.msra.mxu0 0
      %2802 = vmatpush.bf16.msra.mxu0 %v2793
      %2803 = vmatmul.bf16.gmra.mxu0 %v2781
      %v2804 = vpop.f32.mrf.mxu0
      %v2805 = vadd.f32 %v2741, %v2804
      %v2806 = vpop.f32.mrf.mxu0
      %v2807 = vadd.f32 %v2743, %v2806
      %2808 = vmatmul.bf16.gmra.mxu0 %v2784
      %v2809 = vpop.f32.mrf.mxu0
      %v2810 = vadd.f32 %v2746, %v2809
      %v2811 = vpop.f32.mrf.mxu0
      %v2812 = vadd.f32 %v2748, %v2811
      %2813 = vmatmul.bf16.gmra.mxu0 %v2787
      %v2814 = vpop.f32.mrf.mxu0
      %v2815 = vadd.f32 %v2751, %v2814
      %v2816 = vpop.f32.mrf.mxu0
      %v2817 = vadd.f32 %v2753, %v2816
      %2818 = vmatmul.bf16.gmra.mxu0 %v2790
      %v2819 = vpop.f32.mrf.mxu0
      %v2820 = vadd.f32 %v2756, %v2819
      %v2821 = vpop.f32.mrf.mxu0
      %v2822 = vadd.f32 %v2758, %v2821
      %2823 = vdwg.mxu0
      %v2824 = vld [vmem:[#allocation3] sm:$0xe]
      %v2825 = vld [vmem:[#allocation3 + $0x8] sm:$0xe]
      %v2826 = vld [vmem:[#allocation3 + $0x10] sm:$0xe]
      %v2827 = vld [vmem:[#allocation3 + $0x18] sm:$0xe]
      %v2828 = vld [vmem:[#allocation3 + $0x20] sm:$0xe]
      %v2829 = vld [vmem:[#allocation3 + $0x28] sm:$0xe]
      %v2830 = vld [vmem:[#allocation3 + $0x30] sm:$0xe]
      %v2831 = vld [vmem:[#allocation3 + $0x38] sm:$0xe]
      %v2848 = vrot.slane %v2824, 5
      %v2849 = vrot.slane %v2848, 4
      %v2850 = vrot.slane %v2580, 5
      %v2851 = vsel %vm1435, %v2849, %v2850
      %v2852 = vrot.slane %v2825, 5
      %v2853 = vrot.slane %v2852, 4
      %v2854 = vrot.slane %v2581, 5
      %v2855 = vsel %vm1435, %v2853, %v2854
      %v2856 = vrot.slane %v2826, 5
      %v2857 = vrot.slane %v2856, 4
      %v2858 = vrot.slane %v2582, 5
      %v2859 = vsel %vm1435, %v2857, %v2858
      %v2860 = vrot.slane %v2827, 5
      %v2861 = vrot.slane %v2860, 4
      %v2862 = vrot.slane %v2583, 5
      %v2863 = vsel %vm1435, %v2861, %v2862
      %v2864 = vrot.slane %v2828, 5
      %v2865 = vrot.slane %v2864, 4
      %v2866 = vrot.slane %v2584, 5
      %v2867 = vsel %vm1435, %v2865, %v2866
      %v2868 = vrot.slane %v2829, 5
      %v2869 = vrot.slane %v2868, 4
      %v2870 = vrot.slane %v2585, 5
      %v2871 = vsel %vm1435, %v2869, %v2870
      %v2872 = vrot.slane %v2830, 5
      %v2873 = vrot.slane %v2872, 4
      %v2874 = vrot.slane %v2586, 5
      %v2875 = vsel %vm1435, %v2873, %v2874
      %v2876 = vrot.slane %v2831, 5
      %v2877 = vrot.slane %v2876, 4
      %v2878 = vrot.slane %v2587, 5
      %v2879 = vsel %vm1435, %v2877, %v2878
      %s2880 = scalar_lea.vmem %s4, 8
      %v2881 = vld [vmem:[%s2880] sm:$0xf]
      %v2882 = vunpack.c.l.b16 %v2851
      %v2883 = vunpack.c.l.b16 %v2855
      %v2884 = vunpack.c.l.b16 %v2859
      %v2885 = vunpack.c.l.b16 %v2863
      %v2886 = vunpack.c.l.b16 %v2867
      %v2887 = vunpack.c.l.b16 %v2871
      %v2888 = vunpack.c.l.b16 %v2875
      %v2889 = vunpack.c.l.b16 %v2879
      %v2890 = vpack.c.b16 %v2883, %v2882
      %v2891 = vpack.c.b16 %v2885, %v2884
      %v2892 = vpack.c.b16 %v2887, %v2886
      %v2893 = vpack.c.b16 %v2889, %v2888
      %v2895 = vsel %vm2714, %v2890, 0
      %v2898 = vsel %vm2714, %v2891, 0
      %v2901 = vsel %vm2714, %v2892, 0
      %v2904 = vsel %vm2714, %v2893, 0
      %v2907 = vsel %vm2727, %v2881, 0
      %2909 = vmatpush.bf16.msra.mxu0 0
      %2910 = vmatpush.bf16.msra.mxu0 0
      %2911 = vmatpush.bf16.msra.mxu0 0
      %2912 = vmatpush.bf16.msra.mxu0 0
      %2913 = vmatpush.bf16.msra.mxu0 0
      %2914 = vmatpush.bf16.msra.mxu0 0
      %2915 = vmatpush.bf16.msra.mxu0 0
      %2916 = vmatpush.bf16.msra.mxu0 %v2907
      %2917 = vmatmul.bf16.gmra.mxu0 %v2895
      %v2918 = vpop.f32.mrf.mxu0
      %v2919 = vadd.f32 0.0, %v2918
      %v2920 = vpop.f32.mrf.mxu0
      %v2921 = vadd.f32 0.0, %v2920
      %2922 = vmatmul.bf16.gmra.mxu0 %v2898
      %v2923 = vpop.f32.mrf.mxu0
      %v2924 = vadd.f32 0.0, %v2923
      %v2925 = vpop.f32.mrf.mxu0
      %v2926 = vadd.f32 0.0, %v2925
      %2927 = vmatmul.bf16.gmra.mxu0 %v2901
      %v2928 = vpop.f32.mrf.mxu0
      %v2929 = vadd.f32 0.0, %v2928
      %v2930 = vpop.f32.mrf.mxu0
      %v2931 = vadd.f32 0.0, %v2930
      %2932 = vmatmul.bf16.gmra.mxu0 %v2904
      %v2933 = vpop.f32.mrf.mxu0
      %v2934 = vadd.f32 0.0, %v2933
      %v2935 = vpop.f32.mrf.mxu0
      %v2936 = vadd.f32 0.0, %v2935
      %2937 = vdwg.mxu0
      %v2938 = vadd.f32 %v2805, %v2919
      %v2939 = vadd.f32 %v2807, %v2921
      %v2940 = vadd.f32 %v2810, %v2924
      %v2941 = vadd.f32 %v2812, %v2926
      %v2942 = vadd.f32 %v2815, %v2929
      %v2943 = vadd.f32 %v2817, %v2931
      %v2944 = vadd.f32 %v2820, %v2934
      %v2945 = vadd.f32 %v2822, %v2936
      %v2946 = vld [vmem:[%s2520] sm:$0xf]
      %v2947 = vld [vmem:[%s2520 + $0x8] sm:$0xf]
      %v2948 = vld [vmem:[%s2520 + $0x10] sm:$0xf]
      %v2949 = vld [vmem:[%s2520 + $0x18] sm:$0xf]
      %v2950 = vld [vmem:[%s2520 + $0x20] sm:$0xf]
      %v2951 = vld [vmem:[%s2520 + $0x28] sm:$0xf]
      %v2952 = vld [vmem:[%s2520 + $0x30] sm:$0xf]
      %v2953 = vld [vmem:[%s2520 + $0x38] sm:$0xf]
      %s2954 = scalar_lea.vmem %s4, 12
      %v2955 = vld [vmem:[%s2954] sm:$0xf]
      %v2964 = vunpack.c.l.b16 %v2946
      %v2965 = vunpack.c.l.b16 %v2947
      %v2966 = vunpack.c.l.b16 %v2948
      %v2967 = vunpack.c.l.b16 %v2949
      %v2968 = vunpack.c.l.b16 %v2950
      %v2969 = vunpack.c.l.b16 %v2951
      %v2970 = vunpack.c.l.b16 %v2952
      %v2971 = vunpack.c.l.b16 %v2953
      %v2972 = vpack.c.b16 %v2965, %v2964
      %v2973 = vpack.c.b16 %v2967, %v2966
      %v2974 = vpack.c.b16 %v2969, %v2968
      %v2975 = vpack.c.b16 %v2971, %v2970
      %v2977 = vsel %vm2714, %v2972, 0
      %v2980 = vsel %vm2714, %v2973, 0
      %v2983 = vsel %vm2714, %v2974, 0
      %v2986 = vsel %vm2714, %v2975, 0
      %v2989 = vsel %vm2727, %v2955, 0
      %2991 = vmatpush.bf16.msra.mxu0 0
      %2992 = vmatpush.bf16.msra.mxu0 0
      %2993 = vmatpush.bf16.msra.mxu0 0
      %2994 = vmatpush.bf16.msra.mxu0 0
      %2995 = vmatpush.bf16.msra.mxu0 0
      %2996 = vmatpush.bf16.msra.mxu0 0
      %2997 = vmatpush.bf16.msra.mxu0 0
      %2998 = vmatpush.bf16.msra.mxu0 %v2989
      %2999 = vmatmul.bf16.gmra.mxu0 %v2977
      %v3000 = vpop.f32.mrf.mxu0
      %v3001 = vadd.f32 0.0, %v3000
      %v3002 = vpop.f32.mrf.mxu0
      %v3003 = vadd.f32 0.0, %v3002
      %3004 = vmatmul.bf16.gmra.mxu0 %v2980
      %v3005 = vpop.f32.mrf.mxu0
      %v3006 = vadd.f32 0.0, %v3005
      %v3007 = vpop.f32.mrf.mxu0
      %v3008 = vadd.f32 0.0, %v3007
      %3009 = vmatmul.bf16.gmra.mxu0 %v2983
      %v3010 = vpop.f32.mrf.mxu0
      %v3011 = vadd.f32 0.0, %v3010
      %v3012 = vpop.f32.mrf.mxu0
      %v3013 = vadd.f32 0.0, %v3012
      %3014 = vmatmul.bf16.gmra.mxu0 %v2986
      %v3015 = vpop.f32.mrf.mxu0
      %v3016 = vadd.f32 0.0, %v3015
      %v3017 = vpop.f32.mrf.mxu0
      %v3018 = vadd.f32 0.0, %v3017
      %3019 = vdwg.mxu0
      %v3020 = vadd.f32 %v2938, %v3001
      %v3021 = vadd.f32 %v2939, %v3003
      %v3022 = vadd.f32 %v2940, %v3006
      %v3023 = vadd.f32 %v2941, %v3008
      %v3024 = vadd.f32 %v2942, %v3011
      %v3025 = vadd.f32 %v2943, %v3013
      %v3026 = vadd.f32 %v2944, %v3016
      %v3027 = vadd.f32 %v2945, %v3018
      %v3028 = vld [vmem:[%s2520] sm:$0xf]
      %v3029 = vld [vmem:[%s2520 + $0x4] sm:$0x1]
      %v3030 = vld [vmem:[%s2520 + $0x8] sm:$0xf]
      %v3031 = vld [vmem:[%s2520 + $0xc] sm:$0x1]
      %v3032 = vld [vmem:[%s2520 + $0x10] sm:$0xf]
      %v3033 = vld [vmem:[%s2520 + $0x14] sm:$0x1]
      %v3034 = vld [vmem:[%s2520 + $0x18] sm:$0xf]
      %v3035 = vld [vmem:[%s2520 + $0x1c] sm:$0x1]
      %v3036 = vld [vmem:[%s2520 + $0x20] sm:$0xf]
      %v3037 = vld [vmem:[%s2520 + $0x24] sm:$0x1]
      %v3038 = vld [vmem:[%s2520 + $0x28] sm:$0xf]
      %v3039 = vld [vmem:[%s2520 + $0x2c] sm:$0x1]
      %v3040 = vld [vmem:[%s2520 + $0x30] sm:$0xf]
      %v3041 = vld [vmem:[%s2520 + $0x34] sm:$0x1]
      %v3042 = vld [vmem:[%s2520 + $0x38] sm:$0xf]
      %v3043 = vld [vmem:[%s2520 + $0x3c] sm:$0x1]
      %v3045 = vshrl.u32 %v3028, 16
      %v3047 = vrot.slane %v3045, 4
      %v3048 = vshll.u32 %v3028, 16
      %v3050 = vrot.slane %v3048, 5
      %v3051 = vor.u32 %v3047, %v3050
      %v3052 = vrot.slane %v3051, 4
      %v3054 = vshll.u32 %v3029, 16
      %v3056 = vrot.slane %v3054, 5
      %v3057 = vsel %vm1172, %v3052, %v3056
      %v3059 = vshrl.u32 %v3030, 16
      %v3061 = vrot.slane %v3059, 4
      %v3062 = vshll.u32 %v3030, 16
      %v3064 = vrot.slane %v3062, 5
      %v3065 = vor.u32 %v3061, %v3064
      %v3066 = vrot.slane %v3065, 4
      %v3068 = vshll.u32 %v3031, 16
      %v3070 = vrot.slane %v3068, 5
      %v3071 = vsel %vm1172, %v3066, %v3070
      %v3073 = vshrl.u32 %v3032, 16
      %v3075 = vrot.slane %v3073, 4
      %v3076 = vshll.u32 %v3032, 16
      %v3078 = vrot.slane %v3076, 5
      %v3079 = vor.u32 %v3075, %v3078
      %v3080 = vrot.slane %v3079, 4
      %v3082 = vshll.u32 %v3033, 16
      %v3084 = vrot.slane %v3082, 5
      %v3085 = vsel %vm1172, %v3080, %v3084
      %v3087 = vshrl.u32 %v3034, 16
      %v3089 = vrot.slane %v3087, 4
      %v3090 = vshll.u32 %v3034, 16
      %v3092 = vrot.slane %v3090, 5
      %v3093 = vor.u32 %v3089, %v3092
      %v3094 = vrot.slane %v3093, 4
      %v3096 = vshll.u32 %v3035, 16
      %v3098 = vrot.slane %v3096, 5
      %v3099 = vsel %vm1172, %v3094, %v3098
      %v3101 = vshrl.u32 %v3036, 16
      %v3103 = vrot.slane %v3101, 4
      %v3104 = vshll.u32 %v3036, 16
      %v3106 = vrot.slane %v3104, 5
      %v3107 = vor.u32 %v3103, %v3106
      %v3108 = vrot.slane %v3107, 4
      %v3110 = vshll.u32 %v3037, 16
      %v3112 = vrot.slane %v3110, 5
      %v3113 = vsel %vm1172, %v3108, %v3112
      %v3115 = vshrl.u32 %v3038, 16
      %v3117 = vrot.slane %v3115, 4
      %v3118 = vshll.u32 %v3038, 16
      %v3120 = vrot.slane %v3118, 5
      %v3121 = vor.u32 %v3117, %v3120
      %v3122 = vrot.slane %v3121, 4
      %v3124 = vshll.u32 %v3039, 16
      %v3126 = vrot.slane %v3124, 5
      %v3127 = vsel %vm1172, %v3122, %v3126
      %v3129 = vshrl.u32 %v3040, 16
      %v3131 = vrot.slane %v3129, 4
      %v3132 = vshll.u32 %v3040, 16
      %v3134 = vrot.slane %v3132, 5
      %v3135 = vor.u32 %v3131, %v3134
      %v3136 = vrot.slane %v3135, 4
      %v3138 = vshll.u32 %v3041, 16
      %v3140 = vrot.slane %v3138, 5
      %v3141 = vsel %vm1172, %v3136, %v3140
      %v3143 = vshrl.u32 %v3042, 16
      %v3145 = vrot.slane %v3143, 4
      %v3146 = vshll.u32 %v3042, 16
      %v3148 = vrot.slane %v3146, 5
      %v3149 = vor.u32 %v3145, %v3148
      %v3150 = vrot.slane %v3149, 4
      %v3152 = vshll.u32 %v3043, 16
      %v3154 = vrot.slane %v3152, 5
      %v3155 = vsel %vm1172, %v3150, %v3154
      %s3156 = scalar_lea.vmem %s4, 16
      %v3157 = vld [vmem:[%s3156] sm:$0xf]
      %v3158 = vunpack.c.l.b16 %v3057
      %v3159 = vunpack.c.l.b16 %v3071
      %v3160 = vunpack.c.l.b16 %v3085
      %v3161 = vunpack.c.l.b16 %v3099
      %v3162 = vunpack.c.l.b16 %v3113
      %v3163 = vunpack.c.l.b16 %v3127
      %v3164 = vunpack.c.l.b16 %v3141
      %v3165 = vunpack.c.l.b16 %v3155
      %v3166 = vpack.c.b16 %v3159, %v3158
      %v3167 = vpack.c.b16 %v3161, %v3160
      %v3168 = vpack.c.b16 %v3163, %v3162
      %v3169 = vpack.c.b16 %v3165, %v3164
      %v3171 = vsel %vm2714, %v3166, 0
      %v3174 = vsel %vm2714, %v3167, 0
      %v3177 = vsel %vm2714, %v3168, 0
      %v3180 = vsel %vm2714, %v3169, 0
      %v3183 = vsel %vm2727, %v3157, 0
      %3185 = vmatpush.bf16.msra.mxu0 0
      %3186 = vmatpush.bf16.msra.mxu0 0
      %3187 = vmatpush.bf16.msra.mxu0 0
      %3188 = vmatpush.bf16.msra.mxu0 0
      %3189 = vmatpush.bf16.msra.mxu0 0
      %3190 = vmatpush.bf16.msra.mxu0 0
      %3191 = vmatpush.bf16.msra.mxu0 0
      %3192 = vmatpush.bf16.msra.mxu0 %v3183
      %3193 = vmatmul.bf16.gmra.mxu0 %v3171
      %v3194 = vpop.f32.mrf.mxu0
      %v3195 = vadd.f32 0.0, %v3194
      %v3196 = vpop.f32.mrf.mxu0
      %v3197 = vadd.f32 0.0, %v3196
      %3198 = vmatmul.bf16.gmra.mxu0 %v3174
      %v3199 = vpop.f32.mrf.mxu0
      %v3200 = vadd.f32 0.0, %v3199
      %v3201 = vpop.f32.mrf.mxu0
      %v3202 = vadd.f32 0.0, %v3201
      %3203 = vmatmul.bf16.gmra.mxu0 %v3177
      %v3204 = vpop.f32.mrf.mxu0
      %v3205 = vadd.f32 0.0, %v3204
      %v3206 = vpop.f32.mrf.mxu0
      %v3207 = vadd.f32 0.0, %v3206
      %3208 = vmatmul.bf16.gmra.mxu0 %v3180
      %v3209 = vpop.f32.mrf.mxu0
      %v3210 = vadd.f32 0.0, %v3209
      %v3211 = vpop.f32.mrf.mxu0
      %v3212 = vadd.f32 0.0, %v3211
      %3213 = vdwg.mxu0
      %v3214 = vadd.f32 %v3020, %v3195
      %v3215 = vadd.f32 %v3021, %v3197
      %v3216 = vadd.f32 %v3022, %v3200
      %v3217 = vadd.f32 %v3023, %v3202
      %v3218 = vadd.f32 %v3024, %v3205
      %v3219 = vadd.f32 %v3025, %v3207
      %v3220 = vadd.f32 %v3026, %v3210
      %v3221 = vadd.f32 %v3027, %v3212
      %v3222 = vld [vmem:[%s2520] sm:$0xe]
      %v3223 = vld [vmem:[%s2520 + $0x8] sm:$0xe]
      %v3224 = vld [vmem:[%s2520 + $0x10] sm:$0xe]
      %v3225 = vld [vmem:[%s2520 + $0x18] sm:$0xe]
      %v3226 = vld [vmem:[%s2520 + $0x20] sm:$0xe]
      %v3227 = vld [vmem:[%s2520 + $0x28] sm:$0xe]
      %v3228 = vld [vmem:[%s2520 + $0x30] sm:$0xe]
      %v3229 = vld [vmem:[%s2520 + $0x38] sm:$0xe]
      %v3246 = vrot.slane %v3222, 5
      %v3247 = vrot.slane %v3246, 4
      %v3248 = vrot.slane %v3029, 5
      %v3249 = vsel %vm1435, %v3247, %v3248
      %v3250 = vrot.slane %v3223, 5
      %v3251 = vrot.slane %v3250, 4
      %v3252 = vrot.slane %v3031, 5
      %v3253 = vsel %vm1435, %v3251, %v3252
      %v3254 = vrot.slane %v3224, 5
      %v3255 = vrot.slane %v3254, 4
      %v3256 = vrot.slane %v3033, 5
      %v3257 = vsel %vm1435, %v3255, %v3256
      %v3258 = vrot.slane %v3225, 5
      %v3259 = vrot.slane %v3258, 4
      %v3260 = vrot.slane %v3035, 5
      %v3261 = vsel %vm1435, %v3259, %v3260
      %v3262 = vrot.slane %v3226, 5
      %v3263 = vrot.slane %v3262, 4
      %v3264 = vrot.slane %v3037, 5
      %v3265 = vsel %vm1435, %v3263, %v3264
      %v3266 = vrot.slane %v3227, 5
      %v3267 = vrot.slane %v3266, 4
      %v3268 = vrot.slane %v3039, 5
      %v3269 = vsel %vm1435, %v3267, %v3268
      %v3270 = vrot.slane %v3228, 5
      %v3271 = vrot.slane %v3270, 4
      %v3272 = vrot.slane %v3041, 5
      %v3273 = vsel %vm1435, %v3271, %v3272
      %v3274 = vrot.slane %v3229, 5
      %v3275 = vrot.slane %v3274, 4
      %v3276 = vrot.slane %v3043, 5
      %v3277 = vsel %vm1435, %v3275, %v3276
      %s3278 = scalar_lea.vmem %s4, 20
      %v3279 = vld [vmem:[%s3278] sm:$0xf]
      %v3280 = vunpack.c.l.b16 %v3249
      %v3281 = vunpack.c.l.b16 %v3253
      %v3282 = vunpack.c.l.b16 %v3257
      %v3283 = vunpack.c.l.b16 %v3261
      %v3284 = vunpack.c.l.b16 %v3265
      %v3285 = vunpack.c.l.b16 %v3269
      %v3286 = vunpack.c.l.b16 %v3273
      %v3287 = vunpack.c.l.b16 %v3277
      %v3288 = vpack.c.b16 %v3281, %v3280
      %v3289 = vpack.c.b16 %v3283, %v3282
      %v3290 = vpack.c.b16 %v3285, %v3284
      %v3291 = vpack.c.b16 %v3287, %v3286
      %v3293 = vsel %vm2714, %v3288, 0
      %v3296 = vsel %vm2714, %v3289, 0
      %v3299 = vsel %vm2714, %v3290, 0
      %v3302 = vsel %vm2714, %v3291, 0
      %v3305 = vsel %vm2727, %v3279, 0
      %3307 = vmatpush.bf16.msra.mxu0 0
      %3308 = vmatpush.bf16.msra.mxu0 0
      %3309 = vmatpush.bf16.msra.mxu0 0
      %3310 = vmatpush.bf16.msra.mxu0 0
      %3311 = vmatpush.bf16.msra.mxu0 0
      %3312 = vmatpush.bf16.msra.mxu0 0
      %3313 = vmatpush.bf16.msra.mxu0 0
      %3314 = vmatpush.bf16.msra.mxu0 %v3305
      %3315 = vmatmul.bf16.gmra.mxu0 %v3293
      %v3316 = vpop.f32.mrf.mxu0
      %v3317 = vadd.f32 0.0, %v3316
      %v3318 = vpop.f32.mrf.mxu0
      %v3319 = vadd.f32 0.0, %v3318
      %3320 = vmatmul.bf16.gmra.mxu0 %v3296
      %v3321 = vpop.f32.mrf.mxu0
      %v3322 = vadd.f32 0.0, %v3321
      %v3323 = vpop.f32.mrf.mxu0
      %v3324 = vadd.f32 0.0, %v3323
      %3325 = vmatmul.bf16.gmra.mxu0 %v3299
      %v3326 = vpop.f32.mrf.mxu0
      %v3327 = vadd.f32 0.0, %v3326
      %v3328 = vpop.f32.mrf.mxu0
      %v3329 = vadd.f32 0.0, %v3328
      %3330 = vmatmul.bf16.gmra.mxu0 %v3302
      %v3331 = vpop.f32.mrf.mxu0
      %v3332 = vadd.f32 0.0, %v3331
      %v3333 = vpop.f32.mrf.mxu0
      %v3334 = vadd.f32 0.0, %v3333
      %3335 = vdwg.mxu0
      %v3336 = vadd.f32 %v3214, %v3317
      %v3337 = vadd.f32 %v3215, %v3319
      %v3338 = vadd.f32 %v3216, %v3322
      %v3339 = vadd.f32 %v3217, %v3324
      %v3340 = vadd.f32 %v3218, %v3327
      %v3341 = vadd.f32 %v3219, %v3329
      %v3342 = vadd.f32 %v3220, %v3332
      %v3343 = vadd.f32 %v3221, %v3334
      %s3344 = scalar_lea.vmem [#allocation3], 16
      %v3345 = vld [vmem:[%s3344] sm:$0xf]
      %v3346 = vld [vmem:[%s3344 + $0x8] sm:$0xf]
      %v3347 = vld [vmem:[%s3344 + $0x10] sm:$0xf]
      %v3348 = vld [vmem:[%s3344 + $0x18] sm:$0xf]
      %v3349 = vld [vmem:[%s3344 + $0x20] sm:$0xf]
      %v3350 = vld [vmem:[%s3344 + $0x28] sm:$0xf]
      %v3351 = vld [vmem:[%s3344 + $0x30] sm:$0xf]
      %v3352 = vld [vmem:[%s3344 + $0x38] sm:$0xf]
      %s3353 = scalar_lea.vmem %s4, 24
      %v3354 = vld [vmem:[%s3353] sm:$0xf]
      %v3363 = vunpack.c.l.b16 %v3345
      %v3364 = vunpack.c.l.b16 %v3346
      %v3365 = vunpack.c.l.b16 %v3347
      %v3366 = vunpack.c.l.b16 %v3348
      %v3367 = vunpack.c.l.b16 %v3349
      %v3368 = vunpack.c.l.b16 %v3350
      %v3369 = vunpack.c.l.b16 %v3351
      %v3370 = vunpack.c.l.b16 %v3352
      %v3371 = vpack.c.b16 %v3364, %v3363
      %v3372 = vpack.c.b16 %v3366, %v3365
      %v3373 = vpack.c.b16 %v3368, %v3367
      %v3374 = vpack.c.b16 %v3370, %v3369
      %v3376 = vsel %vm2714, %v3371, 0
      %v3379 = vsel %vm2714, %v3372, 0
      %v3382 = vsel %vm2714, %v3373, 0
      %v3385 = vsel %vm2714, %v3374, 0
      %v3388 = vsel %vm2727, %v3354, 0
      %3390 = vmatpush.bf16.msra.mxu0 0
      %3391 = vmatpush.bf16.msra.mxu0 0
      %3392 = vmatpush.bf16.msra.mxu0 0
      %3393 = vmatpush.bf16.msra.mxu0 0
      %3394 = vmatpush.bf16.msra.mxu0 0
      %3395 = vmatpush.bf16.msra.mxu0 0
      %3396 = vmatpush.bf16.msra.mxu0 0
      %3397 = vmatpush.bf16.msra.mxu0 %v3388
      %3398 = vmatmul.bf16.gmra.mxu0 %v3376
      %v3399 = vpop.f32.mrf.mxu0
      %v3400 = vadd.f32 0.0, %v3399
      %v3401 = vpop.f32.mrf.mxu0
      %v3402 = vadd.f32 0.0, %v3401
      %3403 = vmatmul.bf16.gmra.mxu0 %v3379
      %v3404 = vpop.f32.mrf.mxu0
      %v3405 = vadd.f32 0.0, %v3404
      %v3406 = vpop.f32.mrf.mxu0
      %v3407 = vadd.f32 0.0, %v3406
      %3408 = vmatmul.bf16.gmra.mxu0 %v3382
      %v3409 = vpop.f32.mrf.mxu0
      %v3410 = vadd.f32 0.0, %v3409
      %v3411 = vpop.f32.mrf.mxu0
      %v3412 = vadd.f32 0.0, %v3411
      %3413 = vmatmul.bf16.gmra.mxu0 %v3385
      %v3414 = vpop.f32.mrf.mxu0
      %v3415 = vadd.f32 0.0, %v3414
      %v3416 = vpop.f32.mrf.mxu0
      %v3417 = vadd.f32 0.0, %v3416
      %3418 = vdwg.mxu0
      %v3419 = vadd.f32 %v3336, %v3400
      %v3420 = vadd.f32 %v3337, %v3402
      %v3421 = vadd.f32 %v3338, %v3405
      %v3422 = vadd.f32 %v3339, %v3407
      %v3423 = vadd.f32 %v3340, %v3410
      %v3424 = vadd.f32 %v3341, %v3412
      %v3425 = vadd.f32 %v3342, %v3415
      %v3426 = vadd.f32 %v3343, %v3417
      %v3427 = vld [vmem:[%s3344] sm:$0xf]
      %v3428 = vld [vmem:[%s3344 + $0x4] sm:$0x1]
      %v3429 = vld [vmem:[%s3344 + $0x8] sm:$0xf]
      %v3430 = vld [vmem:[%s3344 + $0xc] sm:$0x1]
      %v3431 = vld [vmem:[%s3344 + $0x10] sm:$0xf]
      %v3432 = vld [vmem:[%s3344 + $0x14] sm:$0x1]
      %v3433 = vld [vmem:[%s3344 + $0x18] sm:$0xf]
      %v3434 = vld [vmem:[%s3344 + $0x1c] sm:$0x1]
      %v3435 = vld [vmem:[%s3344 + $0x20] sm:$0xf]
      %v3436 = vld [vmem:[%s3344 + $0x24] sm:$0x1]
      %v3437 = vld [vmem:[%s3344 + $0x28] sm:$0xf]
      %v3438 = vld [vmem:[%s3344 + $0x2c] sm:$0x1]
      %v3439 = vld [vmem:[%s3344 + $0x30] sm:$0xf]
      %v3440 = vld [vmem:[%s3344 + $0x34] sm:$0x1]
      %v3441 = vld [vmem:[%s3344 + $0x38] sm:$0xf]
      %v3442 = vld [vmem:[%s3344 + $0x3c] sm:$0x1]
      %v3444 = vshrl.u32 %v3427, 16
      %v3446 = vrot.slane %v3444, 4
      %v3447 = vshll.u32 %v3427, 16
      %v3449 = vrot.slane %v3447, 5
      %v3450 = vor.u32 %v3446, %v3449
      %v3451 = vrot.slane %v3450, 4
      %v3453 = vshll.u32 %v3428, 16
      %v3455 = vrot.slane %v3453, 5
      %v3456 = vsel %vm1172, %v3451, %v3455
      %v3458 = vshrl.u32 %v3429, 16
      %v3460 = vrot.slane %v3458, 4
      %v3461 = vshll.u32 %v3429, 16
      %v3463 = vrot.slane %v3461, 5
      %v3464 = vor.u32 %v3460, %v3463
      %v3465 = vrot.slane %v3464, 4
      %v3467 = vshll.u32 %v3430, 16
      %v3469 = vrot.slane %v3467, 5
      %v3470 = vsel %vm1172, %v3465, %v3469
      %v3472 = vshrl.u32 %v3431, 16
      %v3474 = vrot.slane %v3472, 4
      %v3475 = vshll.u32 %v3431, 16
      %v3477 = vrot.slane %v3475, 5
      %v3478 = vor.u32 %v3474, %v3477
      %v3479 = vrot.slane %v3478, 4
      %v3481 = vshll.u32 %v3432, 16
      %v3483 = vrot.slane %v3481, 5
      %v3484 = vsel %vm1172, %v3479, %v3483
      %v3486 = vshrl.u32 %v3433, 16
      %v3488 = vrot.slane %v3486, 4
      %v3489 = vshll.u32 %v3433, 16
      %v3491 = vrot.slane %v3489, 5
      %v3492 = vor.u32 %v3488, %v3491
      %v3493 = vrot.slane %v3492, 4
      %v3495 = vshll.u32 %v3434, 16
      %v3497 = vrot.slane %v3495, 5
      %v3498 = vsel %vm1172, %v3493, %v3497
      %v3500 = vshrl.u32 %v3435, 16
      %v3502 = vrot.slane %v3500, 4
      %v3503 = vshll.u32 %v3435, 16
      %v3505 = vrot.slane %v3503, 5
      %v3506 = vor.u32 %v3502, %v3505
      %v3507 = vrot.slane %v3506, 4
      %v3509 = vshll.u32 %v3436, 16
      %v3511 = vrot.slane %v3509, 5
      %v3512 = vsel %vm1172, %v3507, %v3511
      %v3514 = vshrl.u32 %v3437, 16
      %v3516 = vrot.slane %v3514, 4
      %v3517 = vshll.u32 %v3437, 16
      %v3519 = vrot.slane %v3517, 5
      %v3520 = vor.u32 %v3516, %v3519
      %v3521 = vrot.slane %v3520, 4
      %v3523 = vshll.u32 %v3438, 16
      %v3525 = vrot.slane %v3523, 5
      %v3526 = vsel %vm1172, %v3521, %v3525
      %v3528 = vshrl.u32 %v3439, 16
      %v3530 = vrot.slane %v3528, 4
      %v3531 = vshll.u32 %v3439, 16
      %v3533 = vrot.slane %v3531, 5
      %v3534 = vor.u32 %v3530, %v3533
      %v3535 = vrot.slane %v3534, 4
      %v3537 = vshll.u32 %v3440, 16
      %v3539 = vrot.slane %v3537, 5
      %v3540 = vsel %vm1172, %v3535, %v3539
      %v3542 = vshrl.u32 %v3441, 16
      %v3544 = vrot.slane %v3542, 4
      %v3545 = vshll.u32 %v3441, 16
      %v3547 = vrot.slane %v3545, 5
      %v3548 = vor.u32 %v3544, %v3547
      %v3549 = vrot.slane %v3548, 4
      %v3551 = vshll.u32 %v3442, 16
      %v3553 = vrot.slane %v3551, 5
      %v3554 = vsel %vm1172, %v3549, %v3553
      %s3555 = scalar_lea.vmem %s4, 28
      %v3556 = vld [vmem:[%s3555] sm:$0xf]
      %v3557 = vunpack.c.l.b16 %v3456
      %v3558 = vunpack.c.l.b16 %v3470
      %v3559 = vunpack.c.l.b16 %v3484
      %v3560 = vunpack.c.l.b16 %v3498
      %v3561 = vunpack.c.l.b16 %v3512
      %v3562 = vunpack.c.l.b16 %v3526
      %v3563 = vunpack.c.l.b16 %v3540
      %v3564 = vunpack.c.l.b16 %v3554
      %v3565 = vpack.c.b16 %v3558, %v3557
      %v3566 = vpack.c.b16 %v3560, %v3559
      %v3567 = vpack.c.b16 %v3562, %v3561
      %v3568 = vpack.c.b16 %v3564, %v3563
      %v3570 = vsel %vm2714, %v3565, 0
      %v3573 = vsel %vm2714, %v3566, 0
      %v3576 = vsel %vm2714, %v3567, 0
      %v3579 = vsel %vm2714, %v3568, 0
      %v3582 = vsel %vm2727, %v3556, 0
      %3584 = vmatpush.bf16.msra.mxu0 0
      %3585 = vmatpush.bf16.msra.mxu0 0
      %3586 = vmatpush.bf16.msra.mxu0 0
      %3587 = vmatpush.bf16.msra.mxu0 0
      %3588 = vmatpush.bf16.msra.mxu0 0
      %3589 = vmatpush.bf16.msra.mxu0 0
      %3590 = vmatpush.bf16.msra.mxu0 0
      %3591 = vmatpush.bf16.msra.mxu0 %v3582
      %3592 = vmatmul.bf16.gmra.mxu0 %v3570
      %v3593 = vpop.f32.mrf.mxu0
      %v3594 = vadd.f32 0.0, %v3593
      %v3595 = vpop.f32.mrf.mxu0
      %v3596 = vadd.f32 0.0, %v3595
      %3597 = vmatmul.bf16.gmra.mxu0 %v3573
      %v3598 = vpop.f32.mrf.mxu0
      %v3599 = vadd.f32 0.0, %v3598
      %v3600 = vpop.f32.mrf.mxu0
      %v3601 = vadd.f32 0.0, %v3600
      %3602 = vmatmul.bf16.gmra.mxu0 %v3576
      %v3603 = vpop.f32.mrf.mxu0
      %v3604 = vadd.f32 0.0, %v3603
      %v3605 = vpop.f32.mrf.mxu0
      %v3606 = vadd.f32 0.0, %v3605
      %3607 = vmatmul.bf16.gmra.mxu0 %v3579
      %v3608 = vpop.f32.mrf.mxu0
      %v3609 = vadd.f32 0.0, %v3608
      %v3610 = vpop.f32.mrf.mxu0
      %v3611 = vadd.f32 0.0, %v3610
      %3612 = vdwg.mxu0
      %v3613 = vadd.f32 %v3419, %v3594
      %v3614 = vadd.f32 %v3420, %v3596
      %v3615 = vadd.f32 %v3421, %v3599
      %v3616 = vadd.f32 %v3422, %v3601
      %v3617 = vadd.f32 %v3423, %v3604
      %v3618 = vadd.f32 %v3424, %v3606
      %v3619 = vadd.f32 %v3425, %v3609
      %v3620 = vadd.f32 %v3426, %v3611
      %v3621 = vld [vmem:[%s3344] sm:$0xe]
      %v3622 = vld [vmem:[%s3344 + $0x8] sm:$0xe]
      %v3623 = vld [vmem:[%s3344 + $0x10] sm:$0xe]
      %v3624 = vld [vmem:[%s3344 + $0x18] sm:$0xe]
      %v3625 = vld [vmem:[%s3344 + $0x20] sm:$0xe]
      %v3626 = vld [vmem:[%s3344 + $0x28] sm:$0xe]
      %v3627 = vld [vmem:[%s3344 + $0x30] sm:$0xe]
      %v3628 = vld [vmem:[%s3344 + $0x38] sm:$0xe]
      %v3645 = vrot.slane %v3621, 5
      %v3646 = vrot.slane %v3645, 4
      %v3647 = vrot.slane %v3428, 5
      %v3648 = vsel %vm1435, %v3646, %v3647
      %v3649 = vrot.slane %v3622, 5
      %v3650 = vrot.slane %v3649, 4
      %v3651 = vrot.slane %v3430, 5
      %v3652 = vsel %vm1435, %v3650, %v3651
      %v3653 = vrot.slane %v3623, 5
      %v3654 = vrot.slane %v3653, 4
      %v3655 = vrot.slane %v3432, 5
      %v3656 = vsel %vm1435, %v3654, %v3655
      %v3657 = vrot.slane %v3624, 5
      %v3658 = vrot.slane %v3657, 4
      %v3659 = vrot.slane %v3434, 5
      %v3660 = vsel %vm1435, %v3658, %v3659
      %v3661 = vrot.slane %v3625, 5
      %v3662 = vrot.slane %v3661, 4
      %v3663 = vrot.slane %v3436, 5
      %v3664 = vsel %vm1435, %v3662, %v3663
      %v3665 = vrot.slane %v3626, 5
      %v3666 = vrot.slane %v3665, 4
      %v3667 = vrot.slane %v3438, 5
      %v3668 = vsel %vm1435, %v3666, %v3667
      %v3669 = vrot.slane %v3627, 5
      %v3670 = vrot.slane %v3669, 4
      %v3671 = vrot.slane %v3440, 5
      %v3672 = vsel %vm1435, %v3670, %v3671
      %v3673 = vrot.slane %v3628, 5
      %v3674 = vrot.slane %v3673, 4
      %v3675 = vrot.slane %v3442, 5
      %v3676 = vsel %vm1435, %v3674, %v3675
      %s3677 = scalar_lea.vmem %s4, 32
      %v3678 = vld [vmem:[%s3677] sm:$0xf]
      %v3679 = vunpack.c.l.b16 %v3648
      %v3680 = vunpack.c.l.b16 %v3652
      %v3681 = vunpack.c.l.b16 %v3656
      %v3682 = vunpack.c.l.b16 %v3660
      %v3683 = vunpack.c.l.b16 %v3664
      %v3684 = vunpack.c.l.b16 %v3668
      %v3685 = vunpack.c.l.b16 %v3672
      %v3686 = vunpack.c.l.b16 %v3676
      %v3687 = vpack.c.b16 %v3680, %v3679
      %v3688 = vpack.c.b16 %v3682, %v3681
      %v3689 = vpack.c.b16 %v3684, %v3683
      %v3690 = vpack.c.b16 %v3686, %v3685
      %v3692 = vsel %vm2714, %v3687, 0
      %v3695 = vsel %vm2714, %v3688, 0
      %v3698 = vsel %vm2714, %v3689, 0
      %v3701 = vsel %vm2714, %v3690, 0
      %v3704 = vsel %vm2727, %v3678, 0
      %3706 = vmatpush.bf16.msra.mxu0 0
      %3707 = vmatpush.bf16.msra.mxu0 0
      %3708 = vmatpush.bf16.msra.mxu0 0
      %3709 = vmatpush.bf16.msra.mxu0 0
      %3710 = vmatpush.bf16.msra.mxu0 0
      %3711 = vmatpush.bf16.msra.mxu0 0
      %3712 = vmatpush.bf16.msra.mxu0 0
      %3713 = vmatpush.bf16.msra.mxu0 %v3704
      %3714 = vmatmul.bf16.gmra.mxu0 %v3692
      %v3715 = vpop.f32.mrf.mxu0
      %v3716 = vadd.f32 0.0, %v3715
      %v3717 = vpop.f32.mrf.mxu0
      %v3718 = vadd.f32 0.0, %v3717
      %3719 = vmatmul.bf16.gmra.mxu0 %v3695
      %v3720 = vpop.f32.mrf.mxu0
      %v3721 = vadd.f32 0.0, %v3720
      %v3722 = vpop.f32.mrf.mxu0
      %v3723 = vadd.f32 0.0, %v3722
      %3724 = vmatmul.bf16.gmra.mxu0 %v3698
      %v3725 = vpop.f32.mrf.mxu0
      %v3726 = vadd.f32 0.0, %v3725
      %v3727 = vpop.f32.mrf.mxu0
      %v3728 = vadd.f32 0.0, %v3727
      %3729 = vmatmul.bf16.gmra.mxu0 %v3701
      %v3730 = vpop.f32.mrf.mxu0
      %v3731 = vadd.f32 0.0, %v3730
      %v3732 = vpop.f32.mrf.mxu0
      %v3733 = vadd.f32 0.0, %v3732
      %3734 = vdwg.mxu0
      %v3735 = vadd.f32 %v3613, %v3716
      %v3736 = vadd.f32 %v3614, %v3718
      %v3737 = vadd.f32 %v3615, %v3721
      %v3738 = vadd.f32 %v3616, %v3723
      %v3739 = vadd.f32 %v3617, %v3726
      %v3740 = vadd.f32 %v3618, %v3728
      %v3741 = vadd.f32 %v3619, %v3731
      %v3742 = vadd.f32 %v3620, %v3733
      %v3743 = vld [vmem:[%s5] sm:$0x1]
      %v3745 = vperm.slane %v3743, 0
      %v3747 = vmul.f32 %v3735, %v3745
      %v3748 = vmul.f32 %v3736, %v3745
      %v3749 = vmul.f32 %v3737, %v3745
      %v3750 = vmul.f32 %v3738, %v3745
      %v3751 = vmul.f32 %v3739, %v3745
      %v3752 = vmul.f32 %v3740, %v3745
      %v3753 = vmul.f32 %v3741, %v3745
      %v3754 = vmul.f32 %v3742, %v3745
      %v3755 = vld [vmem:[%s6] sm:$0x1]
      %v3757 = vperm.slane %v3755, 0
      %v3759 = vadd.f32 %v3747, %v3757
      %v3760 = vadd.f32 %v3748, %v3757
      %v3761 = vadd.f32 %v3749, %v3757
      %v3762 = vadd.f32 %v3750, %v3757
      %v3763 = vadd.f32 %v3751, %v3757
      %v3764 = vadd.f32 %v3752, %v3757
      %v3765 = vadd.f32 %v3753, %v3757
      %v3766 = vadd.f32 %v3754, %v3757
      %v3767 = vmax.f32 %v3759, 0.0
      %v3768 = vmax.f32 %v3760, 0.0
      %v3769 = vmax.f32 %v3761, 0.0
      %v3770 = vmax.f32 %v3762, 0.0
      %v3771 = vmax.f32 %v3763, 0.0
      %v3772 = vmax.f32 %v3764, 0.0
      %v3773 = vmax.f32 %v3765, 0.0
      %v3774 = vmax.f32 %v3766, 0.0
      %3775 = vst.msk [vmem:[%s278] sm:$0xff] %vm2714, %v3767
      %3776 = vst.msk [vmem:[%s278 + $0x8] sm:$0xff] %vm2714, %v3768
      %3777 = vst.msk [vmem:[%s278 + $0x10] sm:$0xff] %vm2714, %v3769
      %3778 = vst.msk [vmem:[%s278 + $0x18] sm:$0xff] %vm2714, %v3770
      %3779 = vst.msk [vmem:[%s278 + $0x20] sm:$0xff] %vm2714, %v3771
      %3780 = vst.msk [vmem:[%s278 + $0x28] sm:$0xff] %vm2714, %v3772
      %3781 = vst.msk [vmem:[%s278 + $0x30] sm:$0xff] %vm2714, %v3773
      %3782 = vst.msk [vmem:[%s278 + $0x38] sm:$0xff] %vm2714, %v3774
      %p3783 = scmp.lt.s32.totalorder %s18, 1
      %s3784 = scalar_select %p3783, %s18, 1
      %s3785 = smul.addr %s3784, 8
      %s3786 = smul.addr %s3785, 8
      %s3787 = scalar_lea.vmem %s7, %s3786
      // Predicated region
      $region49: #{down_forward.1} parent=47 // pred_check
        %p3788 = pneg %p188
      $region50: #{down_forward.1} parent=47 // pred_check_branch
        %3790 = sbr.rel (%p3788) target = $region52
      $region51: #{down_forward.1} parent=47 // pred_region
        _
      $region52: #{down_forward.1} parent=47 // pred_fallthru
        _
    $region48: #{down_forward.1} parent=5 // pred_fallthru
      _
    %p3791 = scmp.le.s32.totalorder 2, %s13
    // Predicated region
    $region53: #{down_forward.1} parent=5 // pred_check
      %p3792 = pneg %p3791
    $region54: #{down_forward.1} parent=5 // pred_check_branch
      %3794 = sbr.rel (%p3792) target = $region56
    $region55: #{down_forward.1} parent=5 // pred_region
      %s3795 = ssub.s32 %s13, 2
      // Predicated region
      $region57: #{down_forward.1} parent=55 // pred_check
        %p3796 = pneg %p194
      $region58: #{down_forward.1} parent=55 // pred_check_branch
        %3798 = sbr.rel (%p3796) target = $region60
      $region59: #{down_forward.1} parent=55 // pred_region
        %p3799 = scmp.lt.s32.totalorder %s19, 1
        %s3800 = scalar_select %p3799, %s19, 1
        %s3801 = smul.addr %s3800, 8
        %s3802 = smul.addr %s3801, 8
        %s3803 = scalar_lea.vmem %s7, %s3802
      $region60: #{down_forward.1} parent=55 // pred_fallthru
        _
    $region56: #{down_forward.1} parent=5 // pred_fallthru
      _
  $region6: #{down_forward.1} parent=0 // loop_footer
    %s17 = sadd.s32 1, %s13
  $region7: #{down_forward.1} parent=0 // loop_footer_branch
    %12 = sbr.rel target = $region3
  $region8: #{down_forward.1} parent=0 // loop_exit
    _

</llo_original>
